<compile_context>
chip_gen: v7x
topology: tpu7x:2x2x1
jax: 0.10.0
libtpu: 0.0.40
codegen_flags: <defaults>
</compile_context>

<pallas_src>
import functools
import math

import jax
import jax.numpy as jnp
from jax.experimental import pallas as pl
from jax.experimental.pallas import tpu as pltpu

# Matmul-input dtype.  float32 keeps strict numerical parity with the PyTorch
# reference; set to jnp.bfloat16 on v6e/v7x for ~3-6x MXU throughput (inputs
# rounded to bf16, accumulation stays f32).  LayerNorm-statistic and softmax-
# denominator matmuls always stay f32.
MXU_INPUT_DTYPE = jnp.float32
VMEM_LIMIT_BYTES = 64 * 1024 * 1024


def _mm(a, b):
    """MXU matmul with optional bf16 input cast, f32 accumulation."""
    return jnp.dot(a.astype(MXU_INPUT_DTYPE), b.astype(MXU_INPUT_DTYPE),
                   preferred_element_type=jnp.float32)


# -----------------------------------------------------------------------------
# Kernel 1: NodeEdgeBlock attention (one chunk of BB graphs per grid step)
# -----------------------------------------------------------------------------
def _attn_kernel(x2d_ref, xrow_ref, e_ref, m_ref, mjdx_ref, mjde_ref,
                 wq_ref, bq_ref, wkv_ref, bkv_ref, wema_ref, bema_ref,
                 weo_ref, beo_ref, wef_ref, bef_ref, gsum_ref,
                 wxo_ref, bxo_ref,
                 newx_ref, newe_ref,
                 *, bb, n, dx, de):
    ndx = n * dx
    nde = n * de

    x2d = x2d_ref[0]      # (bb*n, dx)    one row per (b, i)
    xrow = xrow_ref[0]    # (bb, n*dx)    one row per graph, packed over j
    e = e_ref[0]          # (bb*n, n*de)  one row per (b, i), packed over j
    m = m_ref[0]          # (bb*n, 1)     node mask per (b, i)
    mj_dx = mjdx_ref[0]   # (bb, n*dx)    node mask per (b, j), dx lanes each
    mj_de = mjde_ref[0]   # (bb, n*de)    node mask per (b, j), de lanes each

    # Q (1/sqrt(df) folded into weight+bias), tiled over j along lanes.
    q = _mm(x2d, wq_ref[...]) + bq_ref[...]                        # (bb*n, n*dx)
    # K / V packed per graph via block-diagonal weights.
    kv = _mm(xrow, wkv_ref[...]) + bkv_ref[...]                    # (bb, 2*n*dx)
    k_row = kv[:, :ndx]                                            # K[b, j, c] at lane j*dx+c
    v_row = kv[:, ndx:]

    # e_mul / e_add via block-diagonal weights, already packed (j, dx) on lanes.
    ema = _mm(e, wema_ref[...]) + bema_ref[...]                    # (bb*n, 2*n*dx)
    e_mul = ema[:, :ndx].reshape(bb, n, ndx)
    e_add = ema[:, ndx:].reshape(bb, n, ndx)

    # Y[b, i, j*dx+c] = Q[b,i,c]*K[b,j,c]/sqrt(df) * (e_mul+1) + e_add.
    # Mask-free on purpose: masked entries never reach the outputs (newE is
    # masked after e_out, masked j is excluded by the softmax, masked i rows
    # of newX are zeroed at the end).
    y = q.reshape(bb, n, ndx) * k_row[:, None, :] * (e_mul + 1.0) + e_add

    # ---------------- newE path ----------------
    emask = m.reshape(bb, n, 1) * mj_de[:, None, :]                # m_i * m_j, packed
    ne1 = _mm(y.reshape(bb * n, ndx), weo_ref[...]) + beo_ref[...] # (bb*n, n*de)
    ne1 = ne1.reshape(bb, n, nde) * emask
    # packed (j, de) lanes == torch flatten(start_dim=2): e_final directly.
    newe_ref[0] = _mm(ne1.reshape(bb * n, nde), wef_ref[...]) + bef_ref[...]

    # ---------------- attention / newX path ----------------
    # Masked softmax over j per channel.  Subtracting the per-row max (over
    # all j and c) is an equivalent softmax shift and avoids a strided reduce.
    ymask = jnp.where(mj_dx[:, None, :] > 0.0, y, -1e30)
    ymax = jnp.max(ymask, axis=-1, keepdims=True)                  # (bb, n, 1)
    p = jnp.exp(ymask - ymax)                                      # lane-dense EUP
    # Per-channel sum over j, broadcast back over j, in one f32 MXU matmul
    # with gsum = ones(n,n) (x) eye(dx).
    denom = jnp.dot(p.reshape(bb * n, ndx), gsum_ref[...],
                    preferred_element_type=jnp.float32).reshape(bb, n, ndx)
    attn = p / denom                                               # exact division
    av = attn * v_row[:, None, :]                                  # (bb, n, n*dx)
    # x_out with the weight tiled vertically over j sums the j groups inside
    # the matmul (no strided lane reduction needed).
    newx = _mm(av.reshape(bb * n, ndx), wxo_ref[...]) + bxo_ref[...]
    newx_ref[0] = newx * m                                         # final x_mask


# -----------------------------------------------------------------------------
# Kernel 2: residual + LayerNorm + FFN for both X and E paths
# -----------------------------------------------------------------------------
def _layernorm(x, gamma, beta, eps):
    mu = jnp.mean(x, axis=-1, keepdims=True)
    var = jnp.mean((x - mu) ** 2, axis=-1, keepdims=True)
    return (x - mu) * jax.lax.rsqrt(var + eps) * gamma + beta


def _group_layernorm(x, gavg, gamma_t, beta_t, eps):
    # LayerNorm over each de-sized lane group of a (rows, n*de) packed tensor.
    # gavg = eye(n) (x) ones(de,de)/de: one f32 matmul gives the per-group
    # mean already broadcast back across the group.
    mu = jnp.dot(x, gavg, preferred_element_type=jnp.float32)
    xc = x - mu
    var = jnp.dot(xc * xc, gavg, preferred_element_type=jnp.float32)
    return xc * jax.lax.rsqrt(var + eps) * gamma_t + beta_t


def _update_kernel(x_ref, newx_ref, e_ref, newe_ref,
                   gx1_ref, bx1_ref, gx2_ref, bx2_ref,
                   wx1_ref, bwx1_ref, wx2_ref, bwx2_ref,
                   ge1_ref, be1_ref, ge2_ref, be2_ref, gavg_ref,
                   we1_ref, bwe1_ref, we2_ref, bwe2_ref,
                   xo_ref, eo_ref,
                   *, bb, n, dx, de, eps):
    # ---- X path (dropout == identity in eval mode) ----
    x = x_ref[0] + newx_ref[0]                                     # (bb*n, dx)
    x = _layernorm(x, gx1_ref[...], bx1_ref[...], eps)
    h = jnp.maximum(_mm(x, wx1_ref[...]) + bwx1_ref[...], 0.0)
    x = _layernorm(x + _mm(h, wx2_ref[...]) + bwx2_ref[...],
                   gx2_ref[...], bx2_ref[...], eps)
    xo_ref[0] = x

    # ---- E path, packed (j, de) on lanes.  Reproduces the PyTorch broadcast
    # E[b, i, j] + newE[i, j] (requires bs == n, asserted by the caller). ----
    gavg = gavg_ref[...]
    e = (e_ref[0].reshape(bb, n, n * de)
         + newe_ref[...][None, :, :]).reshape(bb * n, n * de)
    e = _group_layernorm(e, gavg, ge1_ref[...], be1_ref[...], eps)
    he = jnp.maximum(_mm(e, we1_ref[...]) + bwe1_ref[...], 0.0)    # (bb*n, n*ffE)
    ffe = _mm(he, we2_ref[...]) + bwe2_ref[...]                    # (bb*n, n*de)
    eo_ref[0] = _group_layernorm(e + ffe, gavg, ge2_ref[...], be2_ref[...], eps)


# -----------------------------------------------------------------------------
# Wrappers
# -----------------------------------------------------------------------------
def _const_spec(arr):
    zeros = (0,) * arr.ndim
    return pl.BlockSpec(arr.shape, lambda c: zeros)


def _num_chunks(bs, n, de, itemsize=4):
    """Grid steps along the batch axis.

    >=4 steps keeps both v7x TensorCores busy with >=2 steps each (so DMA /
    compute overlap instead of one fully exposed step per core); for large
    problems the per-step E block is kept to ~4 MiB so it also fits v7x's
    64 MiB physical VMEM (v5e/v6e tolerate bigger blocks)."""
    per_graph = n * n * de * itemsize
    by_size = -(-(bs * per_graph) // (4 << 20))      # ceil
    want = min(bs, max(4, by_size))
    for c in range(want, 0, -1):
        if bs % c == 0:
            return c
    return 1


def node_edge_attention(X, E, node_mask, p, n_head, num_chunks):
    bs, n, dx = X.shape
    de = E.shape[-1]
    assert dx % n_head == 0
    df = dx // n_head
    C = num_chunks
    BB = bs // C
    scale = 1.0 / math.sqrt(df)
    eyen = jnp.eye(n, dtype=jnp.float32)

    # ---- host-side weight packing (block-diagonal / lane-tiled forms) ----
    wq_t = jnp.tile(p['wq'] * scale, (1, n))                         # (dx, n*dx)
    bq_t = jnp.tile(p['bq'] * scale, (1, n))                         # (1, n*dx)
    wkv = jnp.concatenate([jnp.kron(eyen, p['wk']),
                           jnp.kron(eyen, p['wv'])], axis=1)         # (n*dx, 2*n*dx)
    bkv = jnp.concatenate([jnp.tile(p['bk'], (1, n)),
                           jnp.tile(p['bv'], (1, n))], axis=1)       # (1, 2*n*dx)
    wema = jnp.concatenate([jnp.kron(eyen, p['we_mul']),
                            jnp.kron(eyen, p['we_add'])], axis=1)    # (n*de, 2*n*dx)
    bema = jnp.concatenate([jnp.tile(p['be_mul'], (1, n)),
                            jnp.tile(p['be_add'], (1, n))], axis=1)  # (1, 2*n*dx)
    weo = jnp.kron(eyen, p['we_out'])                                # (n*dx, n*de)
    beo = jnp.tile(p['be_out'], (1, n))                              # (1, n*de)
    gsum = jnp.kron(jnp.ones((n, n), jnp.float32),
                    jnp.eye(dx, dtype=jnp.float32))                  # (n*dx, n*dx)
    wxo_t = jnp.tile(p['wx_out'], (n, 1))                            # (n*dx, dx)

    weights = [wq_t, bq_t, wkv, bkv, wema, bema, weo, beo,
               p['we_final'], p['be_final'], gsum, wxo_t, p['bx_out']]

    # ---- lane-dense input / mask packing (host-side reshapes only) ----
    mask = node_mask.astype(jnp.float32)
    X2d = X.reshape(C, BB * n, dx)
    Xrow = X.reshape(C, BB, n * dx)
    Ep = E.reshape(C, BB * n, n * de)
    M = mask.reshape(C, BB * n, 1)
    Mjdx = jnp.repeat(mask, dx, axis=1).reshape(C, BB, n * dx)
    Mjde = jnp.repeat(mask, de, axis=1).reshape(C, BB, n * de)

    kernel = functools.partial(_attn_kernel, bb=BB, n=n, dx=dx, de=de)
    newX, newE = pl.pallas_call(
        kernel,
        out_shape=(jax.ShapeDtypeStruct((C, BB * n, dx), jnp.float32),
                   jax.ShapeDtypeStruct((C, BB * n, de), jnp.float32)),
        grid=(C,),
        in_specs=[pl.BlockSpec((1, BB * n, dx), lambda c: (c, 0, 0)),
                  pl.BlockSpec((1, BB, n * dx), lambda c: (c, 0, 0)),
                  pl.BlockSpec((1, BB * n, n * de), lambda c: (c, 0, 0)),
                  pl.BlockSpec((1, BB * n, 1), lambda c: (c, 0, 0)),
                  pl.BlockSpec((1, BB, n * dx), lambda c: (c, 0, 0)),
                  pl.BlockSpec((1, BB, n * de), lambda c: (c, 0, 0))]
                 + [_const_spec(w) for w in weights],
        out_specs=(pl.BlockSpec((1, BB * n, dx), lambda c: (c, 0, 0)),
                   pl.BlockSpec((1, BB * n, de), lambda c: (c, 0, 0))),
        compiler_params=pltpu.CompilerParams(
            dimension_semantics=("parallel",),
            vmem_limit_bytes=VMEM_LIMIT_BYTES),
    )(X2d, Xrow, Ep, M, Mjdx, Mjde, *weights)
    return newX.reshape(bs, n, dx), newE.reshape(bs, n, de)


def xe_update(X, newX, E, newE, p, eps, num_chunks):
    bs, n, dx = X.shape
    de = E.shape[-1]
    C = num_chunks
    BB = bs // C
    eyen = jnp.eye(n, dtype=jnp.float32)

    # The E-residual broadcast needs all rows of newE at every grid step.
    nEf = newE.reshape(bs, n * de)                                   # (n, n*de), bs == n

    # Packed E-path parameters (LN params tiled over j, FFN weights block-diag).
    ge1_t = jnp.tile(p['ge1'], (1, n)); be1_t = jnp.tile(p['be1'], (1, n))
    ge2_t = jnp.tile(p['ge2'], (1, n)); be2_t = jnp.tile(p['be2'], (1, n))
    gavg = jnp.kron(eyen, jnp.full((de, de), 1.0 / de, jnp.float32))
    we1_blk = jnp.kron(eyen, p['wle1']); bwe1_t = jnp.tile(p['ble1'], (1, n))
    we2_blk = jnp.kron(eyen, p['wle2']); bwe2_t = jnp.tile(p['ble2'], (1, n))

    weights = [p['gx1'], p['bx1'], p['gx2'], p['bx2'],
               p['wlx1'], p['blx1'], p['wlx2'], p['blx2'],
               ge1_t, be1_t, ge2_t, be2_t, gavg,
               we1_blk, bwe1_t, we2_blk, bwe2_t]

    Xf = X.reshape(C, BB * n, dx)
    nXf = newX.reshape(C, BB * n, dx)
    Ef = E.reshape(C, BB * n, n * de)

    kernel = functools.partial(_update_kernel, bb=BB, n=n, dx=dx, de=de, eps=eps)
    Xo, Eo = pl.pallas_call(
        kernel,
        out_shape=(jax.ShapeDtypeStruct((C, BB * n, dx), jnp.float32),
                   jax.ShapeDtypeStruct((C, BB * n, n * de), jnp.float32)),
        grid=(C,),
        in_specs=[pl.BlockSpec((1, BB * n, dx), lambda c: (c, 0, 0)),
                  pl.BlockSpec((1, BB * n, dx), lambda c: (c, 0, 0)),
                  pl.BlockSpec((1, BB * n, n * de), lambda c: (c, 0, 0)),
                  pl.BlockSpec((n, n * de), lambda c: (0, 0))]
                 + [_const_spec(w) for w in weights],
        out_specs=(pl.BlockSpec((1, BB * n, dx), lambda c: (c, 0, 0)),
                   pl.BlockSpec((1, BB * n, n * de), lambda c: (c, 0, 0))),
        input_output_aliases={0: 0, 2: 1},     # X -> Xo, E -> Eo (dominant HBM tensor)
        compiler_params=pltpu.CompilerParams(
            dimension_semantics=("parallel",),
            vmem_limit_bytes=VMEM_LIMIT_BYTES),
    )(Xf, nXf, Ef, nEf, *weights)
    return Xo.reshape(bs, n, dx), Eo.reshape(bs, n, n, de)


def xe_transformer_layer(X, E, node_mask, params, n_head, eps=1e-5):
    bs, n, _ = X.shape
    de = E.shape[-1]
    # The reference's `E + newE` residual broadcasts newE (bs, n, de) against
    # E (bs, n, n, de), which only type-checks for bs == n; fail loudly.
    assert bs == n, "XETransformerLayer residual E + newE requires bs == n"
    C = _num_chunks(bs, n, de)
    newX, newE = node_edge_attention(X, E, node_mask, params, n_head, C)
    return xe_update(X, newX, E, newE, params, eps, C)


# -----------------------------------------------------------------------------
# Deterministic parameter init (shapes from the module's __init__)
# -----------------------------------------------------------------------------
def init_params(key, *, n, dx, de, dim_ffX, dim_ffE):
    keys = jax.random.split(key, 24)
    ki = iter(keys)

    def lin(in_f, out_f):
        kw, kb = next(ki), next(ki)
        bound = 1.0 / math.sqrt(in_f)
        w = jax.random.uniform(kw, (in_f, out_f), jnp.float32, -bound, bound)
        b = jax.random.uniform(kb, (1, out_f), jnp.float32, -bound, bound)
        return w, b

    p = {}
    p['wq'], p['bq'] = lin(dx, dx)
    p['wk'], p['bk'] = lin(dx, dx)
    p['wv'], p['bv'] = lin(dx, dx)
    p['we_mul'], p['be_mul'] = lin(de, dx)
    p['we_add'], p['be_add'] = lin(de, dx)
    p['we_out'], p['be_out'] = lin(dx, de)
    p['we_final'], p['be_final'] = lin(n * de, de)   # LazyLinear(de): in = n*de
    p['wx_out'], p['bx_out'] = lin(dx, dx)
    p['wlx1'], p['blx1'] = lin(dx, dim_ffX)
    p['wlx2'], p['blx2'] = lin(dim_ffX, dx)
    p['wle1'], p['ble1'] = lin(de, dim_ffE)
    p['wle2'], p['ble2'] = lin(dim_ffE, de)
    p['gx1'] = jnp.ones((1, dx), jnp.float32); p['bx1'] = jnp.zeros((1, dx), jnp.float32)
    p['gx2'] = jnp.ones((1, dx), jnp.float32); p['bx2'] = jnp.zeros((1, dx), jnp.float32)
    p['ge1'] = jnp.ones((1, de), jnp.float32); p['be1'] = jnp.zeros((1, de), jnp.float32)
    p['ge2'] = jnp.ones((1, de), jnp.float32); p['be2'] = jnp.zeros((1, de), jnp.float32)
    return p


if __name__ == "__main__":
    bs, n = 8, 8                      # bs == n required by the E-residual broadcast
    dx, de, n_head = 32, 16, 4
    dim_ffX, dim_ffE = 64, 32

    key = jax.random.PRNGKey(0)
    kx, ke, km, kp = jax.random.split(key, 4)
    X = jax.random.normal(kx, (bs, n, dx), jnp.float32)
    E = jax.random.normal(ke, (bs, n, n, de), jnp.float32)
    node_mask = (jax.random.uniform(km, (bs, n)) > 0.3).astype(jnp.float32)
    node_mask = node_mask.at[:, 0].set(1.0)   # >=1 valid node per graph

    params = init_params(kp, n=n, dx=dx, de=de, dim_ffX=dim_ffX, dim_ffE=dim_ffE)

    fwd = jax.jit(functools.partial(xe_transformer_layer, n_head=n_head, eps=1e-5))
    Xo, Eo = fwd(X, E, node_mask, params)
    jax.block_until_ready((Xo, Eo))
    assert Xo.shape == (bs, n, dx) and Eo.shape == (bs, n, n, de)
    assert bool(jnp.isfinite(Xo).all()) and bool(jnp.isfinite(Eo).all())
    print("KERNEL_OK")
</pallas_src>

<mosaic_0001>
module attributes {stable_mosaic.version = 11 : i64} {
  func.func @_attn_kernel(%arg0: i32, %arg1: memref<1x16x32xf32, #tpu.memory_space<vmem>>, %arg2: memref<1x2x256xf32, #tpu.memory_space<vmem>>, %arg3: memref<1x16x128xf32, #tpu.memory_space<vmem>>, %arg4: memref<1x16x1xf32, #tpu.memory_space<vmem>>, %arg5: memref<1x2x256xf32, #tpu.memory_space<vmem>>, %arg6: memref<1x2x128xf32, #tpu.memory_space<vmem>>, %arg7: memref<32x256xf32, #tpu.memory_space<vmem>>, %arg8: memref<1x256xf32, #tpu.memory_space<vmem>>, %arg9: memref<256x512xf32, #tpu.memory_space<vmem>>, %arg10: memref<1x512xf32, #tpu.memory_space<vmem>>, %arg11: memref<128x512xf32, #tpu.memory_space<vmem>>, %arg12: memref<1x512xf32, #tpu.memory_space<vmem>>, %arg13: memref<256x128xf32, #tpu.memory_space<vmem>>, %arg14: memref<1x128xf32, #tpu.memory_space<vmem>>, %arg15: memref<128x16xf32, #tpu.memory_space<vmem>>, %arg16: memref<1x16xf32, #tpu.memory_space<vmem>>, %arg17: memref<256x256xf32, #tpu.memory_space<vmem>>, %arg18: memref<256x32xf32, #tpu.memory_space<vmem>>, %arg19: memref<1x32xf32, #tpu.memory_space<vmem>>, %arg20: memref<1x16x32xf32, #tpu.memory_space<vmem>>, %arg21: memref<1x16x16xf32, #tpu.memory_space<vmem>>) attributes {dimension_semantics = [#tpu.dimension_semantics<parallel>], iteration_bounds = array<i64: 4>, scalar_prefetch = 0 : i64, scratch_operands = 0 : i64, tpu.core_type = #tpu.core_type<tc>, window_params = [{transform_indices = @transform_0, window_bounds = array<i64: 1, 16, 32>}, {transform_indices = @transform_1, window_bounds = array<i64: 1, 2, 256>}, {transform_indices = @transform_2, window_bounds = array<i64: 1, 16, 128>}, {transform_indices = @transform_3, window_bounds = array<i64: 1, 16, 1>}, {transform_indices = @transform_4, window_bounds = array<i64: 1, 2, 256>}, {transform_indices = @transform_5, window_bounds = array<i64: 1, 2, 128>}, {pipeline_mode = #tpu.pipeline_mode<synchronous>, transform_indices = @transform_6, window_bounds = array<i64: 32, 256>}, {pipeline_mode = #tpu.pipeline_mode<synchronous>, transform_indices = @transform_7, window_bounds = array<i64: 1, 256>}, {pipeline_mode = #tpu.pipeline_mode<synchronous>, transform_indices = @transform_8, window_bounds = array<i64: 256, 512>}, {pipeline_mode = #tpu.pipeline_mode<synchronous>, transform_indices = @transform_9, window_bounds = array<i64: 1, 512>}, {pipeline_mode = #tpu.pipeline_mode<synchronous>, transform_indices = @transform_10, window_bounds = array<i64: 128, 512>}, {pipeline_mode = #tpu.pipeline_mode<synchronous>, transform_indices = @transform_11, window_bounds = array<i64: 1, 512>}, {pipeline_mode = #tpu.pipeline_mode<synchronous>, transform_indices = @transform_12, window_bounds = array<i64: 256, 128>}, {pipeline_mode = #tpu.pipeline_mode<synchronous>, transform_indices = @transform_13, window_bounds = array<i64: 1, 128>}, {pipeline_mode = #tpu.pipeline_mode<synchronous>, transform_indices = @transform_14, window_bounds = array<i64: 128, 16>}, {pipeline_mode = #tpu.pipeline_mode<synchronous>, transform_indices = @transform_15, window_bounds = array<i64: 1, 16>}, {pipeline_mode = #tpu.pipeline_mode<synchronous>, transform_indices = @transform_16, window_bounds = array<i64: 256, 256>}, {pipeline_mode = #tpu.pipeline_mode<synchronous>, transform_indices = @transform_17, window_bounds = array<i64: 256, 32>}, {pipeline_mode = #tpu.pipeline_mode<synchronous>, transform_indices = @transform_18, window_bounds = array<i64: 1, 32>}, {transform_indices = @transform_19, window_bounds = array<i64: 1, 16, 32>}, {transform_indices = @transform_20, window_bounds = array<i64: 1, 16, 16>}]} {
    %c0 = arith.constant 0 : index
    %c0_0 = arith.constant 0 : index
    %c0_1 = arith.constant 0 : index
    %0 = vector.load %arg1[%c0, %c0_0, %c0_1] : memref<1x16x32xf32, #tpu.memory_space<vmem>>, vector<1x16x32xf32>
    %1 = vector.shape_cast %0 : vector<1x16x32xf32> to vector<16x32xf32>
    %c0_2 = arith.constant 0 : index
    %c0_3 = arith.constant 0 : index
    %c0_4 = arith.constant 0 : index
    %2 = vector.load %arg2[%c0_2, %c0_3, %c0_4] : memref<1x2x256xf32, #tpu.memory_space<vmem>>, vector<1x2x256xf32>
    %3 = vector.shape_cast %2 : vector<1x2x256xf32> to vector<2x256xf32>
    %c0_5 = arith.constant 0 : index
    %c0_6 = arith.constant 0 : index
    %c0_7 = arith.constant 0 : index
    %4 = vector.load %arg3[%c0_5, %c0_6, %c0_7] : memref<1x16x128xf32, #tpu.memory_space<vmem>>, vector<1x16x128xf32>
    %5 = vector.shape_cast %4 : vector<1x16x128xf32> to vector<16x128xf32>
    %c0_8 = arith.constant 0 : index
    %c0_9 = arith.constant 0 : index
    %c0_10 = arith.constant 0 : index
    %6 = vector.load %arg4[%c0_8, %c0_9, %c0_10] : memref<1x16x1xf32, #tpu.memory_space<vmem>>, vector<1x16x1xf32>
    %7 = vector.shape_cast %6 : vector<1x16x1xf32> to vector<16x1xf32>
    %c0_11 = arith.constant 0 : index
    %c0_12 = arith.constant 0 : index
    %c0_13 = arith.constant 0 : index
    %8 = vector.load %arg5[%c0_11, %c0_12, %c0_13] : memref<1x2x256xf32, #tpu.memory_space<vmem>>, vector<1x2x256xf32>
    %9 = vector.shape_cast %8 : vector<1x2x256xf32> to vector<2x256xf32>
    %c0_14 = arith.constant 0 : index
    %c0_15 = arith.constant 0 : index
    %c0_16 = arith.constant 0 : index
    %10 = vector.load %arg6[%c0_14, %c0_15, %c0_16] : memref<1x2x128xf32, #tpu.memory_space<vmem>>, vector<1x2x128xf32>
    %11 = vector.shape_cast %10 : vector<1x2x128xf32> to vector<2x128xf32>
    %c0_17 = arith.constant 0 : index
    %c0_18 = arith.constant 0 : index
    %12 = vector.load %arg7[%c0_17, %c0_18] : memref<32x256xf32, #tpu.memory_space<vmem>>, vector<32x256xf32>
    %cst = arith.constant dense<0.000000e+00> : vector<16x256xf32>
    %13 = tpu.matmul %1, %12, %cst {dimension_numbers = #tpu.dot_dimension_numbers<[1], [0], [0], [1], [0, 0, 1, 1], [], []>} : vector<16x32xf32>, vector<32x256xf32>, vector<16x256xf32> -> vector<16x256xf32>
    %c0_19 = arith.constant 0 : index
    %c0_20 = arith.constant 0 : index
    %14 = vector.load %arg8[%c0_19, %c0_20] : memref<1x256xf32, #tpu.memory_space<vmem>>, vector<1x256xf32>
    %15 = vector.broadcast %14 : vector<1x256xf32> to vector<16x256xf32>
    %16 = arith.addf %13, %15 : vector<16x256xf32>
    %c0_21 = arith.constant 0 : index
    %c0_22 = arith.constant 0 : index
    %17 = vector.load %arg9[%c0_21, %c0_22] : memref<256x512xf32, #tpu.memory_space<vmem>>, vector<256x512xf32>
    %cst_23 = arith.constant dense<0.000000e+00> : vector<2x512xf32>
    %18 = tpu.matmul %3, %17, %cst_23 {dimension_numbers = #tpu.dot_dimension_numbers<[1], [0], [0], [1], [0, 0, 1, 1], [], []>} : vector<2x256xf32>, vector<256x512xf32>, vector<2x512xf32> -> vector<2x512xf32>
    %c0_24 = arith.constant 0 : index
    %c0_25 = arith.constant 0 : index
    %19 = vector.load %arg10[%c0_24, %c0_25] : memref<1x512xf32, #tpu.memory_space<vmem>>, vector<1x512xf32>
    %20 = vector.broadcast %19 : vector<1x512xf32> to vector<2x512xf32>
    %21 = arith.addf %18, %20 : vector<2x512xf32>
    %22 = vector.extract_strided_slice %21 {offsets = [0, 0], sizes = [2, 256], strides = [1, 1]} : vector<2x512xf32> to vector<2x256xf32>
    %23 = vector.extract_strided_slice %21 {offsets = [0, 256], sizes = [2, 256], strides = [1, 1]} : vector<2x512xf32> to vector<2x256xf32>
    %c0_26 = arith.constant 0 : index
    %c0_27 = arith.constant 0 : index
    %24 = vector.load %arg11[%c0_26, %c0_27] : memref<128x512xf32, #tpu.memory_space<vmem>>, vector<128x512xf32>
    %cst_28 = arith.constant dense<0.000000e+00> : vector<16x512xf32>
    %25 = tpu.matmul %5, %24, %cst_28 {dimension_numbers = #tpu.dot_dimension_numbers<[1], [0], [0], [1], [0, 0, 1, 1], [], []>} : vector<16x128xf32>, vector<128x512xf32>, vector<16x512xf32> -> vector<16x512xf32>
    %c0_29 = arith.constant 0 : index
    %c0_30 = arith.constant 0 : index
    %26 = vector.load %arg12[%c0_29, %c0_30] : memref<1x512xf32, #tpu.memory_space<vmem>>, vector<1x512xf32>
    %27 = vector.broadcast %26 : vector<1x512xf32> to vector<16x512xf32>
    %28 = arith.addf %25, %27 : vector<16x512xf32>
    %29 = vector.extract_strided_slice %28 {offsets = [0, 0], sizes = [16, 256], strides = [1, 1]} : vector<16x512xf32> to vector<16x256xf32>
    %30 = vector.shape_cast %29 : vector<16x256xf32> to vector<2x8x256xf32>
    %31 = vector.extract_strided_slice %28 {offsets = [0, 256], sizes = [16, 256], strides = [1, 1]} : vector<16x512xf32> to vector<16x256xf32>
    %32 = vector.shape_cast %31 : vector<16x256xf32> to vector<2x8x256xf32>
    %33 = vector.shape_cast %16 : vector<16x256xf32> to vector<2x8x256xf32>
    %34 = vector.shape_cast %22 : vector<2x256xf32> to vector<2x1x256xf32>
    %35 = vector.broadcast %34 : vector<2x1x256xf32> to vector<2x8x256xf32>
    %36 = arith.mulf %33, %35 : vector<2x8x256xf32>
    %cst_31 = arith.constant 1.000000e+00 : f32
    %37 = vector.broadcast %cst_31 : f32 to vector<2x8x256xf32>
    %38 = arith.addf %30, %37 : vector<2x8x256xf32>
    %39 = arith.mulf %36, %38 : vector<2x8x256xf32>
    %40 = arith.addf %39, %32 : vector<2x8x256xf32>
    %41 = vector.shape_cast %7 : vector<16x1xf32> to vector<2x8x1xf32>
    %42 = vector.shape_cast %11 : vector<2x128xf32> to vector<2x1x128xf32>
    %43 = vector.broadcast %41 : vector<2x8x1xf32> to vector<2x8x128xf32>
    %44 = vector.broadcast %42 : vector<2x1x128xf32> to vector<2x8x128xf32>
    %45 = arith.mulf %43, %44 : vector<2x8x128xf32>
    %46 = vector.shape_cast %40 : vector<2x8x256xf32> to vector<16x256xf32>
    %c0_32 = arith.constant 0 : index
    %c0_33 = arith.constant 0 : index
    %47 = vector.load %arg13[%c0_32, %c0_33] : memref<256x128xf32, #tpu.memory_space<vmem>>, vector<256x128xf32>
    %cst_34 = arith.constant dense<0.000000e+00> : vector<16x128xf32>
    %48 = tpu.matmul %46, %47, %cst_34 {dimension_numbers = #tpu.dot_dimension_numbers<[1], [0], [0], [1], [0, 0, 1, 1], [], []>} : vector<16x256xf32>, vector<256x128xf32>, vector<16x128xf32> -> vector<16x128xf32>
    %c0_35 = arith.constant 0 : index
    %c0_36 = arith.constant 0 : index
    %49 = vector.load %arg14[%c0_35, %c0_36] : memref<1x128xf32, #tpu.memory_space<vmem>>, vector<1x128xf32>
    %50 = vector.broadcast %49 : vector<1x128xf32> to vector<16x128xf32>
    %51 = arith.addf %48, %50 : vector<16x128xf32>
    %52 = vector.shape_cast %51 : vector<16x128xf32> to vector<2x8x128xf32>
    %53 = arith.mulf %52, %45 : vector<2x8x128xf32>
    %54 = vector.shape_cast %53 : vector<2x8x128xf32> to vector<16x128xf32>
    %c0_37 = arith.constant 0 : index
    %c0_38 = arith.constant 0 : index
    %55 = vector.load %arg15[%c0_37, %c0_38] : memref<128x16xf32, #tpu.memory_space<vmem>>, vector<128x16xf32>
    %cst_39 = arith.constant dense<0.000000e+00> : vector<16x16xf32>
    %56 = tpu.matmul %54, %55, %cst_39 {dimension_numbers = #tpu.dot_dimension_numbers<[1], [0], [0], [1], [0, 0, 1, 1], [], []>} : vector<16x128xf32>, vector<128x16xf32>, vector<16x16xf32> -> vector<16x16xf32>
    %c0_40 = arith.constant 0 : index
    %c0_41 = arith.constant 0 : index
    %57 = vector.load %arg16[%c0_40, %c0_41] : memref<1x16xf32, #tpu.memory_space<vmem>>, vector<1x16xf32>
    %58 = vector.broadcast %57 : vector<1x16xf32> to vector<16x16xf32>
    %59 = arith.addf %56, %58 : vector<16x16xf32>
    %c0_42 = arith.constant 0 : index
    %c0_43 = arith.constant 0 : index
    %c0_44 = arith.constant 0 : index
    %60 = vector.load %arg21[%c0_42, %c0_43, %c0_44] : memref<1x16x16xf32, #tpu.memory_space<vmem>>, vector<1x16x16xf32>
    %61 = vector.shape_cast %60 : vector<1x16x16xf32> to vector<16x16xf32>
    %62 = vector.shape_cast %59 : vector<16x16xf32> to vector<1x16x16xf32>
    tpu.vector_store %arg21[%c0_42, %c0_43, %c0_44], %62 {strides = array<i32>} : memref<1x16x16xf32, #tpu.memory_space<vmem>>, vector<1x16x16xf32>,
    %63 = vector.shape_cast %9 : vector<2x256xf32> to vector<2x1x256xf32>
    %cst_45 = arith.constant 0.000000e+00 : f32
    %64 = vector.broadcast %cst_45 : f32 to vector<2x1x256xf32>
    %65 = arith.cmpf ogt, %63, %64 : vector<2x1x256xf32>
    %cst_46 = arith.constant -1.000000e+30 : f32
    %66 = vector.shape_cast %65 : vector<2x1x256xi1> to vector<2x1x256xi1>
    %67 = vector.broadcast %66 : vector<2x1x256xi1> to vector<2x8x256xi1>
    %68 = vector.broadcast %cst_46 : f32 to vector<2x8x256xf32>
    %69 = arith.select %67, %40, %68 : vector<2x8x256xi1>, vector<2x8x256xf32>
    %cst_47 = arith.constant dense<0xFF800000> : vector<2x8xf32>
    %70 = vector.multi_reduction <maximumf>, %69, %cst_47 [2] : vector<2x8x256xf32> to vector<2x8xf32>
    %71 = vector.shape_cast %70 : vector<2x8xf32> to vector<2x8x1xf32>
    %72 = vector.broadcast %71 : vector<2x8x1xf32> to vector<2x8x256xf32>
    %73 = arith.subf %69, %72 : vector<2x8x256xf32>
    %74 = math.exp %73 : vector<2x8x256xf32>
    %75 = vector.shape_cast %74 : vector<2x8x256xf32> to vector<16x256xf32>
    %c0_48 = arith.constant 0 : index
    %c0_49 = arith.constant 0 : index
    %76 = vector.load %arg17[%c0_48, %c0_49] : memref<256x256xf32, #tpu.memory_space<vmem>>, vector<256x256xf32>
    %cst_50 = arith.constant dense<0.000000e+00> : vector<16x256xf32>
    %77 = tpu.matmul %75, %76, %cst_50 {dimension_numbers = #tpu.dot_dimension_numbers<[1], [0], [0], [1], [0, 0, 1, 1], [], []>} : vector<16x256xf32>, vector<256x256xf32>, vector<16x256xf32> -> vector<16x256xf32>
    %78 = vector.shape_cast %77 : vector<16x256xf32> to vector<2x8x256xf32>
    %79 = arith.divf %74, %78 : vector<2x8x256xf32>
    %80 = vector.shape_cast %23 : vector<2x256xf32> to vector<2x1x256xf32>
    %81 = vector.broadcast %80 : vector<2x1x256xf32> to vector<2x8x256xf32>
    %82 = arith.mulf %79, %81 : vector<2x8x256xf32>
    %83 = vector.shape_cast %82 : vector<2x8x256xf32> to vector<16x256xf32>
    %c0_51 = arith.constant 0 : index
    %c0_52 = arith.constant 0 : index
    %84 = vector.load %arg18[%c0_51, %c0_52] : memref<256x32xf32, #tpu.memory_space<vmem>>, vector<256x32xf32>
    %cst_53 = arith.constant dense<0.000000e+00> : vector<16x32xf32>
    %85 = tpu.matmul %83, %84, %cst_53 {dimension_numbers = #tpu.dot_dimension_numbers<[1], [0], [0], [1], [0, 0, 1, 1], [], []>} : vector<16x256xf32>, vector<256x32xf32>, vector<16x32xf32> -> vector<16x32xf32>
    %c0_54 = arith.constant 0 : index
    %c0_55 = arith.constant 0 : index
    %86 = vector.load %arg19[%c0_54, %c0_55] : memref<1x32xf32, #tpu.memory_space<vmem>>, vector<1x32xf32>
    %87 = vector.broadcast %86 : vector<1x32xf32> to vector<16x32xf32>
    %88 = arith.addf %85, %87 : vector<16x32xf32>
    %89 = vector.broadcast %7 : vector<16x1xf32> to vector<16x32xf32>
    %90 = arith.mulf %88, %89 : vector<16x32xf32>
    %c0_56 = arith.constant 0 : index
    %c0_57 = arith.constant 0 : index
    %c0_58 = arith.constant 0 : index
    %91 = vector.load %arg20[%c0_56, %c0_57, %c0_58] : memref<1x16x32xf32, #tpu.memory_space<vmem>>, vector<1x16x32xf32>
    %92 = vector.shape_cast %91 : vector<1x16x32xf32> to vector<16x32xf32>
    %93 = vector.shape_cast %90 : vector<16x32xf32> to vector<1x16x32xf32>
    tpu.vector_store %arg20[%c0_56, %c0_57, %c0_58], %93 {strides = array<i32>} : memref<1x16x32xf32, #tpu.memory_space<vmem>>, vector<1x16x32xf32>,
    return
  }
  func.func @transform_0(%arg0: i32) -> (i32, i32, i32) {
    %c0_i32 = arith.constant 0 : i32
    %c0_i32_0 = arith.constant 0 : i32
    %c0_i32_1 = arith.constant 0 : i32
    return %arg0, %c0_i32, %c0_i32_0 : i32, i32, i32
  }
  func.func @transform_1(%arg0: i32) -> (i32, i32, i32) {
    %c0_i32 = arith.constant 0 : i32
    %c0_i32_0 = arith.constant 0 : i32
    %c0_i32_1 = arith.constant 0 : i32
    return %arg0, %c0_i32, %c0_i32_0 : i32, i32, i32
  }
  func.func @transform_2(%arg0: i32) -> (i32, i32, i32) {
    %c0_i32 = arith.constant 0 : i32
    %c0_i32_0 = arith.constant 0 : i32
    %c0_i32_1 = arith.constant 0 : i32
    return %arg0, %c0_i32, %c0_i32_0 : i32, i32, i32
  }
  func.func @transform_3(%arg0: i32) -> (i32, i32, i32) {
    %c0_i32 = arith.constant 0 : i32
    %c0_i32_0 = arith.constant 0 : i32
    %c0_i32_1 = arith.constant 0 : i32
    return %arg0, %c0_i32, %c0_i32_0 : i32, i32, i32
  }
  func.func @transform_4(%arg0: i32) -> (i32, i32, i32) {
    %c0_i32 = arith.constant 0 : i32
    %c0_i32_0 = arith.constant 0 : i32
    %c0_i32_1 = arith.constant 0 : i32
    return %arg0, %c0_i32, %c0_i32_0 : i32, i32, i32
  }
  func.func @transform_5(%arg0: i32) -> (i32, i32, i32) {
    %c0_i32 = arith.constant 0 : i32
    %c0_i32_0 = arith.constant 0 : i32
    %c0_i32_1 = arith.constant 0 : i32
    return %arg0, %c0_i32, %c0_i32_0 : i32, i32, i32
  }
  func.func @transform_6(%arg0: i32) -> (i32, i32) {
    %c0_i32 = arith.constant 0 : i32
    %c0_i32_0 = arith.constant 0 : i32
    %c0_i32_1 = arith.constant 0 : i32
    return %c0_i32, %c0_i32_0 : i32, i32
  }
  func.func @transform_7(%arg0: i32) -> (i32, i32) {
    %c0_i32 = arith.constant 0 : i32
    %c0_i32_0 = arith.constant 0 : i32
    %c0_i32_1 = arith.constant 0 : i32
    return %c0_i32, %c0_i32_0 : i32, i32
  }
  func.func @transform_8(%arg0: i32) -> (i32, i32) {
    %c0_i32 = arith.constant 0 : i32
    %c0_i32_0 = arith.constant 0 : i32
    %c0_i32_1 = arith.constant 0 : i32
    return %c0_i32, %c0_i32_0 : i32, i32
  }
  func.func @transform_9(%arg0: i32) -> (i32, i32) {
    %c0_i32 = arith.constant 0 : i32
    %c0_i32_0 = arith.constant 0 : i32
    %c0_i32_1 = arith.constant 0 : i32
    return %c0_i32, %c0_i32_0 : i32, i32
  }
  func.func @transform_10(%arg0: i32) -> (i32, i32) {
    %c0_i32 = arith.constant 0 : i32
    %c0_i32_0 = arith.constant 0 : i32
    %c0_i32_1 = arith.constant 0 : i32
    return %c0_i32, %c0_i32_0 : i32, i32
  }
  func.func @transform_11(%arg0: i32) -> (i32, i32) {
    %c0_i32 = arith.constant 0 : i32
    %c0_i32_0 = arith.constant 0 : i32
    %c0_i32_1 = arith.constant 0 : i32
    return %c0_i32, %c0_i32_0 : i32, i32
  }
  func.func @transform_12(%arg0: i32) -> (i32, i32) {
    %c0_i32 = arith.constant 0 : i32
    %c0_i32_0 = arith.constant 0 : i32
    %c0_i32_1 = arith.constant 0 : i32
    return %c0_i32, %c0_i32_0 : i32, i32
  }
  func.func @transform_13(%arg0: i32) -> (i32, i32) {
    %c0_i32 = arith.constant 0 : i32
    %c0_i32_0 = arith.constant 0 : i32
    %c0_i32_1 = arith.constant 0 : i32
    return %c0_i32, %c0_i32_0 : i32, i32
  }
  func.func @transform_14(%arg0: i32) -> (i32, i32) {
    %c0_i32 = arith.constant 0 : i32
    %c0_i32_0 = arith.constant 0 : i32
    %c0_i32_1 = arith.constant 0 : i32
    return %c0_i32, %c0_i32_0 : i32, i32
  }
  func.func @transform_15(%arg0: i32) -> (i32, i32) {
    %c0_i32 = arith.constant 0 : i32
    %c0_i32_0 = arith.constant 0 : i32
    %c0_i32_1 = arith.constant 0 : i32
    return %c0_i32, %c0_i32_0 : i32, i32
  }
  func.func @transform_16(%arg0: i32) -> (i32, i32) {
    %c0_i32 = arith.constant 0 : i32
    %c0_i32_0 = arith.constant 0 : i32
    %c0_i32_1 = arith.constant 0 : i32
    return %c0_i32, %c0_i32_0 : i32, i32
  }
  func.func @transform_17(%arg0: i32) -> (i32, i32) {
    %c0_i32 = arith.constant 0 : i32
    %c0_i32_0 = arith.constant 0 : i32
    %c0_i32_1 = arith.constant 0 : i32
    return %c0_i32, %c0_i32_0 : i32, i32
  }
  func.func @transform_18(%arg0: i32) -> (i32, i32) {
    %c0_i32 = arith.constant 0 : i32
    %c0_i32_0 = arith.constant 0 : i32
    %c0_i32_1 = arith.constant 0 : i32
    return %c0_i32, %c0_i32_0 : i32, i32
  }
  func.func @transform_19(%arg0: i32) -> (i32, i32, i32) {
    %c0_i32 = arith.constant 0 : i32
    %c0_i32_0 = arith.constant 0 : i32
    %c0_i32_1 = arith.constant 0 : i32
    return %arg0, %c0_i32, %c0_i32_0 : i32, i32, i32
  }
  func.func @transform_20(%arg0: i32) -> (i32, i32, i32) {
    %c0_i32 = arith.constant 0 : i32
    %c0_i32_0 = arith.constant 0 : i32
    %c0_i32_1 = arith.constant 0 : i32
    return %arg0, %c0_i32, %c0_i32_0 : i32, i32, i32
  }
}

module attributes {stable_mosaic.version = 11 : i64} {
  func.func @_update_kernel(%arg0: i32, %arg1: memref<1x16x32xf32, #tpu.memory_space<vmem>>, %arg2: memref<1x16x32xf32, #tpu.memory_space<vmem>>, %arg3: memref<1x16x128xf32, #tpu.memory_space<vmem>>, %arg4: memref<8x128xf32, #tpu.memory_space<vmem>>, %arg5: memref<1x32xf32, #tpu.memory_space<vmem>>, %arg6: memref<1x32xf32, #tpu.memory_space<vmem>>, %arg7: memref<1x32xf32, #tpu.memory_space<vmem>>, %arg8: memref<1x32xf32, #tpu.memory_space<vmem>>, %arg9: memref<32x64xf32, #tpu.memory_space<vmem>>, %arg10: memref<1x64xf32, #tpu.memory_space<vmem>>, %arg11: memref<64x32xf32, #tpu.memory_space<vmem>>, %arg12: memref<1x32xf32, #tpu.memory_space<vmem>>, %arg13: memref<1x128xf32, #tpu.memory_space<vmem>>, %arg14: memref<1x128xf32, #tpu.memory_space<vmem>>, %arg15: memref<1x128xf32, #tpu.memory_space<vmem>>, %arg16: memref<1x128xf32, #tpu.memory_space<vmem>>, %arg17: memref<128x128xf32, #tpu.memory_space<vmem>>, %arg18: memref<128x256xf32, #tpu.memory_space<vmem>>, %arg19: memref<1x256xf32, #tpu.memory_space<vmem>>, %arg20: memref<256x128xf32, #tpu.memory_space<vmem>>, %arg21: memref<1x128xf32, #tpu.memory_space<vmem>>, %arg22: memref<1x16x32xf32, #tpu.memory_space<vmem>>, %arg23: memref<1x16x128xf32, #tpu.memory_space<vmem>>) attributes {dimension_semantics = [#tpu.dimension_semantics<parallel>], iteration_bounds = array<i64: 4>, scalar_prefetch = 0 : i64, scratch_operands = 0 : i64, tpu.core_type = #tpu.core_type<tc>, window_params = [{transform_indices = @transform_0, window_bounds = array<i64: 1, 16, 32>}, {transform_indices = @transform_1, window_bounds = array<i64: 1, 16, 32>}, {transform_indices = @transform_2, window_bounds = array<i64: 1, 16, 128>}, {pipeline_mode = #tpu.pipeline_mode<synchronous>, transform_indices = @transform_3, window_bounds = array<i64: 8, 128>}, {pipeline_mode = #tpu.pipeline_mode<synchronous>, transform_indices = @transform_4, window_bounds = array<i64: 1, 32>}, {pipeline_mode = #tpu.pipeline_mode<synchronous>, transform_indices = @transform_5, window_bounds = array<i64: 1, 32>}, {pipeline_mode = #tpu.pipeline_mode<synchronous>, transform_indices = @transform_6, window_bounds = array<i64: 1, 32>}, {pipeline_mode = #tpu.pipeline_mode<synchronous>, transform_indices = @transform_7, window_bounds = array<i64: 1, 32>}, {pipeline_mode = #tpu.pipeline_mode<synchronous>, transform_indices = @transform_8, window_bounds = array<i64: 32, 64>}, {pipeline_mode = #tpu.pipeline_mode<synchronous>, transform_indices = @transform_9, window_bounds = array<i64: 1, 64>}, {pipeline_mode = #tpu.pipeline_mode<synchronous>, transform_indices = @transform_10, window_bounds = array<i64: 64, 32>}, {pipeline_mode = #tpu.pipeline_mode<synchronous>, transform_indices = @transform_11, window_bounds = array<i64: 1, 32>}, {pipeline_mode = #tpu.pipeline_mode<synchronous>, transform_indices = @transform_12, window_bounds = array<i64: 1, 128>}, {pipeline_mode = #tpu.pipeline_mode<synchronous>, transform_indices = @transform_13, window_bounds = array<i64: 1, 128>}, {pipeline_mode = #tpu.pipeline_mode<synchronous>, transform_indices = @transform_14, window_bounds = array<i64: 1, 128>}, {pipeline_mode = #tpu.pipeline_mode<synchronous>, transform_indices = @transform_15, window_bounds = array<i64: 1, 128>}, {pipeline_mode = #tpu.pipeline_mode<synchronous>, transform_indices = @transform_16, window_bounds = array<i64: 128, 128>}, {pipeline_mode = #tpu.pipeline_mode<synchronous>, transform_indices = @transform_17, window_bounds = array<i64: 128, 256>}, {pipeline_mode = #tpu.pipeline_mode<synchronous>, transform_indices = @transform_18, window_bounds = array<i64: 1, 256>}, {pipeline_mode = #tpu.pipeline_mode<synchronous>, transform_indices = @transform_19, window_bounds = array<i64: 256, 128>}, {pipeline_mode = #tpu.pipeline_mode<synchronous>, transform_indices = @transform_20, window_bounds = array<i64: 1, 128>}, {transform_indices = @transform_21, window_bounds = array<i64: 1, 16, 32>}, {transform_indices = @transform_22, window_bounds = array<i64: 1, 16, 128>}]} {
    %c0 = arith.constant 0 : index
    %c0_0 = arith.constant 0 : index
    %c0_1 = arith.constant 0 : index
    %0 = vector.load %arg1[%c0, %c0_0, %c0_1] : memref<1x16x32xf32, #tpu.memory_space<vmem>>, vector<1x16x32xf32>
    %1 = vector.shape_cast %0 : vector<1x16x32xf32> to vector<16x32xf32>
    %c0_2 = arith.constant 0 : index
    %c0_3 = arith.constant 0 : index
    %c0_4 = arith.constant 0 : index
    %2 = vector.load %arg2[%c0_2, %c0_3, %c0_4] : memref<1x16x32xf32, #tpu.memory_space<vmem>>, vector<1x16x32xf32>
    %3 = vector.shape_cast %2 : vector<1x16x32xf32> to vector<16x32xf32>
    %4 = arith.addf %1, %3 : vector<16x32xf32>
    %c0_5 = arith.constant 0 : index
    %c0_6 = arith.constant 0 : index
    %5 = vector.load %arg5[%c0_5, %c0_6] : memref<1x32xf32, #tpu.memory_space<vmem>>, vector<1x32xf32>
    %c0_7 = arith.constant 0 : index
    %c0_8 = arith.constant 0 : index
    %6 = vector.load %arg6[%c0_7, %c0_8] : memref<1x32xf32, #tpu.memory_space<vmem>>, vector<1x32xf32>
    %cst = arith.constant dense<0.000000e+00> : vector<16xf32>
    %7 = vector.multi_reduction <add>, %4, %cst [1] : vector<16x32xf32> to vector<16xf32>
    %8 = vector.shape_cast %7 : vector<16xf32> to vector<16x1xf32>
    %cst_9 = arith.constant 3.200000e+01 : f32
    %9 = vector.broadcast %cst_9 : f32 to vector<16x1xf32>
    %10 = arith.divf %8, %9 : vector<16x1xf32>
    %11 = vector.broadcast %10 : vector<16x1xf32> to vector<16x32xf32>
    %12 = arith.subf %4, %11 : vector<16x32xf32>
    %13 = arith.mulf %12, %12 : vector<16x32xf32>
    %cst_10 = arith.constant dense<0.000000e+00> : vector<16xf32>
    %14 = vector.multi_reduction <add>, %13, %cst_10 [1] : vector<16x32xf32> to vector<16xf32>
    %15 = vector.shape_cast %14 : vector<16xf32> to vector<16x1xf32>
    %cst_11 = arith.constant 3.200000e+01 : f32
    %16 = vector.broadcast %cst_11 : f32 to vector<16x1xf32>
    %17 = arith.divf %15, %16 : vector<16x1xf32>
    %18 = vector.broadcast %10 : vector<16x1xf32> to vector<16x32xf32>
    %19 = arith.subf %4, %18 : vector<16x32xf32>
    %cst_12 = arith.constant 9.99999974E-6 : f32
    %20 = vector.broadcast %cst_12 : f32 to vector<16x1xf32>
    %21 = arith.addf %17, %20 : vector<16x1xf32>
    %22 = math.rsqrt %21 : vector<16x1xf32>
    %23 = vector.broadcast %22 : vector<16x1xf32> to vector<16x32xf32>
    %24 = arith.mulf %19, %23 : vector<16x32xf32>
    %25 = vector.broadcast %5 : vector<1x32xf32> to vector<16x32xf32>
    %26 = arith.mulf %24, %25 : vector<16x32xf32>
    %27 = vector.broadcast %6 : vector<1x32xf32> to vector<16x32xf32>
    %28 = arith.addf %26, %27 : vector<16x32xf32>
    %c0_13 = arith.constant 0 : index
    %c0_14 = arith.constant 0 : index
    %29 = vector.load %arg9[%c0_13, %c0_14] : memref<32x64xf32, #tpu.memory_space<vmem>>, vector<32x64xf32>
    %cst_15 = arith.constant dense<0.000000e+00> : vector<16x64xf32>
    %30 = tpu.matmul %28, %29, %cst_15 {dimension_numbers = #tpu.dot_dimension_numbers<[1], [0], [0], [1], [0, 0, 1, 1], [], []>} : vector<16x32xf32>, vector<32x64xf32>, vector<16x64xf32> -> vector<16x64xf32>
    %c0_16 = arith.constant 0 : index
    %c0_17 = arith.constant 0 : index
    %31 = vector.load %arg10[%c0_16, %c0_17] : memref<1x64xf32, #tpu.memory_space<vmem>>, vector<1x64xf32>
    %32 = vector.broadcast %31 : vector<1x64xf32> to vector<16x64xf32>
    %33 = arith.addf %30, %32 : vector<16x64xf32>
    %cst_18 = arith.constant 0.000000e+00 : f32
    %34 = vector.broadcast %cst_18 : f32 to vector<16x64xf32>
    %35 = arith.maximumf %33, %34 : vector<16x64xf32>
    %c0_19 = arith.constant 0 : index
    %c0_20 = arith.constant 0 : index
    %36 = vector.load %arg11[%c0_19, %c0_20] : memref<64x32xf32, #tpu.memory_space<vmem>>, vector<64x32xf32>
    %cst_21 = arith.constant dense<0.000000e+00> : vector<16x32xf32>
    %37 = tpu.matmul %35, %36, %cst_21 {dimension_numbers = #tpu.dot_dimension_numbers<[1], [0], [0], [1], [0, 0, 1, 1], [], []>} : vector<16x64xf32>, vector<64x32xf32>, vector<16x32xf32> -> vector<16x32xf32>
    %38 = arith.addf %28, %37 : vector<16x32xf32>
    %c0_22 = arith.constant 0 : index
    %c0_23 = arith.constant 0 : index
    %39 = vector.load %arg12[%c0_22, %c0_23] : memref<1x32xf32, #tpu.memory_space<vmem>>, vector<1x32xf32>
    %40 = vector.broadcast %39 : vector<1x32xf32> to vector<16x32xf32>
    %41 = arith.addf %38, %40 : vector<16x32xf32>
    %c0_24 = arith.constant 0 : index
    %c0_25 = arith.constant 0 : index
    %42 = vector.load %arg7[%c0_24, %c0_25] : memref<1x32xf32, #tpu.memory_space<vmem>>, vector<1x32xf32>
    %c0_26 = arith.constant 0 : index
    %c0_27 = arith.constant 0 : index
    %43 = vector.load %arg8[%c0_26, %c0_27] : memref<1x32xf32, #tpu.memory_space<vmem>>, vector<1x32xf32>
    %cst_28 = arith.constant dense<0.000000e+00> : vector<16xf32>
    %44 = vector.multi_reduction <add>, %41, %cst_28 [1] : vector<16x32xf32> to vector<16xf32>
    %45 = vector.shape_cast %44 : vector<16xf32> to vector<16x1xf32>
    %cst_29 = arith.constant 3.200000e+01 : f32
    %46 = vector.broadcast %cst_29 : f32 to vector<16x1xf32>
    %47 = arith.divf %45, %46 : vector<16x1xf32>
    %48 = vector.broadcast %47 : vector<16x1xf32> to vector<16x32xf32>
    %49 = arith.subf %41, %48 : vector<16x32xf32>
    %50 = arith.mulf %49, %49 : vector<16x32xf32>
    %cst_30 = arith.constant dense<0.000000e+00> : vector<16xf32>
    %51 = vector.multi_reduction <add>, %50, %cst_30 [1] : vector<16x32xf32> to vector<16xf32>
    %52 = vector.shape_cast %51 : vector<16xf32> to vector<16x1xf32>
    %cst_31 = arith.constant 3.200000e+01 : f32
    %53 = vector.broadcast %cst_31 : f32 to vector<16x1xf32>
    %54 = arith.divf %52, %53 : vector<16x1xf32>
    %55 = vector.broadcast %47 : vector<16x1xf32> to vector<16x32xf32>
    %56 = arith.subf %41, %55 : vector<16x32xf32>
    %cst_32 = arith.constant 9.99999974E-6 : f32
    %57 = vector.broadcast %cst_32 : f32 to vector<16x1xf32>
    %58 = arith.addf %54, %57 : vector<16x1xf32>
    %59 = math.rsqrt %58 : vector<16x1xf32>
    %60 = vector.broadcast %59 : vector<16x1xf32> to vector<16x32xf32>
    %61 = arith.mulf %56, %60 : vector<16x32xf32>
    %62 = vector.broadcast %42 : vector<1x32xf32> to vector<16x32xf32>
    %63 = arith.mulf %61, %62 : vector<16x32xf32>
    %64 = vector.broadcast %43 : vector<1x32xf32> to vector<16x32xf32>
    %65 = arith.addf %63, %64 : vector<16x32xf32>
    %c0_33 = arith.constant 0 : index
    %c0_34 = arith.constant 0 : index
    %c0_35 = arith.constant 0 : index
    %66 = vector.load %arg22[%c0_33, %c0_34, %c0_35] : memref<1x16x32xf32, #tpu.memory_space<vmem>>, vector<1x16x32xf32>
    %67 = vector.shape_cast %66 : vector<1x16x32xf32> to vector<16x32xf32>
    %68 = vector.shape_cast %65 : vector<16x32xf32> to vector<1x16x32xf32>
    tpu.vector_store %arg22[%c0_33, %c0_34, %c0_35], %68 {strides = array<i32>} : memref<1x16x32xf32, #tpu.memory_space<vmem>>, vector<1x16x32xf32>,
    %c0_36 = arith.constant 0 : index
    %c0_37 = arith.constant 0 : index
    %69 = vector.load %arg17[%c0_36, %c0_37] : memref<128x128xf32, #tpu.memory_space<vmem>>, vector<128x128xf32>
    %c0_38 = arith.constant 0 : index
    %c0_39 = arith.constant 0 : index
    %c0_40 = arith.constant 0 : index
    %70 = vector.load %arg3[%c0_38, %c0_39, %c0_40] : memref<1x16x128xf32, #tpu.memory_space<vmem>>, vector<1x16x128xf32>
    %71 = vector.shape_cast %70 : vector<1x16x128xf32> to vector<16x128xf32>
    %72 = vector.shape_cast %71 : vector<16x128xf32> to vector<2x8x128xf32>
    %c0_41 = arith.constant 0 : index
    %c0_42 = arith.constant 0 : index
    %73 = vector.load %arg4[%c0_41, %c0_42] : memref<8x128xf32, #tpu.memory_space<vmem>>, vector<8x128xf32>
    %74 = vector.shape_cast %73 : vector<8x128xf32> to vector<1x8x128xf32>
    %75 = vector.broadcast %74 : vector<1x8x128xf32> to vector<2x8x128xf32>
    %76 = arith.addf %72, %75 : vector<2x8x128xf32>
    %77 = vector.shape_cast %76 : vector<2x8x128xf32> to vector<16x128xf32>
    %c0_43 = arith.constant 0 : index
    %c0_44 = arith.constant 0 : index
    %78 = vector.load %arg13[%c0_43, %c0_44] : memref<1x128xf32, #tpu.memory_space<vmem>>, vector<1x128xf32>
    %c0_45 = arith.constant 0 : index
    %c0_46 = arith.constant 0 : index
    %79 = vector.load %arg14[%c0_45, %c0_46] : memref<1x128xf32, #tpu.memory_space<vmem>>, vector<1x128xf32>
    %cst_47 = arith.constant dense<0.000000e+00> : vector<16x128xf32>
    %80 = tpu.matmul %77, %69, %cst_47 {dimension_numbers = #tpu.dot_dimension_numbers<[1], [0], [0], [1], [0, 0, 1, 1], [], []>} : vector<16x128xf32>, vector<128x128xf32>, vector<16x128xf32> -> vector<16x128xf32>
    %81 = arith.subf %77, %80 : vector<16x128xf32>
    %82 = arith.mulf %81, %81 : vector<16x128xf32>
    %cst_48 = arith.constant dense<0.000000e+00> : vector<16x128xf32>
    %83 = tpu.matmul %82, %69, %cst_48 {dimension_numbers = #tpu.dot_dimension_numbers<[1], [0], [0], [1], [0, 0, 1, 1], [], []>} : vector<16x128xf32>, vector<128x128xf32>, vector<16x128xf32> -> vector<16x128xf32>
    %cst_49 = arith.constant 9.99999974E-6 : f32
    %84 = vector.broadcast %cst_49 : f32 to vector<16x128xf32>
    %85 = arith.addf %83, %84 : vector<16x128xf32>
    %86 = math.rsqrt %85 : vector<16x128xf32>
    %87 = arith.mulf %81, %86 : vector<16x128xf32>
    %88 = vector.broadcast %78 : vector<1x128xf32> to vector<16x128xf32>
    %89 = arith.mulf %87, %88 : vector<16x128xf32>
    %90 = vector.broadcast %79 : vector<1x128xf32> to vector<16x128xf32>
    %91 = arith.addf %89, %90 : vector<16x128xf32>
    %c0_50 = arith.constant 0 : index
    %c0_51 = arith.constant 0 : index
    %92 = vector.load %arg18[%c0_50, %c0_51] : memref<128x256xf32, #tpu.memory_space<vmem>>, vector<128x256xf32>
    %cst_52 = arith.constant dense<0.000000e+00> : vector<16x256xf32>
    %93 = tpu.matmul %91, %92, %cst_52 {dimension_numbers = #tpu.dot_dimension_numbers<[1], [0], [0], [1], [0, 0, 1, 1], [], []>} : vector<16x128xf32>, vector<128x256xf32>, vector<16x256xf32> -> vector<16x256xf32>
    %c0_53 = arith.constant 0 : index
    %c0_54 = arith.constant 0 : index
    %94 = vector.load %arg19[%c0_53, %c0_54] : memref<1x256xf32, #tpu.memory_space<vmem>>, vector<1x256xf32>
    %95 = vector.broadcast %94 : vector<1x256xf32> to vector<16x256xf32>
    %96 = arith.addf %93, %95 : vector<16x256xf32>
    %cst_55 = arith.constant 0.000000e+00 : f32
    %97 = vector.broadcast %cst_55 : f32 to vector<16x256xf32>
    %98 = arith.maximumf %96, %97 : vector<16x256xf32>
    %c0_56 = arith.constant 0 : index
    %c0_57 = arith.constant 0 : index
    %99 = vector.load %arg20[%c0_56, %c0_57] : memref<256x128xf32, #tpu.memory_space<vmem>>, vector<256x128xf32>
    %cst_58 = arith.constant dense<0.000000e+00> : vector<16x128xf32>
    %100 = tpu.matmul %98, %99, %cst_58 {dimension_numbers = #tpu.dot_dimension_numbers<[1], [0], [0], [1], [0, 0, 1, 1], [], []>} : vector<16x256xf32>, vector<256x128xf32>, vector<16x128xf32> -> vector<16x128xf32>
    %c0_59 = arith.constant 0 : index
    %c0_60 = arith.constant 0 : index
    %101 = vector.load %arg21[%c0_59, %c0_60] : memref<1x128xf32, #tpu.memory_space<vmem>>, vector<1x128xf32>
    %102 = vector.broadcast %101 : vector<1x128xf32> to vector<16x128xf32>
    %103 = arith.addf %100, %102 : vector<16x128xf32>
    %104 = arith.addf %91, %103 : vector<16x128xf32>
    %c0_61 = arith.constant 0 : index
    %c0_62 = arith.constant 0 : index
    %105 = vector.load %arg15[%c0_61, %c0_62] : memref<1x128xf32, #tpu.memory_space<vmem>>, vector<1x128xf32>
    %c0_63 = arith.constant 0 : index
    %c0_64 = arith.constant 0 : index
    %106 = vector.load %arg16[%c0_63, %c0_64] : memref<1x128xf32, #tpu.memory_space<vmem>>, vector<1x128xf32>
    %cst_65 = arith.constant dense<0.000000e+00> : vector<16x128xf32>
    %107 = tpu.matmul %104, %69, %cst_65 {dimension_numbers = #tpu.dot_dimension_numbers<[1], [0], [0], [1], [0, 0, 1, 1], [], []>} : vector<16x128xf32>, vector<128x128xf32>, vector<16x128xf32> -> vector<16x128xf32>
    %108 = arith.subf %104, %107 : vector<16x128xf32>
    %109 = arith.mulf %108, %108 : vector<16x128xf32>
    %cst_66 = arith.constant dense<0.000000e+00> : vector<16x128xf32>
    %110 = tpu.matmul %109, %69, %cst_66 {dimension_numbers = #tpu.dot_dimension_numbers<[1], [0], [0], [1], [0, 0, 1, 1], [], []>} : vector<16x128xf32>, vector<128x128xf32>, vector<16x128xf32> -> vector<16x128xf32>
    %cst_67 = arith.constant 9.99999974E-6 : f32
    %111 = vector.broadcast %cst_67 : f32 to vector<16x128xf32>
    %112 = arith.addf %110, %111 : vector<16x128xf32>
    %113 = math.rsqrt %112 : vector<16x128xf32>
    %114 = arith.mulf %108, %113 : vector<16x128xf32>
    %115 = vector.broadcast %105 : vector<1x128xf32> to vector<16x128xf32>
    %116 = arith.mulf %114, %115 : vector<16x128xf32>
    %117 = vector.broadcast %106 : vector<1x128xf32> to vector<16x128xf32>
    %118 = arith.addf %116, %117 : vector<16x128xf32>
    %c0_68 = arith.constant 0 : index
    %c0_69 = arith.constant 0 : index
    %c0_70 = arith.constant 0 : index
    %119 = vector.load %arg23[%c0_68, %c0_69, %c0_70] : memref<1x16x128xf32, #tpu.memory_space<vmem>>, vector<1x16x128xf32>
    %120 = vector.shape_cast %119 : vector<1x16x128xf32> to vector<16x128xf32>
    %121 = vector.shape_cast %118 : vector<16x128xf32> to vector<1x16x128xf32>
    tpu.vector_store %arg23[%c0_68, %c0_69, %c0_70], %121 {strides = array<i32>} : memref<1x16x128xf32, #tpu.memory_space<vmem>>, vector<1x16x128xf32>,
    return
  }
  func.func @transform_0(%arg0: i32) -> (i32, i32, i32) {
    %c0_i32 = arith.constant 0 : i32
    %c0_i32_0 = arith.constant 0 : i32
    %c0_i32_1 = arith.constant 0 : i32
    return %arg0, %c0_i32, %c0_i32_0 : i32, i32, i32
  }
  func.func @transform_1(%arg0: i32) -> (i32, i32, i32) {
    %c0_i32 = arith.constant 0 : i32
    %c0_i32_0 = arith.constant 0 : i32
    %c0_i32_1 = arith.constant 0 : i32
    return %arg0, %c0_i32, %c0_i32_0 : i32, i32, i32
  }
  func.func @transform_2(%arg0: i32) -> (i32, i32, i32) {
    %c0_i32 = arith.constant 0 : i32
    %c0_i32_0 = arith.constant 0 : i32
    %c0_i32_1 = arith.constant 0 : i32
    return %arg0, %c0_i32, %c0_i32_0 : i32, i32, i32
  }
  func.func @transform_3(%arg0: i32) -> (i32, i32) {
    %c0_i32 = arith.constant 0 : i32
    %c0_i32_0 = arith.constant 0 : i32
    %c0_i32_1 = arith.constant 0 : i32
    return %c0_i32, %c0_i32_0 : i32, i32
  }
  func.func @transform_4(%arg0: i32) -> (i32, i32) {
    %c0_i32 = arith.constant 0 : i32
    %c0_i32_0 = arith.constant 0 : i32
    %c0_i32_1 = arith.constant 0 : i32
    return %c0_i32, %c0_i32_0 : i32, i32
  }
  func.func @transform_5(%arg0: i32) -> (i32, i32) {
    %c0_i32 = arith.constant 0 : i32
    %c0_i32_0 = arith.constant 0 : i32
    %c0_i32_1 = arith.constant 0 : i32
    return %c0_i32, %c0_i32_0 : i32, i32
  }
  func.func @transform_6(%arg0: i32) -> (i32, i32) {
    %c0_i32 = arith.constant 0 : i32
    %c0_i32_0 = arith.constant 0 : i32
    %c0_i32_1 = arith.constant 0 : i32
    return %c0_i32, %c0_i32_0 : i32, i32
  }
  func.func @transform_7(%arg0: i32) -> (i32, i32) {
    %c0_i32 = arith.constant 0 : i32
    %c0_i32_0 = arith.constant 0 : i32
    %c0_i32_1 = arith.constant 0 : i32
    return %c0_i32, %c0_i32_0 : i32, i32
  }
  func.func @transform_8(%arg0: i32) -> (i32, i32) {
    %c0_i32 = arith.constant 0 : i32
    %c0_i32_0 = arith.constant 0 : i32
    %c0_i32_1 = arith.constant 0 : i32
    return %c0_i32, %c0_i32_0 : i32, i32
  }
  func.func @transform_9(%arg0: i32) -> (i32, i32) {
    %c0_i32 = arith.constant 0 : i32
    %c0_i32_0 = arith.constant 0 : i32
    %c0_i32_1 = arith.constant 0 : i32
    return %c0_i32, %c0_i32_0 : i32, i32
  }
  func.func @transform_10(%arg0: i32) -> (i32, i32) {
    %c0_i32 = arith.constant 0 : i32
    %c0_i32_0 = arith.constant 0 : i32
    %c0_i32_1 = arith.constant 0 : i32
    return %c0_i32, %c0_i32_0 : i32, i32
  }
  func.func @transform_11(%arg0: i32) -> (i32, i32) {
    %c0_i32 = arith.constant 0 : i32
    %c0_i32_0 = arith.constant 0 : i32
    %c0_i32_1 = arith.constant 0 : i32
    return %c0_i32, %c0_i32_0 : i32, i32
  }
  func.func @transform_12(%arg0: i32) -> (i32, i32) {
    %c0_i32 = arith.constant 0 : i32
    %c0_i32_0 = arith.constant 0 : i32
    %c0_i32_1 = arith.constant 0 : i32
    return %c0_i32, %c0_i32_0 : i32, i32
  }
  func.func @transform_13(%arg0: i32) -> (i32, i32) {
    %c0_i32 = arith.constant 0 : i32
    %c0_i32_0 = arith.constant 0 : i32
    %c0_i32_1 = arith.constant 0 : i32
    return %c0_i32, %c0_i32_0 : i32, i32
  }
  func.func @transform_14(%arg0: i32) -> (i32, i32) {
    %c0_i32 = arith.constant 0 : i32
    %c0_i32_0 = arith.constant 0 : i32
    %c0_i32_1 = arith.constant 0 : i32
    return %c0_i32, %c0_i32_0 : i32, i32
  }
  func.func @transform_15(%arg0: i32) -> (i32, i32) {
    %c0_i32 = arith.constant 0 : i32
    %c0_i32_0 = arith.constant 0 : i32
    %c0_i32_1 = arith.constant 0 : i32
    return %c0_i32, %c0_i32_0 : i32, i32
  }
  func.func @transform_16(%arg0: i32) -> (i32, i32) {
    %c0_i32 = arith.constant 0 : i32
    %c0_i32_0 = arith.constant 0 : i32
    %c0_i32_1 = arith.constant 0 : i32
    return %c0_i32, %c0_i32_0 : i32, i32
  }
  func.func @transform_17(%arg0: i32) -> (i32, i32) {
    %c0_i32 = arith.constant 0 : i32
    %c0_i32_0 = arith.constant 0 : i32
    %c0_i32_1 = arith.constant 0 : i32
    return %c0_i32, %c0_i32_0 : i32, i32
  }
  func.func @transform_18(%arg0: i32) -> (i32, i32) {
    %c0_i32 = arith.constant 0 : i32
    %c0_i32_0 = arith.constant 0 : i32
    %c0_i32_1 = arith.constant 0 : i32
    return %c0_i32, %c0_i32_0 : i32, i32
  }
  func.func @transform_19(%arg0: i32) -> (i32, i32) {
    %c0_i32 = arith.constant 0 : i32
    %c0_i32_0 = arith.constant 0 : i32
    %c0_i32_1 = arith.constant 0 : i32
    return %c0_i32, %c0_i32_0 : i32, i32
  }
  func.func @transform_20(%arg0: i32) -> (i32, i32) {
    %c0_i32 = arith.constant 0 : i32
    %c0_i32_0 = arith.constant 0 : i32
    %c0_i32_1 = arith.constant 0 : i32
    return %c0_i32, %c0_i32_0 : i32, i32
  }
  func.func @transform_21(%arg0: i32) -> (i32, i32, i32) {
    %c0_i32 = arith.constant 0 : i32
    %c0_i32_0 = arith.constant 0 : i32
    %c0_i32_1 = arith.constant 0 : i32
    return %arg0, %c0_i32, %c0_i32_0 : i32, i32, i32
  }
  func.func @transform_22(%arg0: i32) -> (i32, i32, i32) {
    %c0_i32 = arith.constant 0 : i32
    %c0_i32_0 = arith.constant 0 : i32
    %c0_i32_1 = arith.constant 0 : i32
    return %arg0, %c0_i32, %c0_i32_0 : i32, i32, i32
  }
}

</mosaic_0001>

<llo_original>
// kernel: tile.74
$region0: #{tile.74}
  %s0 = inlined_call_operand.vmem [shape: f32[32,8,32], index: 0, kind: input, shape index: {}]
  %s1 = inlined_call_operand.hbm [shape: f32[32,256], index: 1, kind: output, shape index: {}]
  $region1: #{tile.74} parent=0
    #allocation0 [shape = 'u8[32768]{0}', space=vmem, size = 0x8000, scoped, tag = 'operand span for operand 1']
    #allocation1 [shape = 's32[1]{0}', space=sflag, size = 0x4, scoped, tag = 'scoped memory for tile.74']
    %2 = vsyncpa [#allocation1], 0
    %v3 = vld [vmem:[%s0] ss:$4 sm:$0xff]
    %vm4 = vcmask 261120
    %5 = vst.msk [vmem:[#allocation0] ss:$8 sm:$0x3] %vm4, %v3
    %s6 = scalar_lea.vmem [#allocation0], 4294967281
    %7 = vst.msk [vmem:[%s6] ss:$8 sm:$0xc] %vm4, %v3
    %s8 = scalar_lea.vmem [#allocation0], 4294967266
    %9 = vst.msk [vmem:[%s8] ss:$8 sm:$0x30] %vm4, %v3
    %s10 = scalar_lea.vmem [#allocation0], 4294967251
    %11 = vst.msk [vmem:[%s10] ss:$8 sm:$0xc0] %vm4, %v3
    %s12 = scalar_lea.vmem %s0, 32
    %v13 = vld [vmem:[%s12] ss:$4 sm:$0xff]
    %vm14 = vcmask 261120
    %s15 = scalar_lea.vmem [#allocation0], 4
    %16 = vst.msk [vmem:[%s15] ss:$8 sm:$0x3] %vm14, %v13
    %s17 = scalar_lea.vmem [#allocation0], 4294967285
    %18 = vst.msk [vmem:[%s17] ss:$8 sm:$0xc] %vm14, %v13
    %s19 = scalar_lea.vmem [#allocation0], 4294967270
    %20 = vst.msk [vmem:[%s19] ss:$8 sm:$0x30] %vm14, %v13
    %s21 = scalar_lea.vmem [#allocation0], 4294967255
    %22 = vst.msk [vmem:[%s21] ss:$8 sm:$0xc0] %vm14, %v13
    %s23 = scalar_lea.vmem %s0, 64
    %v24 = vld [vmem:[%s23] ss:$4 sm:$0xff]
    %vm25 = vcmask 261120
    %s26 = scalar_lea.vmem [#allocation0], 16
    %27 = vst.msk [vmem:[%s26] ss:$8 sm:$0x3] %vm25, %v24
    %s28 = scalar_lea.vmem [#allocation0], 1
    %29 = vst.msk [vmem:[%s28] ss:$8 sm:$0xc] %vm25, %v24
    %s30 = scalar_lea.vmem [#allocation0], 4294967282
    %31 = vst.msk [vmem:[%s30] ss:$8 sm:$0x30] %vm25, %v24
    %s32 = scalar_lea.vmem [#allocation0], 4294967267
    %33 = vst.msk [vmem:[%s32] ss:$8 sm:$0xc0] %vm25, %v24
    %s34 = scalar_lea.vmem %s0, 96
    %v35 = vld [vmem:[%s34] ss:$4 sm:$0xff]
    %vm36 = vcmask 261120
    %s37 = scalar_lea.vmem [#allocation0], 20
    %38 = vst.msk [vmem:[%s37] ss:$8 sm:$0x3] %vm36, %v35
    %s39 = scalar_lea.vmem [#allocation0], 5
    %40 = vst.msk [vmem:[%s39] ss:$8 sm:$0xc] %vm36, %v35
    %s41 = scalar_lea.vmem [#allocation0], 4294967286
    %42 = vst.msk [vmem:[%s41] ss:$8 sm:$0x30] %vm36, %v35
    %s43 = scalar_lea.vmem [#allocation0], 4294967271
    %44 = vst.msk [vmem:[%s43] ss:$8 sm:$0xc0] %vm36, %v35
    %s45 = scalar_lea.vmem %s0, 128
    %v46 = vld [vmem:[%s45] ss:$4 sm:$0xff]
    %vm47 = vcmask 261120
    %s48 = scalar_lea.vmem [#allocation0], 32
    %49 = vst.msk [vmem:[%s48] ss:$8 sm:$0x3] %vm47, %v46
    %s50 = scalar_lea.vmem [#allocation0], 17
    %51 = vst.msk [vmem:[%s50] ss:$8 sm:$0xc] %vm47, %v46
    %s52 = scalar_lea.vmem [#allocation0], 2
    %53 = vst.msk [vmem:[%s52] ss:$8 sm:$0x30] %vm47, %v46
    %s54 = scalar_lea.vmem [#allocation0], 4294967283
    %55 = vst.msk [vmem:[%s54] ss:$8 sm:$0xc0] %vm47, %v46
    %s56 = scalar_lea.vmem %s0, 160
    %v57 = vld [vmem:[%s56] ss:$4 sm:$0xff]
    %vm58 = vcmask 261120
    %s59 = scalar_lea.vmem [#allocation0], 36
    %60 = vst.msk [vmem:[%s59] ss:$8 sm:$0x3] %vm58, %v57
    %s61 = scalar_lea.vmem [#allocation0], 21
    %62 = vst.msk [vmem:[%s61] ss:$8 sm:$0xc] %vm58, %v57
    %s63 = scalar_lea.vmem [#allocation0], 6
    %64 = vst.msk [vmem:[%s63] ss:$8 sm:$0x30] %vm58, %v57
    %s65 = scalar_lea.vmem [#allocation0], 4294967287
    %66 = vst.msk [vmem:[%s65] ss:$8 sm:$0xc0] %vm58, %v57
    %s67 = scalar_lea.vmem %s0, 192
    %v68 = vld [vmem:[%s67] ss:$4 sm:$0xff]
    %vm69 = vcmask 261120
    %s70 = scalar_lea.vmem [#allocation0], 48
    %71 = vst.msk [vmem:[%s70] ss:$8 sm:$0x3] %vm69, %v68
    %s72 = scalar_lea.vmem [#allocation0], 33
    %73 = vst.msk [vmem:[%s72] ss:$8 sm:$0xc] %vm69, %v68
    %s74 = scalar_lea.vmem [#allocation0], 18
    %75 = vst.msk [vmem:[%s74] ss:$8 sm:$0x30] %vm69, %v68
    %s76 = scalar_lea.vmem [#allocation0], 3
    %77 = vst.msk [vmem:[%s76] ss:$8 sm:$0xc0] %vm69, %v68
    %s78 = scalar_lea.vmem %s0, 224
    %v79 = vld [vmem:[%s78] ss:$4 sm:$0xff]
    %vm80 = vcmask 261120
    %s81 = scalar_lea.vmem [#allocation0], 52
    %82 = vst.msk [vmem:[%s81] ss:$8 sm:$0x3] %vm80, %v79
    %s83 = scalar_lea.vmem [#allocation0], 37
    %84 = vst.msk [vmem:[%s83] ss:$8 sm:$0xc] %vm80, %v79
    %s85 = scalar_lea.vmem [#allocation0], 22
    %86 = vst.msk [vmem:[%s85] ss:$8 sm:$0x30] %vm80, %v79
    %s87 = scalar_lea.vmem [#allocation0], 7
    %88 = vst.msk [vmem:[%s87] ss:$8 sm:$0xc0] %vm80, %v79
    %s89 = scalar_lea.vmem %s0, 3
    %v90 = vld [vmem:[%s89] ss:$8 sm:$0xf]
    %s91 = scalar_lea.vmem %s0, 3
    %v92 = vld [vmem:[%s91] ss:$8 sm:$0xf0]
    %vm93 = vcmask 1047556
    %v94 = vsel %vm93, %v92, %v90
    %95 = vrot.lane.b32.xlu0 %v94, 96
    %v96 = vpop.permute.xlu0 %95
    %vm97 = vcmask 1048320
    %98 = vst.msk [vmem:[#allocation0] sm:$0xff] %vm97, %v96
    %s99 = scalar_lea.vmem %s0, 131
    %v100 = vld [vmem:[%s99] ss:$8 sm:$0xf]
    %s101 = scalar_lea.vmem %s0, 131
    %v102 = vld [vmem:[%s101] ss:$8 sm:$0xf0]
    %vm103 = vcmask 1047556
    %v104 = vsel %vm103, %v102, %v100
    %105 = vrot.lane.b32.xlu0 %v104, 96
    %v106 = vpop.permute.xlu0 %105
    %vm107 = vcmask 1048320
    %s108 = scalar_lea.vmem [#allocation0], 32
    %109 = vst.msk [vmem:[%s108] sm:$0xff] %vm107, %v106
    %s110 = scalar_lea.vmem %s0, 7
    %v111 = vld [vmem:[%s110] ss:$8 sm:$0xf]
    %s112 = scalar_lea.vmem %s0, 7
    %v113 = vld [vmem:[%s112] ss:$8 sm:$0xf0]
    %vm114 = vcmask 1047556
    %v115 = vsel %vm114, %v113, %v111
    %116 = vrot.lane.b32.xlu0 %v115, 96
    %v117 = vpop.permute.xlu0 %116
    %vm118 = vcmask 1048320
    %s119 = scalar_lea.vmem [#allocation0], 8
    %120 = vst.msk [vmem:[%s119] sm:$0xff] %vm118, %v117
    %s121 = scalar_lea.vmem %s0, 135
    %v122 = vld [vmem:[%s121] ss:$8 sm:$0xf]
    %s123 = scalar_lea.vmem %s0, 135
    %v124 = vld [vmem:[%s123] ss:$8 sm:$0xf0]
    %vm125 = vcmask 1047556
    %v126 = vsel %vm125, %v124, %v122
    %127 = vrot.lane.b32.xlu0 %v126, 96
    %v128 = vpop.permute.xlu0 %127
    %vm129 = vcmask 1048320
    %s130 = scalar_lea.vmem [#allocation0], 40
    %131 = vst.msk [vmem:[%s130] sm:$0xff] %vm129, %v128
    %s132 = scalar_lea.vmem %s0, 67
    %v133 = vld [vmem:[%s132] ss:$8 sm:$0xf]
    %s134 = scalar_lea.vmem %s0, 67
    %v135 = vld [vmem:[%s134] ss:$8 sm:$0xf0]
    %vm136 = vcmask 1047556
    %v137 = vsel %vm136, %v135, %v133
    %138 = vrot.lane.b32.xlu0 %v137, 96
    %v139 = vpop.permute.xlu0 %138
    %vm140 = vcmask 1048320
    %s141 = scalar_lea.vmem [#allocation0], 16
    %142 = vst.msk [vmem:[%s141] sm:$0xff] %vm140, %v139
    %s143 = scalar_lea.vmem %s0, 195
    %v144 = vld [vmem:[%s143] ss:$8 sm:$0xf]
    %s145 = scalar_lea.vmem %s0, 195
    %v146 = vld [vmem:[%s145] ss:$8 sm:$0xf0]
    %vm147 = vcmask 1047556
    %v148 = vsel %vm147, %v146, %v144
    %149 = vrot.lane.b32.xlu0 %v148, 96
    %v150 = vpop.permute.xlu0 %149
    %vm151 = vcmask 1048320
    %s152 = scalar_lea.vmem [#allocation0], 48
    %153 = vst.msk [vmem:[%s152] sm:$0xff] %vm151, %v150
    %s154 = scalar_lea.vmem %s0, 71
    %v155 = vld [vmem:[%s154] ss:$8 sm:$0xf]
    %s156 = scalar_lea.vmem %s0, 71
    %v157 = vld [vmem:[%s156] ss:$8 sm:$0xf0]
    %vm158 = vcmask 1047556
    %v159 = vsel %vm158, %v157, %v155
    %160 = vrot.lane.b32.xlu0 %v159, 96
    %v161 = vpop.permute.xlu0 %160
    %vm162 = vcmask 1048320
    %s163 = scalar_lea.vmem [#allocation0], 24
    %164 = vst.msk [vmem:[%s163] sm:$0xff] %vm162, %v161
    %s165 = scalar_lea.vmem %s0, 199
    %v166 = vld [vmem:[%s165] ss:$8 sm:$0xf]
    %s167 = scalar_lea.vmem %s0, 199
    %v168 = vld [vmem:[%s167] ss:$8 sm:$0xf0]
    %vm169 = vcmask 1047556
    %v170 = vsel %vm169, %v168, %v166
    %171 = vrot.lane.b32.xlu0 %v170, 96
    %v172 = vpop.permute.xlu0 %171
    %vm173 = vcmask 1048320
    %s174 = scalar_lea.vmem [#allocation0], 56
    %175 = vst.msk [vmem:[%s174] sm:$0xff] %vm173, %v172
    %s176 = scalar_lea.vmem %s0, 2
    %v177 = vld [vmem:[%s176] ss:$8 sm:$0xf]
    %s178 = scalar_lea.vmem %s0, 2
    %v179 = vld [vmem:[%s178] ss:$8 sm:$0xf0]
    %vm180 = vcmask 1047556
    %v181 = vsel %vm180, %v179, %v177
    %182 = vrot.lane.b32.xlu0 %v181, 64
    %v183 = vpop.permute.xlu0 %182
    %vm184 = vcmask 785920
    %185 = vst.msk [vmem:[#allocation0] sm:$0xff] %vm184, %v183
    %s186 = scalar_lea.vmem %s0, 130
    %v187 = vld [vmem:[%s186] ss:$8 sm:$0xf]
    %s188 = scalar_lea.vmem %s0, 130
    %v189 = vld [vmem:[%s188] ss:$8 sm:$0xf0]
    %vm190 = vcmask 1047556
    %v191 = vsel %vm190, %v189, %v187
    %192 = vrot.lane.b32.xlu0 %v191, 64
    %v193 = vpop.permute.xlu0 %192
    %vm194 = vcmask 785920
    %s195 = scalar_lea.vmem [#allocation0], 32
    %196 = vst.msk [vmem:[%s195] sm:$0xff] %vm194, %v193
    %s197 = scalar_lea.vmem %s0, 6
    %v198 = vld [vmem:[%s197] ss:$8 sm:$0xf]
    %s199 = scalar_lea.vmem %s0, 6
    %v200 = vld [vmem:[%s199] ss:$8 sm:$0xf0]
    %vm201 = vcmask 1047556
    %v202 = vsel %vm201, %v200, %v198
    %203 = vrot.lane.b32.xlu0 %v202, 64
    %v204 = vpop.permute.xlu0 %203
    %vm205 = vcmask 785920
    %s206 = scalar_lea.vmem [#allocation0], 8
    %207 = vst.msk [vmem:[%s206] sm:$0xff] %vm205, %v204
    %s208 = scalar_lea.vmem %s0, 134
    %v209 = vld [vmem:[%s208] ss:$8 sm:$0xf]
    %s210 = scalar_lea.vmem %s0, 134
    %v211 = vld [vmem:[%s210] ss:$8 sm:$0xf0]
    %vm212 = vcmask 1047556
    %v213 = vsel %vm212, %v211, %v209
    %214 = vrot.lane.b32.xlu0 %v213, 64
    %v215 = vpop.permute.xlu0 %214
    %vm216 = vcmask 785920
    %s217 = scalar_lea.vmem [#allocation0], 40
    %218 = vst.msk [vmem:[%s217] sm:$0xff] %vm216, %v215
    %s219 = scalar_lea.vmem %s0, 66
    %v220 = vld [vmem:[%s219] ss:$8 sm:$0xf]
    %s221 = scalar_lea.vmem %s0, 66
    %v222 = vld [vmem:[%s221] ss:$8 sm:$0xf0]
    %vm223 = vcmask 1047556
    %v224 = vsel %vm223, %v222, %v220
    %225 = vrot.lane.b32.xlu0 %v224, 64
    %v226 = vpop.permute.xlu0 %225
    %vm227 = vcmask 785920
    %s228 = scalar_lea.vmem [#allocation0], 16
    %229 = vst.msk [vmem:[%s228] sm:$0xff] %vm227, %v226
    %s230 = scalar_lea.vmem %s0, 194
    %v231 = vld [vmem:[%s230] ss:$8 sm:$0xf]
    %s232 = scalar_lea.vmem %s0, 194
    %v233 = vld [vmem:[%s232] ss:$8 sm:$0xf0]
    %vm234 = vcmask 1047556
    %v235 = vsel %vm234, %v233, %v231
    %236 = vrot.lane.b32.xlu0 %v235, 64
    %v237 = vpop.permute.xlu0 %236
    %vm238 = vcmask 785920
    %s239 = scalar_lea.vmem [#allocation0], 48
    %240 = vst.msk [vmem:[%s239] sm:$0xff] %vm238, %v237
    %s241 = scalar_lea.vmem %s0, 70
    %v242 = vld [vmem:[%s241] ss:$8 sm:$0xf]
    %s243 = scalar_lea.vmem %s0, 70
    %v244 = vld [vmem:[%s243] ss:$8 sm:$0xf0]
    %vm245 = vcmask 1047556
    %v246 = vsel %vm245, %v244, %v242
    %247 = vrot.lane.b32.xlu0 %v246, 64
    %v248 = vpop.permute.xlu0 %247
    %vm249 = vcmask 785920
    %s250 = scalar_lea.vmem [#allocation0], 24
    %251 = vst.msk [vmem:[%s250] sm:$0xff] %vm249, %v248
    %s252 = scalar_lea.vmem %s0, 198
    %v253 = vld [vmem:[%s252] ss:$8 sm:$0xf]
    %s254 = scalar_lea.vmem %s0, 198
    %v255 = vld [vmem:[%s254] ss:$8 sm:$0xf0]
    %vm256 = vcmask 1047556
    %v257 = vsel %vm256, %v255, %v253
    %258 = vrot.lane.b32.xlu0 %v257, 64
    %v259 = vpop.permute.xlu0 %258
    %vm260 = vcmask 785920
    %s261 = scalar_lea.vmem [#allocation0], 56
    %262 = vst.msk [vmem:[%s261] sm:$0xff] %vm260, %v259
    %s263 = scalar_lea.vmem %s0, 1
    %v264 = vld [vmem:[%s263] ss:$8 sm:$0xf]
    %s265 = scalar_lea.vmem %s0, 1
    %v266 = vld [vmem:[%s265] ss:$8 sm:$0xf0]
    %vm267 = vcmask 1047556
    %v268 = vsel %vm267, %v266, %v264
    %269 = vrot.lane.b32.xlu0 %v268, 32
    %v270 = vpop.permute.xlu0 %269
    %vm271 = vcmask 523520
    %272 = vst.msk [vmem:[#allocation0] sm:$0xff] %vm271, %v270
    %s273 = scalar_lea.vmem %s0, 129
    %v274 = vld [vmem:[%s273] ss:$8 sm:$0xf]
    %s275 = scalar_lea.vmem %s0, 129
    %v276 = vld [vmem:[%s275] ss:$8 sm:$0xf0]
    %vm277 = vcmask 1047556
    %v278 = vsel %vm277, %v276, %v274
    %279 = vrot.lane.b32.xlu0 %v278, 32
    %v280 = vpop.permute.xlu0 %279
    %vm281 = vcmask 523520
    %s282 = scalar_lea.vmem [#allocation0], 32
    %283 = vst.msk [vmem:[%s282] sm:$0xff] %vm281, %v280
    %s284 = scalar_lea.vmem %s0, 5
    %v285 = vld [vmem:[%s284] ss:$8 sm:$0xf]
    %s286 = scalar_lea.vmem %s0, 5
    %v287 = vld [vmem:[%s286] ss:$8 sm:$0xf0]
    %vm288 = vcmask 1047556
    %v289 = vsel %vm288, %v287, %v285
    %290 = vrot.lane.b32.xlu0 %v289, 32
    %v291 = vpop.permute.xlu0 %290
    %vm292 = vcmask 523520
    %s293 = scalar_lea.vmem [#allocation0], 8
    %294 = vst.msk [vmem:[%s293] sm:$0xff] %vm292, %v291
    %s295 = scalar_lea.vmem %s0, 133
    %v296 = vld [vmem:[%s295] ss:$8 sm:$0xf]
    %s297 = scalar_lea.vmem %s0, 133
    %v298 = vld [vmem:[%s297] ss:$8 sm:$0xf0]
    %vm299 = vcmask 1047556
    %v300 = vsel %vm299, %v298, %v296
    %301 = vrot.lane.b32.xlu0 %v300, 32
    %v302 = vpop.permute.xlu0 %301
    %vm303 = vcmask 523520
    %s304 = scalar_lea.vmem [#allocation0], 40
    %305 = vst.msk [vmem:[%s304] sm:$0xff] %vm303, %v302
    %s306 = scalar_lea.vmem %s0, 65
    %v307 = vld [vmem:[%s306] ss:$8 sm:$0xf]
    %s308 = scalar_lea.vmem %s0, 65
    %v309 = vld [vmem:[%s308] ss:$8 sm:$0xf0]
    %vm310 = vcmask 1047556
    %v311 = vsel %vm310, %v309, %v307
    %312 = vrot.lane.b32.xlu0 %v311, 32
    %v313 = vpop.permute.xlu0 %312
    %vm314 = vcmask 523520
    %s315 = scalar_lea.vmem [#allocation0], 16
    %316 = vst.msk [vmem:[%s315] sm:$0xff] %vm314, %v313
    %s317 = scalar_lea.vmem %s0, 193
    %v318 = vld [vmem:[%s317] ss:$8 sm:$0xf]
    %s319 = scalar_lea.vmem %s0, 193
    %v320 = vld [vmem:[%s319] ss:$8 sm:$0xf0]
    %vm321 = vcmask 1047556
    %v322 = vsel %vm321, %v320, %v318
    %323 = vrot.lane.b32.xlu0 %v322, 32
    %v324 = vpop.permute.xlu0 %323
    %vm325 = vcmask 523520
    %s326 = scalar_lea.vmem [#allocation0], 48
    %327 = vst.msk [vmem:[%s326] sm:$0xff] %vm325, %v324
    %s328 = scalar_lea.vmem %s0, 69
    %v329 = vld [vmem:[%s328] ss:$8 sm:$0xf]
    %s330 = scalar_lea.vmem %s0, 69
    %v331 = vld [vmem:[%s330] ss:$8 sm:$0xf0]
    %vm332 = vcmask 1047556
    %v333 = vsel %vm332, %v331, %v329
    %334 = vrot.lane.b32.xlu0 %v333, 32
    %v335 = vpop.permute.xlu0 %334
    %vm336 = vcmask 523520
    %s337 = scalar_lea.vmem [#allocation0], 24
    %338 = vst.msk [vmem:[%s337] sm:$0xff] %vm336, %v335
    %s339 = scalar_lea.vmem %s0, 197
    %v340 = vld [vmem:[%s339] ss:$8 sm:$0xf]
    %s341 = scalar_lea.vmem %s0, 197
    %v342 = vld [vmem:[%s341] ss:$8 sm:$0xf0]
    %vm343 = vcmask 1047556
    %v344 = vsel %vm343, %v342, %v340
    %345 = vrot.lane.b32.xlu0 %v344, 32
    %v346 = vpop.permute.xlu0 %345
    %vm347 = vcmask 523520
    %s348 = scalar_lea.vmem [#allocation0], 56
    %349 = vst.msk [vmem:[%s348] sm:$0xff] %vm347, %v346
    %s351 = ssub.s32 1024, 1024
    %352 = vsyncadd [#allocation1], %s351
    %s354 = sshll.u32 [#allocation0], 4
    %s355 = int_to_ptr.vmem [resolvable:$true] %s354
    %357 = dma.vmem_to_hbm [thread:$0]  %s355, 1024, %s1, [#allocation1]
    %358 = dma.done [#allocation1], 1024
    %359 = vsyncpa [#allocation1], 1

// kernel: xe_transformer_layer.3
$region0: #{xe_transformer_layer.3}
  #allocation0 [shape = 'u32[]', space=smem, size = 0x4, offset = 0x4, fixed_abs, tag = 'smem constant byte address 0x4 - core index']
  #allocation1 [shape = 'u32[144,128]{1,0:T(1,128)}', space=vmem, size = 0x12000, scoped, tag = 'internal scratch']
  %s0 = inlined_call_operand.hbm [shape: f32[4,16,32], index: 0, kind: input, shape index: {}, may-alias: {0,21}]
  %s1 = inlined_call_operand.hbm [shape: f32[4,16,32], index: 1, kind: input, shape index: {}]
  %s2 = inlined_call_operand.hbm [shape: f32[4,16,128], index: 2, kind: input, shape index: {}, may-alias: {2,22}]
  %s3 = inlined_call_operand.hbm [shape: f32[8,128], index: 3, kind: input, shape index: {}]
  %s4 = inlined_call_operand.hbm [shape: f32[1,32], index: 4, kind: input, shape index: {}]
  %s5 = inlined_call_operand.hbm [shape: f32[1,32], index: 5, kind: input, shape index: {}]
  %s6 = inlined_call_operand.hbm [shape: f32[1,32], index: 6, kind: input, shape index: {}]
  %s7 = inlined_call_operand.hbm [shape: f32[1,32], index: 7, kind: input, shape index: {}]
  %s8 = inlined_call_operand.hbm [shape: f32[32,64], index: 8, kind: input, shape index: {}]
  %s9 = inlined_call_operand.hbm [shape: f32[1,64], index: 9, kind: input, shape index: {}]
  %s10 = inlined_call_operand.hbm [shape: f32[64,32], index: 10, kind: input, shape index: {}]
  %s11 = inlined_call_operand.hbm [shape: f32[1,32], index: 11, kind: input, shape index: {}]
  %s12 = inlined_call_operand.hbm [shape: f32[1,128], index: 12, kind: input, shape index: {}]
  %s13 = inlined_call_operand.hbm [shape: f32[1,128], index: 13, kind: input, shape index: {}]
  %s14 = inlined_call_operand.hbm [shape: f32[1,128], index: 14, kind: input, shape index: {}]
  %s15 = inlined_call_operand.hbm [shape: f32[1,128], index: 15, kind: input, shape index: {}]
  %s16 = inlined_call_operand.hbm [shape: f32[128,128], index: 16, kind: input, shape index: {}]
  %s17 = inlined_call_operand.hbm [shape: f32[128,256], index: 17, kind: input, shape index: {}]
  %s18 = inlined_call_operand.hbm [shape: f32[1,256], index: 18, kind: input, shape index: {}]
  %s19 = inlined_call_operand.hbm [shape: f32[256,128], index: 19, kind: input, shape index: {}]
  %s20 = inlined_call_operand.hbm [shape: f32[1,128], index: 20, kind: input, shape index: {}]
  %s21 = inlined_call_operand.hbm [shape: f32[4,16,32], index: 21, kind: output, shape index: {0}, may-alias: {0,21}]
  %s22 = inlined_call_operand.hbm [shape: f32[4,16,128], index: 22, kind: output, shape index: {1}, may-alias: {2,22}]
  %23 = xla_tuple %s21, %s22
  %s24 = sld [smem:[#allocation0]]
  $region209: #{xe_transformer_layer.3} parent=0
    _
  %s26 = ssub.s32 1, %s24
  %s27 = scalar_select 0, %s26, %s24
  $region1: #{xe_transformer_layer.3} parent=0
    #allocation2 [shape = 'u8[16384]{0}', space=vmem, size = 0x4000, scoped, tag = 'input window, operand 0']
    #allocation3 [shape = 's32[2]{0}', space=sflag, size = 0x8, scoped, tag = 'scoped memory for xe_transformer_layer.3']
    #allocation4 [shape = 's32[2]{0}', space=sflag, size = 0x8, scoped, tag = 'scoped memory for xe_transformer_layer.3']
    #allocation5 [shape = 'u8[16384]{0}', space=vmem, size = 0x4000, scoped, tag = 'input window, operand 1']
    #allocation6 [shape = 's32[2]{0}', space=sflag, size = 0x8, scoped, tag = 'scoped memory for xe_transformer_layer.3']
    #allocation7 [shape = 'u8[16384]{0}', space=vmem, size = 0x4000, scoped, tag = 'input window, operand 2']
    #allocation8 [shape = 'u8[4096]{0}', space=vmem, size = 0x1000, scoped, tag = 'input window, operand 3, single buffered']
    #allocation9 [shape = 's32[1]{0}', space=sflag, size = 0x4, scoped, tag = 'scoped memory for xe_transformer_layer.3']
    #allocation10 [shape = 'u8[512]{0}', space=vmem, size = 0x400, scoped, tag = 'input window, operand 4, single buffered']
    #allocation11 [shape = 'u8[512]{0}', space=vmem, size = 0x400, scoped, tag = 'input window, operand 5, single buffered']
    #allocation12 [shape = 's32[1]{0}', space=sflag, size = 0x4, scoped, tag = 'scoped memory for xe_transformer_layer.3']
    #allocation13 [shape = 'u8[512]{0}', space=vmem, size = 0x400, scoped, tag = 'input window, operand 6, single buffered']
    #allocation14 [shape = 'u8[512]{0}', space=vmem, size = 0x400, scoped, tag = 'input window, operand 7, single buffered']
    #allocation15 [shape = 's32[1]{0}', space=sflag, size = 0x4, scoped, tag = 'scoped memory for xe_transformer_layer.3']
    #allocation16 [shape = 'u8[16384]{0}', space=vmem, size = 0x4000, scoped, tag = 'input window, operand 8, single buffered']
    #allocation17 [shape = 'u8[512]{0}', space=vmem, size = 0x400, scoped, tag = 'input window, operand 9, single buffered']
    #allocation18 [shape = 's32[1]{0}', space=sflag, size = 0x4, scoped, tag = 'scoped memory for xe_transformer_layer.3']
    #allocation19 [shape = 'u8[32768]{0}', space=vmem, size = 0x8000, scoped, tag = 'input window, operand 10, single buffered']
    #allocation20 [shape = 'u8[512]{0}', space=vmem, size = 0x400, scoped, tag = 'input window, operand 11, single buffered']
    #allocation21 [shape = 's32[1]{0}', space=sflag, size = 0x4, scoped, tag = 'scoped memory for xe_transformer_layer.3']
    #allocation22 [shape = 'u8[512]{0}', space=vmem, size = 0x400, scoped, tag = 'input window, operand 12, single buffered']
    #allocation23 [shape = 'u8[512]{0}', space=vmem, size = 0x400, scoped, tag = 'input window, operand 13, single buffered']
    #allocation24 [shape = 's32[1]{0}', space=sflag, size = 0x4, scoped, tag = 'scoped memory for xe_transformer_layer.3']
    #allocation25 [shape = 'u8[512]{0}', space=vmem, size = 0x400, scoped, tag = 'input window, operand 14, single buffered']
    #allocation26 [shape = 'u8[512]{0}', space=vmem, size = 0x400, scoped, tag = 'input window, operand 15, single buffered']
    #allocation27 [shape = 's32[1]{0}', space=sflag, size = 0x4, scoped, tag = 'scoped memory for xe_transformer_layer.3']
    #allocation28 [shape = 'u8[65536]{0}', space=vmem, size = 0x10000, scoped, tag = 'input window, operand 16, single buffered']
    #allocation29 [shape = 'u8[131072]{0}', space=vmem, size = 0x20000, scoped, tag = 'input window, operand 17, single buffered']
    #allocation30 [shape = 's32[1]{0}', space=sflag, size = 0x4, scoped, tag = 'scoped memory for xe_transformer_layer.3']
    #allocation31 [shape = 'u8[1024]{0}', space=vmem, size = 0x400, scoped, tag = 'input window, operand 18, single buffered']
    #allocation32 [shape = 'u8[131072]{0}', space=vmem, size = 0x20000, scoped, tag = 'input window, operand 19, single buffered']
    #allocation33 [shape = 's32[1]{0}', space=sflag, size = 0x4, scoped, tag = 'scoped memory for xe_transformer_layer.3']
    #allocation34 [shape = 'u8[512]{0}', space=vmem, size = 0x400, scoped, tag = 'input window, operand 20, single buffered']
    #allocation35 [shape = 'u8[16384]{0}', space=vmem, size = 0x4000, scoped, tag = 'output window, operand 0']
    #allocation36 [shape = 'u8[16384]{0}', space=vmem, size = 0x4000, scoped, tag = 'output window, operand 1']
    #allocation37 [shape = 's32[2]{0}', space=sflag, size = 0x8, scoped, tag = 'scoped memory for xe_transformer_layer.3']
    %28 = vsyncpa [#allocation3], 0
    %s29 = scalar_lea.sflag [#allocation3], 1
    %30 = vsyncpa %s29, 0
    %31 = vsyncpa [#allocation6], 0
    %s32 = scalar_lea.sflag [#allocation6], 1
    %33 = vsyncpa %s32, 0
    %34 = vsyncpa [#allocation9], 0
    %35 = vsyncpa [#allocation12], 0
    %36 = vsyncpa [#allocation15], 0
    %37 = vsyncpa [#allocation18], 0
    %38 = vsyncpa [#allocation21], 0
    %39 = vsyncpa [#allocation24], 0
    %40 = vsyncpa [#allocation27], 0
    %41 = vsyncpa [#allocation30], 0
    %42 = vsyncpa [#allocation33], 0
    %43 = vsyncpa [#allocation4], 0
    %s44 = scalar_lea.sflag [#allocation4], 1
    %45 = vsyncpa %s44, 0
    %46 = vsyncpa [#allocation37], 0
    %s47 = scalar_lea.sflag [#allocation37], 1
    %48 = vsyncpa %s47, 0
    loop: start=0, step=1, limit=6
    $region2: #{xe_transformer_layer.3} parent=1 // loop_pre_header
      _
    $region3: #{xe_transformer_layer.3} parent=1 // loop_header
      %s50 = sphi 0, %s54
      %p51 = scmp.ge.s32.totalorder %s50, 6
      %s60 = sphi 0, %s62
      %s63 = sphi 0, %s60
      %s64 = sphi 0, %s63
      %s80 = sphi 0, %s64
      %s86 = sphi 0, %s88
      %s89 = sphi 0, %s86
      %s90 = sphi 0, %s89
      %s106 = sphi 0, %s90
      %s112 = sphi 0, %s114
      %s115 = sphi 0, %s112
      %s116 = sphi 0, %s115
      %s132 = sphi 0, %s116
      %s136 = sphi 0, %s136
      %s138 = sphi 0, %s136
      %s139 = sphi 0, %s138
      %s153 = sphi 0, %s139
      %s157 = sphi 0, %s157
      %s159 = sphi 0, %s157
      %s160 = sphi 0, %s159
      %s174 = sphi 0, %s160
      %s178 = sphi 0, %s178
      %s180 = sphi 0, %s178
      %s181 = sphi 0, %s180
      %s195 = sphi 0, %s181
      %s199 = sphi 0, %s199
      %s201 = sphi 0, %s199
      %s202 = sphi 0, %s201
      %s216 = sphi 0, %s202
      %s220 = sphi 0, %s220
      %s222 = sphi 0, %s220
      %s223 = sphi 0, %s222
      %s237 = sphi 0, %s223
      %s241 = sphi 0, %s241
      %s243 = sphi 0, %s241
      %s244 = sphi 0, %s243
      %s258 = sphi 0, %s244
      %s262 = sphi 0, %s262
      %s264 = sphi 0, %s262
      %s265 = sphi 0, %s264
      %s279 = sphi 0, %s265
      %s283 = sphi 0, %s283
      %s285 = sphi 0, %s283
      %s286 = sphi 0, %s285
      %s300 = sphi 0, %s286
      %s304 = sphi 0, %s304
      %s306 = sphi 0, %s304
      %s307 = sphi 0, %s306
      %s321 = sphi 0, %s307
      %s325 = sphi 0, %s325
      %s327 = sphi 0, %s325
      %s328 = sphi 0, %s327
      %s342 = sphi 0, %s328
      %s346 = sphi 0, %s346
      %s348 = sphi 0, %s346
      %s349 = sphi 0, %s348
      %s363 = sphi 0, %s349
      %s367 = sphi 0, %s367
      %s369 = sphi 0, %s367
      %s370 = sphi 0, %s369
      %s384 = sphi 0, %s370
      %s388 = sphi 0, %s388
      %s390 = sphi 0, %s388
      %s391 = sphi 0, %s390
      %s405 = sphi 0, %s391
      %s409 = sphi 0, %s409
      %s411 = sphi 0, %s409
      %s412 = sphi 0, %s411
      %s426 = sphi 0, %s412
      %s430 = sphi 0, %s430
      %s432 = sphi 0, %s430
      %s433 = sphi 0, %s432
      %s447 = sphi 0, %s433
      %s451 = sphi 0, %s451
      %s453 = sphi 0, %s451
      %s454 = sphi 0, %s453
      %s468 = sphi 0, %s454
      %s472 = sphi 0, %s472
      %s474 = sphi 0, %s472
      %s475 = sphi 0, %s474
      %s489 = sphi 0, %s475
      %s493 = sphi 0, %s493
      %s495 = sphi 0, %s493
      %s496 = sphi 0, %s495
      %s510 = sphi 0, %s496
      %s516 = sphi 0, %s518
      %s519 = sphi 0, %s516
      %s520 = sphi 0, %s519
      %s536 = sphi 0, %s520
      %s542 = sphi 0, %s544
      %s545 = sphi 0, %s542
      %s546 = sphi 0, %s545
      %s562 = sphi 0, %s546
    $region4: #{xe_transformer_layer.3} parent=1 // loop_header_branch
      %53 = sbr.rel (%p51) target = $region8
    $region5: #{xe_transformer_layer.3} parent=1 // loop_body
      %s55 = ssub.s32 %s50, 1
      %s56 = ssub.s32 %s50, 2
      %s57 = sadd.s32 %s50, 1
      %s58 = ssub.s32 %s50, %s57
      %p59 = scmp.eq.s32.totalorder %s58, 0
      %s61 = sadd.s32 %s60, 1
      %s62 = scalar_select %p59, %s60, %s61
      %p65 = pneg %p59
      %p66 = scmp.eq.s32.totalorder %s50, 3
      %p67 = por %p65, %p66
      %p68 = scmp.ne.s32.totalorder %s60, %s63
      %p69 = scmp.eq.s32.totalorder %s50, 0
      %p70 = por %p68, %p69
      %p71 = scmp.ne.s32.totalorder %s60, %s63
      %p72 = scmp.eq.s32.totalorder %s55, 3
      %p73 = por %p71, %p72
      %p74 = scmp.ne.s32.totalorder %s63, %s64
      %p75 = scmp.eq.s32.totalorder %s55, 0
      %p76 = por %p74, %p75
      %p77 = scmp.ne.s32.totalorder %s63, %s64
      %p78 = scmp.eq.s32.totalorder %s56, 3
      %p79 = por %p77, %p78
      %p81 = scmp.ne.s32.totalorder %s64, %s80
      %p82 = scmp.eq.s32.totalorder %s56, 0
      %p83 = por %p81, %p82
      %s84 = ssub.s32 %s50, %s57
      %p85 = scmp.eq.s32.totalorder %s84, 0
      %s87 = sadd.s32 %s86, 1
      %s88 = scalar_select %p85, %s86, %s87
      %p91 = pneg %p85
      %p92 = scmp.eq.s32.totalorder %s50, 3
      %p93 = por %p91, %p92
      %p94 = scmp.ne.s32.totalorder %s86, %s89
      %p95 = scmp.eq.s32.totalorder %s50, 0
      %p96 = por %p94, %p95
      %p97 = scmp.ne.s32.totalorder %s86, %s89
      %p98 = scmp.eq.s32.totalorder %s55, 3
      %p99 = por %p97, %p98
      %p100 = scmp.ne.s32.totalorder %s89, %s90
      %p101 = scmp.eq.s32.totalorder %s55, 0
      %p102 = por %p100, %p101
      %p103 = scmp.ne.s32.totalorder %s89, %s90
      %p104 = scmp.eq.s32.totalorder %s56, 3
      %p105 = por %p103, %p104
      %p107 = scmp.ne.s32.totalorder %s90, %s106
      %p108 = scmp.eq.s32.totalorder %s56, 0
      %p109 = por %p107, %p108
      %s110 = ssub.s32 %s50, %s57
      %p111 = scmp.eq.s32.totalorder %s110, 0
      %s113 = sadd.s32 %s112, 1
      %s114 = scalar_select %p111, %s112, %s113
      %p117 = pneg %p111
      %p118 = scmp.eq.s32.totalorder %s50, 3
      %p119 = por %p117, %p118
      %p120 = scmp.ne.s32.totalorder %s112, %s115
      %p121 = scmp.eq.s32.totalorder %s50, 0
      %p122 = por %p120, %p121
      %p123 = scmp.ne.s32.totalorder %s112, %s115
      %p124 = scmp.eq.s32.totalorder %s55, 3
      %p125 = por %p123, %p124
      %p126 = scmp.ne.s32.totalorder %s115, %s116
      %p127 = scmp.eq.s32.totalorder %s55, 0
      %p128 = por %p126, %p127
      %p129 = scmp.ne.s32.totalorder %s115, %s116
      %p130 = scmp.eq.s32.totalorder %s56, 3
      %p131 = por %p129, %p130
      %p133 = scmp.ne.s32.totalorder %s116, %s132
      %p134 = scmp.eq.s32.totalorder %s56, 0
      %p135 = por %p133, %p134
      %s137 = sadd.s32 %s136, 1
      %p140 = scmp.eq.s32.totalorder %s50, 3
      %p141 = scmp.ne.s32.totalorder %s136, %s138
      %p142 = scmp.eq.s32.totalorder %s50, 0
      %p143 = por %p141, %p142
      %p144 = scmp.ne.s32.totalorder %s136, %s138
      %p145 = scmp.eq.s32.totalorder %s55, 3
      %p146 = por %p144, %p145
      %p147 = scmp.ne.s32.totalorder %s138, %s139
      %p148 = scmp.eq.s32.totalorder %s55, 0
      %p149 = por %p147, %p148
      %p150 = scmp.ne.s32.totalorder %s138, %s139
      %p151 = scmp.eq.s32.totalorder %s56, 3
      %p152 = por %p150, %p151
      %p154 = scmp.ne.s32.totalorder %s139, %s153
      %p155 = scmp.eq.s32.totalorder %s56, 0
      %p156 = por %p154, %p155
      %s158 = sadd.s32 %s157, 1
      %p161 = scmp.eq.s32.totalorder %s50, 3
      %p162 = scmp.ne.s32.totalorder %s157, %s159
      %p163 = scmp.eq.s32.totalorder %s50, 0
      %p164 = por %p162, %p163
      %p165 = scmp.ne.s32.totalorder %s157, %s159
      %p166 = scmp.eq.s32.totalorder %s55, 3
      %p167 = por %p165, %p166
      %p168 = scmp.ne.s32.totalorder %s159, %s160
      %p169 = scmp.eq.s32.totalorder %s55, 0
      %p170 = por %p168, %p169
      %p171 = scmp.ne.s32.totalorder %s159, %s160
      %p172 = scmp.eq.s32.totalorder %s56, 3
      %p173 = por %p171, %p172
      %p175 = scmp.ne.s32.totalorder %s160, %s174
      %p176 = scmp.eq.s32.totalorder %s56, 0
      %p177 = por %p175, %p176
      %s179 = sadd.s32 %s178, 1
      %p182 = scmp.eq.s32.totalorder %s50, 3
      %p183 = scmp.ne.s32.totalorder %s178, %s180
      %p184 = scmp.eq.s32.totalorder %s50, 0
      %p185 = por %p183, %p184
      %p186 = scmp.ne.s32.totalorder %s178, %s180
      %p187 = scmp.eq.s32.totalorder %s55, 3
      %p188 = por %p186, %p187
      %p189 = scmp.ne.s32.totalorder %s180, %s181
      %p190 = scmp.eq.s32.totalorder %s55, 0
      %p191 = por %p189, %p190
      %p192 = scmp.ne.s32.totalorder %s180, %s181
      %p193 = scmp.eq.s32.totalorder %s56, 3
      %p194 = por %p192, %p193
      %p196 = scmp.ne.s32.totalorder %s181, %s195
      %p197 = scmp.eq.s32.totalorder %s56, 0
      %p198 = por %p196, %p197
      %s200 = sadd.s32 %s199, 1
      %p203 = scmp.eq.s32.totalorder %s50, 3
      %p204 = scmp.ne.s32.totalorder %s199, %s201
      %p205 = scmp.eq.s32.totalorder %s50, 0
      %p206 = por %p204, %p205
      %p207 = scmp.ne.s32.totalorder %s199, %s201
      %p208 = scmp.eq.s32.totalorder %s55, 3
      %p209 = por %p207, %p208
      %p210 = scmp.ne.s32.totalorder %s201, %s202
      %p211 = scmp.eq.s32.totalorder %s55, 0
      %p212 = por %p210, %p211
      %p213 = scmp.ne.s32.totalorder %s201, %s202
      %p214 = scmp.eq.s32.totalorder %s56, 3
      %p215 = por %p213, %p214
      %p217 = scmp.ne.s32.totalorder %s202, %s216
      %p218 = scmp.eq.s32.totalorder %s56, 0
      %p219 = por %p217, %p218
      %s221 = sadd.s32 %s220, 1
      %p224 = scmp.eq.s32.totalorder %s50, 3
      %p225 = scmp.ne.s32.totalorder %s220, %s222
      %p226 = scmp.eq.s32.totalorder %s50, 0
      %p227 = por %p225, %p226
      %p228 = scmp.ne.s32.totalorder %s220, %s222
      %p229 = scmp.eq.s32.totalorder %s55, 3
      %p230 = por %p228, %p229
      %p231 = scmp.ne.s32.totalorder %s222, %s223
      %p232 = scmp.eq.s32.totalorder %s55, 0
      %p233 = por %p231, %p232
      %p234 = scmp.ne.s32.totalorder %s222, %s223
      %p235 = scmp.eq.s32.totalorder %s56, 3
      %p236 = por %p234, %p235
      %p238 = scmp.ne.s32.totalorder %s223, %s237
      %p239 = scmp.eq.s32.totalorder %s56, 0
      %p240 = por %p238, %p239
      %s242 = sadd.s32 %s241, 1
      %p245 = scmp.eq.s32.totalorder %s50, 3
      %p246 = scmp.ne.s32.totalorder %s241, %s243
      %p247 = scmp.eq.s32.totalorder %s50, 0
      %p248 = por %p246, %p247
      %p249 = scmp.ne.s32.totalorder %s241, %s243
      %p250 = scmp.eq.s32.totalorder %s55, 3
      %p251 = por %p249, %p250
      %p252 = scmp.ne.s32.totalorder %s243, %s244
      %p253 = scmp.eq.s32.totalorder %s55, 0
      %p254 = por %p252, %p253
      %p255 = scmp.ne.s32.totalorder %s243, %s244
      %p256 = scmp.eq.s32.totalorder %s56, 3
      %p257 = por %p255, %p256
      %p259 = scmp.ne.s32.totalorder %s244, %s258
      %p260 = scmp.eq.s32.totalorder %s56, 0
      %p261 = por %p259, %p260
      %s263 = sadd.s32 %s262, 1
      %p266 = scmp.eq.s32.totalorder %s50, 3
      %p267 = scmp.ne.s32.totalorder %s262, %s264
      %p268 = scmp.eq.s32.totalorder %s50, 0
      %p269 = por %p267, %p268
      %p270 = scmp.ne.s32.totalorder %s262, %s264
      %p271 = scmp.eq.s32.totalorder %s55, 3
      %p272 = por %p270, %p271
      %p273 = scmp.ne.s32.totalorder %s264, %s265
      %p274 = scmp.eq.s32.totalorder %s55, 0
      %p275 = por %p273, %p274
      %p276 = scmp.ne.s32.totalorder %s264, %s265
      %p277 = scmp.eq.s32.totalorder %s56, 3
      %p278 = por %p276, %p277
      %p280 = scmp.ne.s32.totalorder %s265, %s279
      %p281 = scmp.eq.s32.totalorder %s56, 0
      %p282 = por %p280, %p281
      %s284 = sadd.s32 %s283, 1
      %p287 = scmp.eq.s32.totalorder %s50, 3
      %p288 = scmp.ne.s32.totalorder %s283, %s285
      %p289 = scmp.eq.s32.totalorder %s50, 0
      %p290 = por %p288, %p289
      %p291 = scmp.ne.s32.totalorder %s283, %s285
      %p292 = scmp.eq.s32.totalorder %s55, 3
      %p293 = por %p291, %p292
      %p294 = scmp.ne.s32.totalorder %s285, %s286
      %p295 = scmp.eq.s32.totalorder %s55, 0
      %p296 = por %p294, %p295
      %p297 = scmp.ne.s32.totalorder %s285, %s286
      %p298 = scmp.eq.s32.totalorder %s56, 3
      %p299 = por %p297, %p298
      %p301 = scmp.ne.s32.totalorder %s286, %s300
      %p302 = scmp.eq.s32.totalorder %s56, 0
      %p303 = por %p301, %p302
      %s305 = sadd.s32 %s304, 1
      %p308 = scmp.eq.s32.totalorder %s50, 3
      %p309 = scmp.ne.s32.totalorder %s304, %s306
      %p310 = scmp.eq.s32.totalorder %s50, 0
      %p311 = por %p309, %p310
      %p312 = scmp.ne.s32.totalorder %s304, %s306
      %p313 = scmp.eq.s32.totalorder %s55, 3
      %p314 = por %p312, %p313
      %p315 = scmp.ne.s32.totalorder %s306, %s307
      %p316 = scmp.eq.s32.totalorder %s55, 0
      %p317 = por %p315, %p316
      %p318 = scmp.ne.s32.totalorder %s306, %s307
      %p319 = scmp.eq.s32.totalorder %s56, 3
      %p320 = por %p318, %p319
      %p322 = scmp.ne.s32.totalorder %s307, %s321
      %p323 = scmp.eq.s32.totalorder %s56, 0
      %p324 = por %p322, %p323
      %s326 = sadd.s32 %s325, 1
      %p329 = scmp.eq.s32.totalorder %s50, 3
      %p330 = scmp.ne.s32.totalorder %s325, %s327
      %p331 = scmp.eq.s32.totalorder %s50, 0
      %p332 = por %p330, %p331
      %p333 = scmp.ne.s32.totalorder %s325, %s327
      %p334 = scmp.eq.s32.totalorder %s55, 3
      %p335 = por %p333, %p334
      %p336 = scmp.ne.s32.totalorder %s327, %s328
      %p337 = scmp.eq.s32.totalorder %s55, 0
      %p338 = por %p336, %p337
      %p339 = scmp.ne.s32.totalorder %s327, %s328
      %p340 = scmp.eq.s32.totalorder %s56, 3
      %p341 = por %p339, %p340
      %p343 = scmp.ne.s32.totalorder %s328, %s342
      %p344 = scmp.eq.s32.totalorder %s56, 0
      %p345 = por %p343, %p344
      %s347 = sadd.s32 %s346, 1
      %p350 = scmp.eq.s32.totalorder %s50, 3
      %p351 = scmp.ne.s32.totalorder %s346, %s348
      %p352 = scmp.eq.s32.totalorder %s50, 0
      %p353 = por %p351, %p352
      %p354 = scmp.ne.s32.totalorder %s346, %s348
      %p355 = scmp.eq.s32.totalorder %s55, 3
      %p356 = por %p354, %p355
      %p357 = scmp.ne.s32.totalorder %s348, %s349
      %p358 = scmp.eq.s32.totalorder %s55, 0
      %p359 = por %p357, %p358
      %p360 = scmp.ne.s32.totalorder %s348, %s349
      %p361 = scmp.eq.s32.totalorder %s56, 3
      %p362 = por %p360, %p361
      %p364 = scmp.ne.s32.totalorder %s349, %s363
      %p365 = scmp.eq.s32.totalorder %s56, 0
      %p366 = por %p364, %p365
      %s368 = sadd.s32 %s367, 1
      %p371 = scmp.eq.s32.totalorder %s50, 3
      %p372 = scmp.ne.s32.totalorder %s367, %s369
      %p373 = scmp.eq.s32.totalorder %s50, 0
      %p374 = por %p372, %p373
      %p375 = scmp.ne.s32.totalorder %s367, %s369
      %p376 = scmp.eq.s32.totalorder %s55, 3
      %p377 = por %p375, %p376
      %p378 = scmp.ne.s32.totalorder %s369, %s370
      %p379 = scmp.eq.s32.totalorder %s55, 0
      %p380 = por %p378, %p379
      %p381 = scmp.ne.s32.totalorder %s369, %s370
      %p382 = scmp.eq.s32.totalorder %s56, 3
      %p383 = por %p381, %p382
      %p385 = scmp.ne.s32.totalorder %s370, %s384
      %p386 = scmp.eq.s32.totalorder %s56, 0
      %p387 = por %p385, %p386
      %s389 = sadd.s32 %s388, 1
      %p392 = scmp.eq.s32.totalorder %s50, 3
      %p393 = scmp.ne.s32.totalorder %s388, %s390
      %p394 = scmp.eq.s32.totalorder %s50, 0
      %p395 = por %p393, %p394
      %p396 = scmp.ne.s32.totalorder %s388, %s390
      %p397 = scmp.eq.s32.totalorder %s55, 3
      %p398 = por %p396, %p397
      %p399 = scmp.ne.s32.totalorder %s390, %s391
      %p400 = scmp.eq.s32.totalorder %s55, 0
      %p401 = por %p399, %p400
      %p402 = scmp.ne.s32.totalorder %s390, %s391
      %p403 = scmp.eq.s32.totalorder %s56, 3
      %p404 = por %p402, %p403
      %p406 = scmp.ne.s32.totalorder %s391, %s405
      %p407 = scmp.eq.s32.totalorder %s56, 0
      %p408 = por %p406, %p407
      %s410 = sadd.s32 %s409, 1
      %p413 = scmp.eq.s32.totalorder %s50, 3
      %p414 = scmp.ne.s32.totalorder %s409, %s411
      %p415 = scmp.eq.s32.totalorder %s50, 0
      %p416 = por %p414, %p415
      %p417 = scmp.ne.s32.totalorder %s409, %s411
      %p418 = scmp.eq.s32.totalorder %s55, 3
      %p419 = por %p417, %p418
      %p420 = scmp.ne.s32.totalorder %s411, %s412
      %p421 = scmp.eq.s32.totalorder %s55, 0
      %p422 = por %p420, %p421
      %p423 = scmp.ne.s32.totalorder %s411, %s412
      %p424 = scmp.eq.s32.totalorder %s56, 3
      %p425 = por %p423, %p424
      %p427 = scmp.ne.s32.totalorder %s412, %s426
      %p428 = scmp.eq.s32.totalorder %s56, 0
      %p429 = por %p427, %p428
      %s431 = sadd.s32 %s430, 1
      %p434 = scmp.eq.s32.totalorder %s50, 3
      %p435 = scmp.ne.s32.totalorder %s430, %s432
      %p436 = scmp.eq.s32.totalorder %s50, 0
      %p437 = por %p435, %p436
      %p438 = scmp.ne.s32.totalorder %s430, %s432
      %p439 = scmp.eq.s32.totalorder %s55, 3
      %p440 = por %p438, %p439
      %p441 = scmp.ne.s32.totalorder %s432, %s433
      %p442 = scmp.eq.s32.totalorder %s55, 0
      %p443 = por %p441, %p442
      %p444 = scmp.ne.s32.totalorder %s432, %s433
      %p445 = scmp.eq.s32.totalorder %s56, 3
      %p446 = por %p444, %p445
      %p448 = scmp.ne.s32.totalorder %s433, %s447
      %p449 = scmp.eq.s32.totalorder %s56, 0
      %p450 = por %p448, %p449
      %s452 = sadd.s32 %s451, 1
      %p455 = scmp.eq.s32.totalorder %s50, 3
      %p456 = scmp.ne.s32.totalorder %s451, %s453
      %p457 = scmp.eq.s32.totalorder %s50, 0
      %p458 = por %p456, %p457
      %p459 = scmp.ne.s32.totalorder %s451, %s453
      %p460 = scmp.eq.s32.totalorder %s55, 3
      %p461 = por %p459, %p460
      %p462 = scmp.ne.s32.totalorder %s453, %s454
      %p463 = scmp.eq.s32.totalorder %s55, 0
      %p464 = por %p462, %p463
      %p465 = scmp.ne.s32.totalorder %s453, %s454
      %p466 = scmp.eq.s32.totalorder %s56, 3
      %p467 = por %p465, %p466
      %p469 = scmp.ne.s32.totalorder %s454, %s468
      %p470 = scmp.eq.s32.totalorder %s56, 0
      %p471 = por %p469, %p470
      %s473 = sadd.s32 %s472, 1
      %p476 = scmp.eq.s32.totalorder %s50, 3
      %p477 = scmp.ne.s32.totalorder %s472, %s474
      %p478 = scmp.eq.s32.totalorder %s50, 0
      %p479 = por %p477, %p478
      %p480 = scmp.ne.s32.totalorder %s472, %s474
      %p481 = scmp.eq.s32.totalorder %s55, 3
      %p482 = por %p480, %p481
      %p483 = scmp.ne.s32.totalorder %s474, %s475
      %p484 = scmp.eq.s32.totalorder %s55, 0
      %p485 = por %p483, %p484
      %p486 = scmp.ne.s32.totalorder %s474, %s475
      %p487 = scmp.eq.s32.totalorder %s56, 3
      %p488 = por %p486, %p487
      %p490 = scmp.ne.s32.totalorder %s475, %s489
      %p491 = scmp.eq.s32.totalorder %s56, 0
      %p492 = por %p490, %p491
      %s494 = sadd.s32 %s493, 1
      %p497 = scmp.eq.s32.totalorder %s50, 3
      %p498 = scmp.ne.s32.totalorder %s493, %s495
      %p499 = scmp.eq.s32.totalorder %s50, 0
      %p500 = por %p498, %p499
      %p501 = scmp.ne.s32.totalorder %s493, %s495
      %p502 = scmp.eq.s32.totalorder %s55, 3
      %p503 = por %p501, %p502
      %p504 = scmp.ne.s32.totalorder %s495, %s496
      %p505 = scmp.eq.s32.totalorder %s55, 0
      %p506 = por %p504, %p505
      %p507 = scmp.ne.s32.totalorder %s495, %s496
      %p508 = scmp.eq.s32.totalorder %s56, 3
      %p509 = por %p507, %p508
      %p511 = scmp.ne.s32.totalorder %s496, %s510
      %p512 = scmp.eq.s32.totalorder %s56, 0
      %p513 = por %p511, %p512
      %s514 = ssub.s32 %s50, %s57
      %p515 = scmp.eq.s32.totalorder %s514, 0
      %s517 = sadd.s32 %s516, 1
      %s518 = scalar_select %p515, %s516, %s517
      %p521 = pneg %p515
      %p522 = scmp.eq.s32.totalorder %s50, 3
      %p523 = por %p521, %p522
      %p524 = scmp.ne.s32.totalorder %s516, %s519
      %p525 = scmp.eq.s32.totalorder %s50, 0
      %p526 = por %p524, %p525
      %p527 = scmp.ne.s32.totalorder %s516, %s519
      %p528 = scmp.eq.s32.totalorder %s55, 3
      %p529 = por %p527, %p528
      %p530 = scmp.ne.s32.totalorder %s519, %s520
      %p531 = scmp.eq.s32.totalorder %s55, 0
      %p532 = por %p530, %p531
      %p533 = scmp.ne.s32.totalorder %s519, %s520
      %p534 = scmp.eq.s32.totalorder %s56, 3
      %p535 = por %p533, %p534
      %p537 = scmp.ne.s32.totalorder %s520, %s536
      %p538 = scmp.eq.s32.totalorder %s56, 0
      %p539 = por %p537, %p538
      %s540 = ssub.s32 %s50, %s57
      %p541 = scmp.eq.s32.totalorder %s540, 0
      %s543 = sadd.s32 %s542, 1
      %s544 = scalar_select %p541, %s542, %s543
      %p547 = pneg %p541
      %p548 = scmp.eq.s32.totalorder %s50, 3
      %p549 = por %p547, %p548
      %p550 = scmp.ne.s32.totalorder %s542, %s545
      %p551 = scmp.eq.s32.totalorder %s50, 0
      %p552 = por %p550, %p551
      %p553 = scmp.ne.s32.totalorder %s542, %s545
      %p554 = scmp.eq.s32.totalorder %s55, 3
      %p555 = por %p553, %p554
      %p556 = scmp.ne.s32.totalorder %s545, %s546
      %p557 = scmp.eq.s32.totalorder %s55, 0
      %p558 = por %p556, %p557
      %p559 = scmp.ne.s32.totalorder %s545, %s546
      %p560 = scmp.eq.s32.totalorder %s56, 3
      %p561 = por %p559, %p560
      %p563 = scmp.ne.s32.totalorder %s546, %s562
      %p564 = scmp.eq.s32.totalorder %s56, 0
      %p565 = por %p563, %p564
      %p566 = scmp.le.s32.totalorder 1, %s50
      %p567 = scmp.lt.s32.totalorder %s50, 5
      %p568 = pnand %p566, %p567
      %p569 = pneg %p568
      // Predicated region
      $region9: #{xe_transformer_layer.3} parent=5 // pred_check
        _
      $region10: #{xe_transformer_layer.3} parent=5 // pred_check_branch
        %571 = sbr.rel (%p568) target = $region12
      $region11: #{xe_transformer_layer.3} parent=5 // pred_region
        %s572 = ssub.s32 %s50, 1
        // Predicated region
        $region13: #{xe_transformer_layer.3} parent=11 // pred_check
          %p573 = pneg %p149
        $region14: #{xe_transformer_layer.3} parent=11 // pred_check_branch
          %575 = sbr.rel (%p573) target = $region16
        $region15: #{xe_transformer_layer.3} parent=11 // pred_region
          %s577 = ssub.s32 128, 128
          %578 = vsyncadd [#allocation9], %s577
          %s580 = sshll.u32 [#allocation8], 4
          %s581 = int_to_ptr.vmem [resolvable:$true] %s580
          %583 = dma.hbm_to_vmem [thread:$0]  %s3, 128, %s581, [#allocation9]
        $region16: #{xe_transformer_layer.3} parent=11 // pred_fallthru
          _
        // Predicated region
        $region17: #{xe_transformer_layer.3} parent=11 // pred_check
          %p584 = pneg %p170
        $region18: #{xe_transformer_layer.3} parent=11 // pred_check_branch
          %586 = sbr.rel (%p584) target = $region20
        $region19: #{xe_transformer_layer.3} parent=11 // pred_region
          %s588 = ssub.s32 16, 16
          %589 = vsyncadd [#allocation9], %s588
          %s591 = sshll.u32 [#allocation10], 4
          %s592 = int_to_ptr.vmem [resolvable:$true] %s591
          %594 = dma.hbm_to_vmem [thread:$0]  %s4, 16, %s592, [#allocation9]
        $region20: #{xe_transformer_layer.3} parent=11 // pred_fallthru
          _
        // Predicated region
        $region21: #{xe_transformer_layer.3} parent=11 // pred_check
          %p595 = pneg %p191
        $region22: #{xe_transformer_layer.3} parent=11 // pred_check_branch
          %597 = sbr.rel (%p595) target = $region24
        $region23: #{xe_transformer_layer.3} parent=11 // pred_region
          %s599 = ssub.s32 16, 16
          %600 = vsyncadd [#allocation12], %s599
          %s602 = sshll.u32 [#allocation11], 4
          %s603 = int_to_ptr.vmem [resolvable:$true] %s602
          %605 = dma.hbm_to_vmem [thread:$0]  %s5, 16, %s603, [#allocation12]
        $region24: #{xe_transformer_layer.3} parent=11 // pred_fallthru
          _
        // Predicated region
        $region25: #{xe_transformer_layer.3} parent=11 // pred_check
          %p606 = pneg %p212
        $region26: #{xe_transformer_layer.3} parent=11 // pred_check_branch
          %608 = sbr.rel (%p606) target = $region28
        $region27: #{xe_transformer_layer.3} parent=11 // pred_region
          %s610 = ssub.s32 16, 16
          %611 = vsyncadd [#allocation12], %s610
          %s613 = sshll.u32 [#allocation13], 4
          %s614 = int_to_ptr.vmem [resolvable:$true] %s613
          %616 = dma.hbm_to_vmem [thread:$0]  %s6, 16, %s614, [#allocation12]
        $region28: #{xe_transformer_layer.3} parent=11 // pred_fallthru
          _
        // Predicated region
        $region29: #{xe_transformer_layer.3} parent=11 // pred_check
          %p617 = pneg %p233
        $region30: #{xe_transformer_layer.3} parent=11 // pred_check_branch
          %619 = sbr.rel (%p617) target = $region32
        $region31: #{xe_transformer_layer.3} parent=11 // pred_region
          %s621 = ssub.s32 16, 16
          %622 = vsyncadd [#allocation15], %s621
          %s624 = sshll.u32 [#allocation14], 4
          %s625 = int_to_ptr.vmem [resolvable:$true] %s624
          %627 = dma.hbm_to_vmem [thread:$0]  %s7, 16, %s625, [#allocation15]
        $region32: #{xe_transformer_layer.3} parent=11 // pred_fallthru
          _
        // Predicated region
        $region33: #{xe_transformer_layer.3} parent=11 // pred_check
          %p628 = pneg %p254
        $region34: #{xe_transformer_layer.3} parent=11 // pred_check_branch
          %630 = sbr.rel (%p628) target = $region36
        $region35: #{xe_transformer_layer.3} parent=11 // pred_region
          %s632 = ssub.s32 512, 512
          %633 = vsyncadd [#allocation15], %s632
          %s634 = sshll.u32 [#allocation16], 4
          %s635 = int_to_ptr.vmem [resolvable:$true] %s634
          %640 = dma.hbm_to_vmem [thread:$0]  %s8, 512, %s635, [#allocation15], 128, 128, 8
        $region36: #{xe_transformer_layer.3} parent=11 // pred_fallthru
          _
        // Predicated region
        $region37: #{xe_transformer_layer.3} parent=11 // pred_check
          %p641 = pneg %p275
        $region38: #{xe_transformer_layer.3} parent=11 // pred_check_branch
          %643 = sbr.rel (%p641) target = $region40
        $region39: #{xe_transformer_layer.3} parent=11 // pred_region
          %s645 = ssub.s32 16, 16
          %646 = vsyncadd [#allocation18], %s645
          %s648 = sshll.u32 [#allocation17], 4
          %s649 = int_to_ptr.vmem [resolvable:$true] %s648
          %651 = dma.hbm_to_vmem [thread:$0]  %s9, 16, %s649, [#allocation18]
        $region40: #{xe_transformer_layer.3} parent=11 // pred_fallthru
          _
        // Predicated region
        $region41: #{xe_transformer_layer.3} parent=11 // pred_check
          %p652 = pneg %p296
        $region42: #{xe_transformer_layer.3} parent=11 // pred_check_branch
          %654 = sbr.rel (%p652) target = $region44
        $region43: #{xe_transformer_layer.3} parent=11 // pred_region
          %s656 = ssub.s32 1024, 1024
          %657 = vsyncadd [#allocation18], %s656
          %s658 = sshll.u32 [#allocation19], 4
          %s659 = int_to_ptr.vmem [resolvable:$true] %s658
          %664 = dma.hbm_to_vmem [thread:$0]  %s10, 1024, %s659, [#allocation18], 128, 128, 8
        $region44: #{xe_transformer_layer.3} parent=11 // pred_fallthru
          _
        // Predicated region
        $region45: #{xe_transformer_layer.3} parent=11 // pred_check
          %p665 = pneg %p317
        $region46: #{xe_transformer_layer.3} parent=11 // pred_check_branch
          %667 = sbr.rel (%p665) target = $region48
        $region47: #{xe_transformer_layer.3} parent=11 // pred_region
          %s669 = ssub.s32 16, 16
          %670 = vsyncadd [#allocation21], %s669
          %s672 = sshll.u32 [#allocation20], 4
          %s673 = int_to_ptr.vmem [resolvable:$true] %s672
          %675 = dma.hbm_to_vmem [thread:$0]  %s11, 16, %s673, [#allocation21]
        $region48: #{xe_transformer_layer.3} parent=11 // pred_fallthru
          _
        // Predicated region
        $region49: #{xe_transformer_layer.3} parent=11 // pred_check
          %p676 = pneg %p338
        $region50: #{xe_transformer_layer.3} parent=11 // pred_check_branch
          %678 = sbr.rel (%p676) target = $region52
        $region51: #{xe_transformer_layer.3} parent=11 // pred_region
          %s680 = ssub.s32 16, 16
          %681 = vsyncadd [#allocation21], %s680
          %s683 = sshll.u32 [#allocation22], 4
          %s684 = int_to_ptr.vmem [resolvable:$true] %s683
          %686 = dma.hbm_to_vmem [thread:$0]  %s12, 16, %s684, [#allocation21]
        $region52: #{xe_transformer_layer.3} parent=11 // pred_fallthru
          _
        // Predicated region
        $region53: #{xe_transformer_layer.3} parent=11 // pred_check
          %p687 = pneg %p359
        $region54: #{xe_transformer_layer.3} parent=11 // pred_check_branch
          %689 = sbr.rel (%p687) target = $region56
        $region55: #{xe_transformer_layer.3} parent=11 // pred_region
          %s691 = ssub.s32 16, 16
          %692 = vsyncadd [#allocation24], %s691
          %s694 = sshll.u32 [#allocation23], 4
          %s695 = int_to_ptr.vmem [resolvable:$true] %s694
          %697 = dma.hbm_to_vmem [thread:$0]  %s13, 16, %s695, [#allocation24]
        $region56: #{xe_transformer_layer.3} parent=11 // pred_fallthru
          _
        // Predicated region
        $region57: #{xe_transformer_layer.3} parent=11 // pred_check
          %p698 = pneg %p380
        $region58: #{xe_transformer_layer.3} parent=11 // pred_check_branch
          %700 = sbr.rel (%p698) target = $region60
        $region59: #{xe_transformer_layer.3} parent=11 // pred_region
          %s702 = ssub.s32 16, 16
          %703 = vsyncadd [#allocation24], %s702
          %s705 = sshll.u32 [#allocation25], 4
          %s706 = int_to_ptr.vmem [resolvable:$true] %s705
          %708 = dma.hbm_to_vmem [thread:$0]  %s14, 16, %s706, [#allocation24]
        $region60: #{xe_transformer_layer.3} parent=11 // pred_fallthru
          _
        // Predicated region
        $region61: #{xe_transformer_layer.3} parent=11 // pred_check
          %p709 = pneg %p401
        $region62: #{xe_transformer_layer.3} parent=11 // pred_check_branch
          %711 = sbr.rel (%p709) target = $region64
        $region63: #{xe_transformer_layer.3} parent=11 // pred_region
          %s713 = ssub.s32 16, 16
          %714 = vsyncadd [#allocation27], %s713
          %s716 = sshll.u32 [#allocation26], 4
          %s717 = int_to_ptr.vmem [resolvable:$true] %s716
          %719 = dma.hbm_to_vmem [thread:$0]  %s15, 16, %s717, [#allocation27]
        $region64: #{xe_transformer_layer.3} parent=11 // pred_fallthru
          _
        // Predicated region
        $region65: #{xe_transformer_layer.3} parent=11 // pred_check
          %p720 = pneg %p422
        $region66: #{xe_transformer_layer.3} parent=11 // pred_check_branch
          %722 = sbr.rel (%p720) target = $region68
        $region67: #{xe_transformer_layer.3} parent=11 // pred_region
          %s724 = ssub.s32 2048, 2048
          %725 = vsyncadd [#allocation27], %s724
          %s726 = sshll.u32 [#allocation28], 4
          %s727 = int_to_ptr.vmem [resolvable:$true] %s726
          %732 = dma.hbm_to_vmem [thread:$0]  %s16, 2048, %s727, [#allocation27], 128, 128, 8
        $region68: #{xe_transformer_layer.3} parent=11 // pred_fallthru
          _
        // Predicated region
        $region69: #{xe_transformer_layer.3} parent=11 // pred_check
          %p733 = pneg %p443
        $region70: #{xe_transformer_layer.3} parent=11 // pred_check_branch
          %735 = sbr.rel (%p733) target = $region72
        $region71: #{xe_transformer_layer.3} parent=11 // pred_region
          %s737 = ssub.s32 4096, 4096
          %738 = vsyncadd [#allocation30], %s737
          %s739 = sshll.u32 [#allocation29], 4
          %s740 = int_to_ptr.vmem [resolvable:$true] %s739
          %745 = dma.hbm_to_vmem [thread:$0]  %s17, 4096, %s740, [#allocation30], 256, 256, 16
        $region72: #{xe_transformer_layer.3} parent=11 // pred_fallthru
          _
        // Predicated region
        $region73: #{xe_transformer_layer.3} parent=11 // pred_check
          %p746 = pneg %p464
        $region74: #{xe_transformer_layer.3} parent=11 // pred_check_branch
          %748 = sbr.rel (%p746) target = $region76
        $region75: #{xe_transformer_layer.3} parent=11 // pred_region
          %s750 = ssub.s32 32, 32
          %751 = vsyncadd [#allocation30], %s750
          %s753 = sshll.u32 [#allocation31], 4
          %s754 = int_to_ptr.vmem [resolvable:$true] %s753
          %756 = dma.hbm_to_vmem [thread:$0]  %s18, 32, %s754, [#allocation30]
        $region76: #{xe_transformer_layer.3} parent=11 // pred_fallthru
          _
        // Predicated region
        $region77: #{xe_transformer_layer.3} parent=11 // pred_check
          %p757 = pneg %p485
        $region78: #{xe_transformer_layer.3} parent=11 // pred_check_branch
          %759 = sbr.rel (%p757) target = $region80
        $region79: #{xe_transformer_layer.3} parent=11 // pred_region
          %s761 = ssub.s32 4096, 4096
          %762 = vsyncadd [#allocation33], %s761
          %s763 = sshll.u32 [#allocation32], 4
          %s764 = int_to_ptr.vmem [resolvable:$true] %s763
          %769 = dma.hbm_to_vmem [thread:$0]  %s19, 4096, %s764, [#allocation33], 128, 128, 8
        $region80: #{xe_transformer_layer.3} parent=11 // pred_fallthru
          _
        // Predicated region
        $region81: #{xe_transformer_layer.3} parent=11 // pred_check
          %p770 = pneg %p506
        $region82: #{xe_transformer_layer.3} parent=11 // pred_check_branch
          %772 = sbr.rel (%p770) target = $region84
        $region83: #{xe_transformer_layer.3} parent=11 // pred_region
          %s774 = ssub.s32 16, 16
          %775 = vsyncadd [#allocation33], %s774
          %s777 = sshll.u32 [#allocation34], 4
          %s778 = int_to_ptr.vmem [resolvable:$true] %s777
          %780 = dma.hbm_to_vmem [thread:$0]  %s20, 16, %s778, [#allocation33]
        $region84: #{xe_transformer_layer.3} parent=11 // pred_fallthru
          _
      $region12: #{xe_transformer_layer.3} parent=5 // pred_fallthru
        _
      %p781 = scmp.lt.s32.totalorder %s50, 4
      // Predicated region
      $region85: #{xe_transformer_layer.3} parent=5 // pred_check
        %p782 = pneg %p781
      $region86: #{xe_transformer_layer.3} parent=5 // pred_check_branch
        %784 = sbr.rel (%p782) target = $region88
      $region87: #{xe_transformer_layer.3} parent=5 // pred_region
        // Predicated region
        $region89: #{xe_transformer_layer.3} parent=87 // pred_check
          %p785 = pneg %p70
        $region90: #{xe_transformer_layer.3} parent=87 // pred_check_branch
          %787 = sbr.rel (%p785) target = $region92
        $region91: #{xe_transformer_layer.3} parent=87 // pred_region
          %s788 = sand.u32 %s60, 1
          %s789 = scalar_lea.sflag [#allocation3], %s788
          %s790 = sand.u32 %s60, 1
          %s791 = smul.addr %s790, 16
          %s792 = scalar_lea.vmem [#allocation2], %s791
          %s794 = ssub.s32 256, 256
          %795 = vsyncadd %s789, %s794
          %s796 = smul.addr %s50, 2
          %s797 = smul.addr %s796, 128
          %s798 = scalar_lea.hbm %s0, %s797
          %s799 = sshll.u32 %s792, 4
          %s800 = int_to_ptr.vmem [resolvable:$true] %s799
          %805 = dma.hbm_to_vmem [thread:$0]  %s798, 256, %s800, %s789, 128, 128, 8
        $region92: #{xe_transformer_layer.3} parent=87 // pred_fallthru
          _
        // Predicated region
        $region93: #{xe_transformer_layer.3} parent=87 // pred_check
          %p806 = pneg %p96
        $region94: #{xe_transformer_layer.3} parent=87 // pred_check_branch
          %808 = sbr.rel (%p806) target = $region96
        $region95: #{xe_transformer_layer.3} parent=87 // pred_region
          %s809 = sand.u32 %s50, 1
          %s810 = scalar_lea.sflag [#allocation6], %s809
          %s811 = sand.u32 %s86, 1
          %s812 = smul.addr %s811, 16
          %s813 = scalar_lea.vmem [#allocation5], %s812
          %s815 = ssub.s32 256, 256
          %816 = vsyncadd %s810, %s815
          %s817 = smul.addr %s50, 2
          %s818 = smul.addr %s817, 128
          %s819 = scalar_lea.hbm %s1, %s818
          %s820 = sshll.u32 %s813, 4
          %s821 = int_to_ptr.vmem [resolvable:$true] %s820
          %826 = dma.hbm_to_vmem [thread:$0]  %s819, 256, %s821, %s810, 128, 128, 8
        $region96: #{xe_transformer_layer.3} parent=87 // pred_fallthru
          _
        // Predicated region
        $region97: #{xe_transformer_layer.3} parent=87 // pred_check
          %p827 = pneg %p122
        $region98: #{xe_transformer_layer.3} parent=87 // pred_check_branch
          %829 = sbr.rel (%p827) target = $region100
        $region99: #{xe_transformer_layer.3} parent=87 // pred_region
          %s830 = sand.u32 %s50, 1
          %s831 = scalar_lea.sflag [#allocation6], %s830
          %s832 = sand.u32 %s112, 1
          %s833 = smul.addr %s832, 16
          %s834 = scalar_lea.vmem [#allocation7], %s833
          %s836 = ssub.s32 256, 256
          %837 = vsyncadd %s831, %s836
          %s838 = smul.addr %s50, 2
          %s839 = smul.addr %s838, 128
          %s840 = scalar_lea.hbm %s2, %s839
          %s841 = sshll.u32 %s834, 4
          %s842 = int_to_ptr.vmem [resolvable:$true] %s841
          %847 = dma.hbm_to_vmem [thread:$0]  %s840, 256, %s842, %s831, 128, 128, 8
        $region100: #{xe_transformer_layer.3} parent=87 // pred_fallthru
          _
      $region88: #{xe_transformer_layer.3} parent=5 // pred_fallthru
        _
      %p848 = scmp.le.s32.totalorder 1, %s50
      %p849 = scmp.lt.s32.totalorder %s50, 5
      %p850 = pnand %p848, %p849
      %p851 = pneg %p850
      // Predicated region
      $region101: #{xe_transformer_layer.3} parent=5 // pred_check
        _
      $region102: #{xe_transformer_layer.3} parent=5 // pred_check_branch
        %853 = sbr.rel (%p850) target = $region104
      $region103: #{xe_transformer_layer.3} parent=5 // pred_region
        %s854 = ssub.s32 %s50, 1
        %s855 = sand.u32 %s63, 1
        %s856 = scalar_lea.sflag [#allocation3], %s855
        %s857 = sand.u32 %s63, 1
        %s858 = smul.addr %s857, 16
        %s859 = scalar_lea.vmem [#allocation2], %s858
        // Predicated region
        $region105: #{xe_transformer_layer.3} parent=103 // pred_check
          %p860 = pneg %p76
        $region106: #{xe_transformer_layer.3} parent=103 // pred_check_branch
          %862 = sbr.rel (%p860) target = $region108
        $region107: #{xe_transformer_layer.3} parent=103 // pred_region
          %863 = dma.done %s856, 256
        $region108: #{xe_transformer_layer.3} parent=103 // pred_fallthru
          _
        %s864 = sand.u32 %s55, 1
        %s865 = scalar_lea.sflag [#allocation6], %s864
        %s866 = sand.u32 %s89, 1
        %s867 = smul.addr %s866, 16
        %s868 = scalar_lea.vmem [#allocation5], %s867
        // Predicated region
        $region109: #{xe_transformer_layer.3} parent=103 // pred_check
          %p869 = pneg %p102
        $region110: #{xe_transformer_layer.3} parent=103 // pred_check_branch
          %871 = sbr.rel (%p869) target = $region112
        $region111: #{xe_transformer_layer.3} parent=103 // pred_region
          %872 = dma.done %s865, 256
        $region112: #{xe_transformer_layer.3} parent=103 // pred_fallthru
          _
        %s873 = sand.u32 %s55, 1
        %s874 = scalar_lea.sflag [#allocation6], %s873
        %s875 = sand.u32 %s115, 1
        %s876 = smul.addr %s875, 16
        %s877 = scalar_lea.vmem [#allocation7], %s876
        // Predicated region
        $region113: #{xe_transformer_layer.3} parent=103 // pred_check
          %p878 = pneg %p128
        $region114: #{xe_transformer_layer.3} parent=103 // pred_check_branch
          %880 = sbr.rel (%p878) target = $region116
        $region115: #{xe_transformer_layer.3} parent=103 // pred_region
          %881 = dma.done %s874, 256
        $region116: #{xe_transformer_layer.3} parent=103 // pred_fallthru
          _
        // Predicated region
        $region117: #{xe_transformer_layer.3} parent=103 // pred_check
          %p882 = pneg %p149
        $region118: #{xe_transformer_layer.3} parent=103 // pred_check_branch
          %884 = sbr.rel (%p882) target = $region120
        $region119: #{xe_transformer_layer.3} parent=103 // pred_region
          %885 = dma.done [#allocation9], 128
        $region120: #{xe_transformer_layer.3} parent=103 // pred_fallthru
          _
        // Predicated region
        $region121: #{xe_transformer_layer.3} parent=103 // pred_check
          %p886 = pneg %p170
        $region122: #{xe_transformer_layer.3} parent=103 // pred_check_branch
          %888 = sbr.rel (%p886) target = $region124
        $region123: #{xe_transformer_layer.3} parent=103 // pred_region
          %889 = dma.done [#allocation9], 16
        $region124: #{xe_transformer_layer.3} parent=103 // pred_fallthru
          _
        // Predicated region
        $region125: #{xe_transformer_layer.3} parent=103 // pred_check
          %p890 = pneg %p191
        $region126: #{xe_transformer_layer.3} parent=103 // pred_check_branch
          %892 = sbr.rel (%p890) target = $region128
        $region127: #{xe_transformer_layer.3} parent=103 // pred_region
          %893 = dma.done [#allocation12], 16
        $region128: #{xe_transformer_layer.3} parent=103 // pred_fallthru
          _
        // Predicated region
        $region129: #{xe_transformer_layer.3} parent=103 // pred_check
          %p894 = pneg %p212
        $region130: #{xe_transformer_layer.3} parent=103 // pred_check_branch
          %896 = sbr.rel (%p894) target = $region132
        $region131: #{xe_transformer_layer.3} parent=103 // pred_region
          %897 = dma.done [#allocation12], 16
        $region132: #{xe_transformer_layer.3} parent=103 // pred_fallthru
          _
        // Predicated region
        $region133: #{xe_transformer_layer.3} parent=103 // pred_check
          %p898 = pneg %p233
        $region134: #{xe_transformer_layer.3} parent=103 // pred_check_branch
          %900 = sbr.rel (%p898) target = $region136
        $region135: #{xe_transformer_layer.3} parent=103 // pred_region
          %901 = dma.done [#allocation15], 16
        $region136: #{xe_transformer_layer.3} parent=103 // pred_fallthru
          _
        // Predicated region
        $region137: #{xe_transformer_layer.3} parent=103 // pred_check
          %p902 = pneg %p254
        $region138: #{xe_transformer_layer.3} parent=103 // pred_check_branch
          %904 = sbr.rel (%p902) target = $region140
        $region139: #{xe_transformer_layer.3} parent=103 // pred_region
          %905 = dma.done [#allocation15], 512
        $region140: #{xe_transformer_layer.3} parent=103 // pred_fallthru
          _
        // Predicated region
        $region141: #{xe_transformer_layer.3} parent=103 // pred_check
          %p906 = pneg %p275
        $region142: #{xe_transformer_layer.3} parent=103 // pred_check_branch
          %908 = sbr.rel (%p906) target = $region144
        $region143: #{xe_transformer_layer.3} parent=103 // pred_region
          %909 = dma.done [#allocation18], 16
        $region144: #{xe_transformer_layer.3} parent=103 // pred_fallthru
          _
        // Predicated region
        $region145: #{xe_transformer_layer.3} parent=103 // pred_check
          %p910 = pneg %p296
        $region146: #{xe_transformer_layer.3} parent=103 // pred_check_branch
          %912 = sbr.rel (%p910) target = $region148
        $region147: #{xe_transformer_layer.3} parent=103 // pred_region
          %913 = dma.done [#allocation18], 1024
        $region148: #{xe_transformer_layer.3} parent=103 // pred_fallthru
          _
        // Predicated region
        $region149: #{xe_transformer_layer.3} parent=103 // pred_check
          %p914 = pneg %p317
        $region150: #{xe_transformer_layer.3} parent=103 // pred_check_branch
          %916 = sbr.rel (%p914) target = $region152
        $region151: #{xe_transformer_layer.3} parent=103 // pred_region
          %917 = dma.done [#allocation21], 16
        $region152: #{xe_transformer_layer.3} parent=103 // pred_fallthru
          _
        // Predicated region
        $region153: #{xe_transformer_layer.3} parent=103 // pred_check
          %p918 = pneg %p338
        $region154: #{xe_transformer_layer.3} parent=103 // pred_check_branch
          %920 = sbr.rel (%p918) target = $region156
        $region155: #{xe_transformer_layer.3} parent=103 // pred_region
          %921 = dma.done [#allocation21], 16
        $region156: #{xe_transformer_layer.3} parent=103 // pred_fallthru
          _
        // Predicated region
        $region157: #{xe_transformer_layer.3} parent=103 // pred_check
          %p922 = pneg %p359
        $region158: #{xe_transformer_layer.3} parent=103 // pred_check_branch
          %924 = sbr.rel (%p922) target = $region160
        $region159: #{xe_transformer_layer.3} parent=103 // pred_region
          %925 = dma.done [#allocation24], 16
        $region160: #{xe_transformer_layer.3} parent=103 // pred_fallthru
          _
        // Predicated region
        $region161: #{xe_transformer_layer.3} parent=103 // pred_check
          %p926 = pneg %p380
        $region162: #{xe_transformer_layer.3} parent=103 // pred_check_branch
          %928 = sbr.rel (%p926) target = $region164
        $region163: #{xe_transformer_layer.3} parent=103 // pred_region
          %929 = dma.done [#allocation24], 16
        $region164: #{xe_transformer_layer.3} parent=103 // pred_fallthru
          _
        // Predicated region
        $region165: #{xe_transformer_layer.3} parent=103 // pred_check
          %p930 = pneg %p401
        $region166: #{xe_transformer_layer.3} parent=103 // pred_check_branch
          %932 = sbr.rel (%p930) target = $region168
        $region167: #{xe_transformer_layer.3} parent=103 // pred_region
          %933 = dma.done [#allocation27], 16
        $region168: #{xe_transformer_layer.3} parent=103 // pred_fallthru
          _
        // Predicated region
        $region169: #{xe_transformer_layer.3} parent=103 // pred_check
          %p934 = pneg %p422
        $region170: #{xe_transformer_layer.3} parent=103 // pred_check_branch
          %936 = sbr.rel (%p934) target = $region172
        $region171: #{xe_transformer_layer.3} parent=103 // pred_region
          %937 = dma.done [#allocation27], 2048
        $region172: #{xe_transformer_layer.3} parent=103 // pred_fallthru
          _
        // Predicated region
        $region173: #{xe_transformer_layer.3} parent=103 // pred_check
          %p938 = pneg %p443
        $region174: #{xe_transformer_layer.3} parent=103 // pred_check_branch
          %940 = sbr.rel (%p938) target = $region176
        $region175: #{xe_transformer_layer.3} parent=103 // pred_region
          %941 = dma.done [#allocation30], 4096
        $region176: #{xe_transformer_layer.3} parent=103 // pred_fallthru
          _
        // Predicated region
        $region177: #{xe_transformer_layer.3} parent=103 // pred_check
          %p942 = pneg %p464
        $region178: #{xe_transformer_layer.3} parent=103 // pred_check_branch
          %944 = sbr.rel (%p942) target = $region180
        $region179: #{xe_transformer_layer.3} parent=103 // pred_region
          %945 = dma.done [#allocation30], 32
        $region180: #{xe_transformer_layer.3} parent=103 // pred_fallthru
          _
        // Predicated region
        $region181: #{xe_transformer_layer.3} parent=103 // pred_check
          %p946 = pneg %p485
        $region182: #{xe_transformer_layer.3} parent=103 // pred_check_branch
          %948 = sbr.rel (%p946) target = $region184
        $region183: #{xe_transformer_layer.3} parent=103 // pred_region
          %949 = dma.done [#allocation33], 4096
        $region184: #{xe_transformer_layer.3} parent=103 // pred_fallthru
          _
        // Predicated region
        $region185: #{xe_transformer_layer.3} parent=103 // pred_check
          %p950 = pneg %p506
        $region186: #{xe_transformer_layer.3} parent=103 // pred_check_branch
          %952 = sbr.rel (%p950) target = $region188
        $region187: #{xe_transformer_layer.3} parent=103 // pred_region
          %953 = dma.done [#allocation33], 16
        $region188: #{xe_transformer_layer.3} parent=103 // pred_fallthru
          _
        %s954 = sand.u32 %s63, 1
        %s955 = scalar_lea.sflag [#allocation3], %s954
        %s956 = sand.u32 %s63, 1
        %s957 = smul.addr %s956, 16
        %s958 = scalar_lea.vmem [#allocation2], %s957
        %p959 = pneg %p76
        %p960 = pneg %p73
        %s961 = sand.u32 %s55, 1
        %s962 = scalar_lea.sflag [#allocation6], %s961
        %s963 = sand.u32 %s89, 1
        %s964 = smul.addr %s963, 16
        %s965 = scalar_lea.vmem [#allocation5], %s964
        %p966 = pneg %p102
        %p967 = pneg %p99
        %s968 = sand.u32 %s55, 1
        %s969 = scalar_lea.sflag [#allocation6], %s968
        %s970 = sand.u32 %s115, 1
        %s971 = smul.addr %s970, 16
        %s972 = scalar_lea.vmem [#allocation7], %s971
        %p973 = pneg %p128
        %p974 = pneg %p125
        %p975 = pneg %p149
        %p976 = pneg %p146
        %p977 = pneg %p170
        %p978 = pneg %p167
        %p979 = pneg %p191
        %p980 = pneg %p188
        %p981 = pneg %p212
        %p982 = pneg %p209
        %p983 = pneg %p233
        %p984 = pneg %p230
        %p985 = pneg %p254
        %p986 = pneg %p251
        %p987 = pneg %p275
        %p988 = pneg %p272
        %p989 = pneg %p296
        %p990 = pneg %p293
        %p991 = pneg %p317
        %p992 = pneg %p314
        %p993 = pneg %p338
        %p994 = pneg %p335
        %p995 = pneg %p359
        %p996 = pneg %p356
        %p997 = pneg %p380
        %p998 = pneg %p377
        %p999 = pneg %p401
        %p1000 = pneg %p398
        %p1001 = pneg %p422
        %p1002 = pneg %p419
        %p1003 = pneg %p443
        %p1004 = pneg %p440
        %p1005 = pneg %p464
        %p1006 = pneg %p461
        %p1007 = pneg %p485
        %p1008 = pneg %p482
        %p1009 = pneg %p506
        %p1010 = pneg %p503
        %p1011 = pneg %p532
        %p1012 = pneg %p529
        %s1013 = sand.u32 %s519, 1
        %s1014 = scalar_lea.sflag [#allocation4], %s1013
        %s1015 = sand.u32 %s519, 1
        %s1016 = smul.addr %s1015, 16
        %s1017 = scalar_lea.vmem [#allocation35], %s1016
        %p1018 = pneg %p558
        %p1019 = pneg %p555
        %s1020 = sand.u32 %s545, 1
        %s1021 = scalar_lea.sflag [#allocation37], %s1020
        %s1022 = sand.u32 %s545, 1
        %s1023 = smul.addr %s1022, 16
        %s1024 = scalar_lea.vmem [#allocation36], %s1023
        %v1025 = vld [vmem:[%s859] sm:$0xff]
        %v1026 = vld [vmem:[%s859 + $0x8] sm:$0xff]
        %v1027 = vld [vmem:[%s868] sm:$0xff]
        %v1028 = vld [vmem:[%s868 + $0x8] sm:$0xff]
        %v1029 = vadd.f32 %v1025, %v1027
        %v1030 = vadd.f32 %v1026, %v1028
        %v1031 = vld [vmem:[#allocation10] sm:$0x1]
        %v1032 = vld [vmem:[#allocation11] sm:$0x1]
        %vm1033 = vcmask 261120
        %v1034 = vsel %vm1033, %v1029, 0.0
        %1035 = vadd.xlane.f32.xlu0 %v1034
        %v1036 = vpop.xlane.xlu0 %1035
        %v1037 = vsel %vm1033, %v1030, 0.0
        %1038 = vadd.xlane.f32.xlu0 %v1037
        %v1039 = vpop.xlane.xlu0 %1038
        %v1040 = vrcp.pop 32.0
        %v1041 = vmul.f32 %v1036, %v1040
        %v1042 = vmul.f32 %v1039, %v1040
        %v1043 = vsub.f32 %v1029, %v1041
        %v1044 = vsub.f32 %v1030, %v1042
        %v1045 = vmul.f32 %v1043, %v1043
        %v1046 = vmul.f32 %v1044, %v1044
        %v1047 = vsel %vm1033, %v1045, 0.0
        %1048 = vadd.xlane.f32.xlu0 %v1047
        %v1049 = vpop.xlane.xlu0 %1048
        %v1050 = vsel %vm1033, %v1046, 0.0
        %1051 = vadd.xlane.f32.xlu0 %v1050
        %v1052 = vpop.xlane.xlu0 %1051
        %v1053 = vmul.f32 %v1049, %v1040
        %v1054 = vmul.f32 %v1052, %v1040
        %v1055 = vadd.f32 %v1053, 1e-05
        %v1056 = vadd.f32 %v1054, 1e-05
        %v1057 = vrsqrt.pop %v1055
        %v1058 = vrsqrt.pop %v1056
        %v1059 = vmul.f32 %v1043, %v1057
        %v1060 = vmul.f32 %v1044, %v1058
        %v1062 = vlaneseq
        %v1063 = vshrl.u32 %v1062, 7
        %v1064 = vsub.s32 0, %v1063
        %v1065 = vrot.slane %v1031, %v1064
        %v1067 = vmul.f32 %v1059, %v1065
        %v1068 = vmul.f32 %v1060, %v1065
        %v1070 = vlaneseq
        %v1071 = vshrl.u32 %v1070, 7
        %v1072 = vsub.s32 0, %v1071
        %v1073 = vrot.slane %v1032, %v1072
        %v1075 = vadd.f32 %v1067, %v1073
        %v1076 = vadd.f32 %v1068, %v1073
        %v1077 = vld [vmem:[#allocation16] sm:$0xff]
        %v1078 = vld [vmem:[#allocation16 + $0x8] sm:$0xff]
        %v1079 = vld [vmem:[#allocation16 + $0x10] sm:$0xff]
        %v1080 = vld [vmem:[#allocation16 + $0x18] sm:$0xff]
        %v1081 = vld [vmem:[#allocation17] sm:$0x1]
        %v1083 = vlaneseq
        %v1084 = vshrl.u32 %v1083, 7
        %v1085 = vsub.s32 0, %v1084
        %v1086 = vrot.slane %v1081, %v1085
        %v1089 = vsel %vm1033, %v1075, 0
        %v1092 = vsel %vm1033, %v1076, 0
        %1094 = vmatprep.subr.mxu0 0.0
        %1095 = vmatpush1.msra.mxu0 %v1077
        %1096 = vmatprep.subr.mxu0 0.0
        %1097 = vmatpush1.msra.mxu0 %v1078
        %1098 = vmatprep.subr.mxu0 0.0
        %1099 = vmatpush1.msra.mxu0 %v1079
        %1100 = vmatprep.subr.mxu0 0.0
        %1101 = vmatpush1.msra.mxu0 %v1080
        %1102 = vmatprep.subr.mxu0 0.0
        %1103 = vmatpush1.msra.mxu0 0.0
        %1104 = vmatprep.subr.mxu0 0.0
        %1105 = vmatpush1.msra.mxu0 0.0
        %1106 = vmatprep.subr.mxu0 0.0
        %1107 = vmatpush1.msra.mxu0 0.0
        %1108 = vmatprep.subr.mxu0 0.0
        %1109 = vmatpush1.msra.mxu0 0.0
        %1110 = vmatprep.subr.mxu0 0.0
        %1111 = vmatpush1.msra.mxu0 0.0
        %1112 = vmatprep.subr.mxu0 0.0
        %1113 = vmatpush1.msra.mxu0 0.0
        %1114 = vmatprep.subr.mxu0 0.0
        %1115 = vmatpush1.msra.mxu0 0.0
        %1116 = vmatprep.subr.mxu0 0.0
        %1117 = vmatpush1.msra.mxu0 0.0
        %1118 = vmatprep.subr.mxu0 0.0
        %1119 = vmatpush1.msra.mxu0 0.0
        %1120 = vmatprep.subr.mxu0 0.0
        %1121 = vmatpush1.msra.mxu0 0.0
        %1122 = vmatprep.subr.mxu0 0.0
        %1123 = vmatpush1.msra.mxu0 0.0
        %1124 = vmatprep.subr.mxu0 0.0
        %1125 = vmatpush1.msra.mxu0 0.0
        %1126 = vmatprep.subr.mxu0 0.0
        %1127 = vmatpush1.msra.mxu0 0.0
        %1128 = vmatprep.subr.mxu0 0.0
        %1129 = vmatpush1.msra.mxu0 0.0
        %1130 = vmatprep.subr.mxu0 0.0
        %1131 = vmatpush1.msra.mxu0 0.0
        %1132 = vmatprep.subr.mxu0 0.0
        %1133 = vmatpush1.msra.mxu0 0.0
        %1134 = vmatprep.subr.mxu0 0.0
        %1135 = vmatpush1.msra.mxu0 0.0
        %1136 = vmatprep.subr.mxu0 0.0
        %1137 = vmatpush1.msra.mxu0 0.0
        %1138 = vmatprep.subr.mxu0 0.0
        %1139 = vmatpush1.msra.mxu0 0.0
        %1140 = vmatprep.subr.mxu0 0.0
        %1141 = vmatpush1.msra.mxu0 0.0
        %1142 = vmatprep.subr.mxu0 0.0
        %1143 = vmatpush1.msra.mxu0 0.0
        %1144 = vmatprep.subr.mxu0 0.0
        %1145 = vmatpush1.msra.mxu0 0.0
        %1146 = vmatprep.subr.mxu0 0.0
        %1147 = vmatpush1.msra.mxu0 0.0
        %1148 = vmatprep.subr.mxu0 0.0
        %1149 = vmatpush1.msra.mxu0 0.0
        %1150 = vmatprep.subr.mxu0 0.0
        %1151 = vmatpush1.msra.mxu0 0.0
        %1152 = vmatprep.subr.mxu0 0.0
        %1153 = vmatpush1.msra.mxu0 0.0
        %1154 = vmatprep.subr.mxu0 0.0
        %1155 = vmatpush1.msra.mxu0 0.0
        %1156 = vmatprep.subr.mxu0 0.0
        %1157 = vmatpush1.msra.mxu0 0.0
        %1158 = vmatprep.mubr.f32.mxu0 0.0
        %1159 = vmatmul.mubr.f32.gmra.mrb[0].mxu0 %v1089
        %v1160 = vpop.f32.mrb[0].mxu0
        %v1161 = vadd.f32 %v1086, %v1160
        %v1162 = vpop.f32.mrb[0].mxu0
        %1163 = vmatprep.mubr.f32.mxu0 0.0
        %1164 = vmatmul.mubr.f32.gmra.mrb[0].mxu0 %v1092
        %v1165 = vpop.f32.mrb[0].mxu0
        %v1166 = vadd.f32 %v1086, %v1165
        %v1167 = vpop.f32.mrb[0].mxu0
        %1168 = vdwg.mxu0
        %v1169 = vmax.f32 %v1161, 0.0
        %v1170 = vmax.f32 %v1166, 0.0
        %v1171 = vld [vmem:[#allocation19] sm:$0xff]
        %v1172 = vld [vmem:[#allocation19 + $0x8] sm:$0xff]
        %v1173 = vld [vmem:[#allocation19 + $0x10] sm:$0xff]
        %v1174 = vld [vmem:[#allocation19 + $0x18] sm:$0xff]
        %v1175 = vld [vmem:[#allocation19 + $0x20] sm:$0xff]
        %v1176 = vld [vmem:[#allocation19 + $0x28] sm:$0xff]
        %v1177 = vld [vmem:[#allocation19 + $0x30] sm:$0xff]
        %v1178 = vld [vmem:[#allocation19 + $0x38] sm:$0xff]
        %vm1179 = vcmask 523264
        %v1181 = vsel %vm1179, %v1169, 0
        %v1184 = vsel %vm1179, %v1170, 0
        %1186 = vmatprep.subr.mxu0 0.0
        %1187 = vmatpush1.msra.mxu0 %v1171
        %1188 = vmatprep.subr.mxu0 0.0
        %1189 = vmatpush1.msra.mxu0 %v1172
        %1190 = vmatprep.subr.mxu0 0.0
        %1191 = vmatpush1.msra.mxu0 %v1173
        %1192 = vmatprep.subr.mxu0 0.0
        %1193 = vmatpush1.msra.mxu0 %v1174
        %1194 = vmatprep.subr.mxu0 0.0
        %1195 = vmatpush1.msra.mxu0 %v1175
        %1196 = vmatprep.subr.mxu0 0.0
        %1197 = vmatpush1.msra.mxu0 %v1176
        %1198 = vmatprep.subr.mxu0 0.0
        %1199 = vmatpush1.msra.mxu0 %v1177
        %1200 = vmatprep.subr.mxu0 0.0
        %1201 = vmatpush1.msra.mxu0 %v1178
        %1202 = vmatprep.subr.mxu0 0.0
        %1203 = vmatpush1.msra.mxu0 0.0
        %1204 = vmatprep.subr.mxu0 0.0
        %1205 = vmatpush1.msra.mxu0 0.0
        %1206 = vmatprep.subr.mxu0 0.0
        %1207 = vmatpush1.msra.mxu0 0.0
        %1208 = vmatprep.subr.mxu0 0.0
        %1209 = vmatpush1.msra.mxu0 0.0
        %1210 = vmatprep.subr.mxu0 0.0
        %1211 = vmatpush1.msra.mxu0 0.0
        %1212 = vmatprep.subr.mxu0 0.0
        %1213 = vmatpush1.msra.mxu0 0.0
        %1214 = vmatprep.subr.mxu0 0.0
        %1215 = vmatpush1.msra.mxu0 0.0
        %1216 = vmatprep.subr.mxu0 0.0
        %1217 = vmatpush1.msra.mxu0 0.0
        %1218 = vmatprep.subr.mxu0 0.0
        %1219 = vmatpush1.msra.mxu0 0.0
        %1220 = vmatprep.subr.mxu0 0.0
        %1221 = vmatpush1.msra.mxu0 0.0
        %1222 = vmatprep.subr.mxu0 0.0
        %1223 = vmatpush1.msra.mxu0 0.0
        %1224 = vmatprep.subr.mxu0 0.0
        %1225 = vmatpush1.msra.mxu0 0.0
        %1226 = vmatprep.subr.mxu0 0.0
        %1227 = vmatpush1.msra.mxu0 0.0
        %1228 = vmatprep.subr.mxu0 0.0
        %1229 = vmatpush1.msra.mxu0 0.0
        %1230 = vmatprep.subr.mxu0 0.0
        %1231 = vmatpush1.msra.mxu0 0.0
        %1232 = vmatprep.subr.mxu0 0.0
        %1233 = vmatpush1.msra.mxu0 0.0
        %1234 = vmatprep.subr.mxu0 0.0
        %1235 = vmatpush1.msra.mxu0 0.0
        %1236 = vmatprep.subr.mxu0 0.0
        %1237 = vmatpush1.msra.mxu0 0.0
        %1238 = vmatprep.subr.mxu0 0.0
        %1239 = vmatpush1.msra.mxu0 0.0
        %1240 = vmatprep.subr.mxu0 0.0
        %1241 = vmatpush1.msra.mxu0 0.0
        %1242 = vmatprep.subr.mxu0 0.0
        %1243 = vmatpush1.msra.mxu0 0.0
        %1244 = vmatprep.subr.mxu0 0.0
        %1245 = vmatpush1.msra.mxu0 0.0
        %1246 = vmatprep.subr.mxu0 0.0
        %1247 = vmatpush1.msra.mxu0 0.0
        %1248 = vmatprep.subr.mxu0 0.0
        %1249 = vmatpush1.msra.mxu0 0.0
        %1250 = vmatprep.mubr.f32.mxu0 0.0
        %1251 = vmatmul.mubr.f32.gmra.mrb[0].mxu0 %v1181
        %v1252 = vpop.f32.mrb[0].mxu0
        %v1253 = vadd.f32 0.0, %v1252
        %v1254 = vpop.f32.mrb[0].mxu0
        %1255 = vmatprep.mubr.f32.mxu0 0.0
        %1256 = vmatmul.mubr.f32.gmra.mrb[0].mxu0 %v1184
        %v1257 = vpop.f32.mrb[0].mxu0
        %v1258 = vadd.f32 0.0, %v1257
        %v1259 = vpop.f32.mrb[0].mxu0
        %1260 = vdwg.mxu0
        %v1261 = vadd.f32 %v1075, %v1253
        %v1262 = vadd.f32 %v1076, %v1258
        %v1263 = vld [vmem:[#allocation20] sm:$0x1]
        %v1265 = vlaneseq
        %v1266 = vshrl.u32 %v1265, 7
        %v1267 = vsub.s32 0, %v1266
        %v1268 = vrot.slane %v1263, %v1267
        %v1270 = vadd.f32 %v1261, %v1268
        %v1271 = vadd.f32 %v1262, %v1268
        %v1272 = vld [vmem:[#allocation13] sm:$0x1]
        %v1273 = vld [vmem:[#allocation14] sm:$0x1]
        %v1274 = vsel %vm1033, %v1270, 0.0
        %1275 = vadd.xlane.f32.xlu0 %v1274
        %v1276 = vpop.xlane.xlu0 %1275
        %v1277 = vsel %vm1033, %v1271, 0.0
        %1278 = vadd.xlane.f32.xlu0 %v1277
        %v1279 = vpop.xlane.xlu0 %1278
        %v1280 = vmul.f32 %v1276, %v1040
        %v1281 = vmul.f32 %v1279, %v1040
        %v1282 = vsub.f32 %v1270, %v1280
        %v1283 = vsub.f32 %v1271, %v1281
        %v1284 = vmul.f32 %v1282, %v1282
        %v1285 = vmul.f32 %v1283, %v1283
        %v1286 = vsel %vm1033, %v1284, 0.0
        %1287 = vadd.xlane.f32.xlu0 %v1286
        %v1288 = vpop.xlane.xlu0 %1287
        %v1289 = vsel %vm1033, %v1285, 0.0
        %1290 = vadd.xlane.f32.xlu0 %v1289
        %v1291 = vpop.xlane.xlu0 %1290
        %v1292 = vmul.f32 %v1288, %v1040
        %v1293 = vmul.f32 %v1291, %v1040
        %v1294 = vadd.f32 %v1292, 1e-05
        %v1295 = vadd.f32 %v1293, 1e-05
        %v1296 = vrsqrt.pop %v1294
        %v1297 = vrsqrt.pop %v1295
        %v1298 = vmul.f32 %v1282, %v1296
        %v1299 = vmul.f32 %v1283, %v1297
        %v1301 = vlaneseq
        %v1302 = vshrl.u32 %v1301, 7
        %v1303 = vsub.s32 0, %v1302
        %v1304 = vrot.slane %v1272, %v1303
        %v1306 = vmul.f32 %v1298, %v1304
        %v1307 = vmul.f32 %v1299, %v1304
        %v1309 = vlaneseq
        %v1310 = vshrl.u32 %v1309, 7
        %v1311 = vsub.s32 0, %v1310
        %v1312 = vrot.slane %v1273, %v1311
        %v1314 = vadd.f32 %v1306, %v1312
        %v1315 = vadd.f32 %v1307, %v1312
        %1316 = vst.msk [vmem:[%s1017] sm:$0xff] %vm1033, %v1314
        %1317 = vst.msk [vmem:[%s1017 + $0x8] sm:$0xff] %vm1033, %v1315
        %v1318 = vld [vmem:[#allocation28] sm:$0xff]
        %v1319 = vld [vmem:[#allocation28 + $0x8] sm:$0xff]
        %v1320 = vld [vmem:[#allocation28 + $0x10] sm:$0xff]
        %v1321 = vld [vmem:[#allocation28 + $0x18] sm:$0xff]
        %v1322 = vld [vmem:[#allocation28 + $0x20] sm:$0xff]
        %v1323 = vld [vmem:[#allocation28 + $0x28] sm:$0xff]
        %v1324 = vld [vmem:[#allocation28 + $0x30] sm:$0xff]
        %v1325 = vld [vmem:[#allocation28 + $0x38] sm:$0xff]
        %v1326 = vld [vmem:[#allocation28 + $0x40] sm:$0xff]
        %v1327 = vld [vmem:[#allocation28 + $0x48] sm:$0xff]
        %v1328 = vld [vmem:[#allocation28 + $0x50] sm:$0xff]
        %v1329 = vld [vmem:[#allocation28 + $0x58] sm:$0xff]
        %v1330 = vld [vmem:[#allocation28 + $0x60] sm:$0xff]
        %v1331 = vld [vmem:[#allocation28 + $0x68] sm:$0xff]
        %v1332 = vld [vmem:[#allocation28 + $0x70] sm:$0xff]
        %v1333 = vld [vmem:[#allocation28 + $0x78] sm:$0xff]
        %v1334 = vld [vmem:[%s877] sm:$0xff]
        %v1335 = vld [vmem:[%s877 + $0x8] sm:$0xff]
        %v1336 = vld [vmem:[#allocation8] sm:$0xff]
        %v1337 = vadd.f32 %v1334, %v1336
        %v1338 = vadd.f32 %v1335, %v1336
        %v1339 = vld [vmem:[#allocation22] sm:$0x1]
        %v1340 = vld [vmem:[#allocation23] sm:$0x1]
        %1341 = vmatprep.subr.mxu0 0.0
        %1342 = vmatpush1.msra.mxu0 %v1318
        %1343 = vmatprep.subr.mxu0 0.0
        %1344 = vmatpush1.msra.mxu0 %v1319
        %1345 = vmatprep.subr.mxu0 0.0
        %1346 = vmatpush1.msra.mxu0 %v1320
        %1347 = vmatprep.subr.mxu0 0.0
        %1348 = vmatpush1.msra.mxu0 %v1321
        %1349 = vmatprep.subr.mxu0 0.0
        %1350 = vmatpush1.msra.mxu0 %v1322
        %1351 = vmatprep.subr.mxu0 0.0
        %1352 = vmatpush1.msra.mxu0 %v1323
        %1353 = vmatprep.subr.mxu0 0.0
        %1354 = vmatpush1.msra.mxu0 %v1324
        %1355 = vmatprep.subr.mxu0 0.0
        %1356 = vmatpush1.msra.mxu0 %v1325
        %1357 = vmatprep.subr.mxu0 0.0
        %1358 = vmatpush1.msra.mxu0 %v1326
        %1359 = vmatprep.subr.mxu0 0.0
        %1360 = vmatpush1.msra.mxu0 %v1327
        %1361 = vmatprep.subr.mxu0 0.0
        %1362 = vmatpush1.msra.mxu0 %v1328
        %1363 = vmatprep.subr.mxu0 0.0
        %1364 = vmatpush1.msra.mxu0 %v1329
        %1365 = vmatprep.subr.mxu0 0.0
        %1366 = vmatpush1.msra.mxu0 %v1330
        %1367 = vmatprep.subr.mxu0 0.0
        %1368 = vmatpush1.msra.mxu0 %v1331
        %1369 = vmatprep.subr.mxu0 0.0
        %1370 = vmatpush1.msra.mxu0 %v1332
        %1371 = vmatprep.subr.mxu0 0.0
        %1372 = vmatpush1.msra.mxu0 %v1333
        %1373 = vmatprep.subr.mxu0 0.0
        %1374 = vmatpush1.msra.mxu0 0.0
        %1375 = vmatprep.subr.mxu0 0.0
        %1376 = vmatpush1.msra.mxu0 0.0
        %1377 = vmatprep.subr.mxu0 0.0
        %1378 = vmatpush1.msra.mxu0 0.0
        %1379 = vmatprep.subr.mxu0 0.0
        %1380 = vmatpush1.msra.mxu0 0.0
        %1381 = vmatprep.subr.mxu0 0.0
        %1382 = vmatpush1.msra.mxu0 0.0
        %1383 = vmatprep.subr.mxu0 0.0
        %1384 = vmatpush1.msra.mxu0 0.0
        %1385 = vmatprep.subr.mxu0 0.0
        %1386 = vmatpush1.msra.mxu0 0.0
        %1387 = vmatprep.subr.mxu0 0.0
        %1388 = vmatpush1.msra.mxu0 0.0
        %1389 = vmatprep.subr.mxu0 0.0
        %1390 = vmatpush1.msra.mxu0 0.0
        %1391 = vmatprep.subr.mxu0 0.0
        %1392 = vmatpush1.msra.mxu0 0.0
        %1393 = vmatprep.subr.mxu0 0.0
        %1394 = vmatpush1.msra.mxu0 0.0
        %1395 = vmatprep.subr.mxu0 0.0
        %1396 = vmatpush1.msra.mxu0 0.0
        %1397 = vmatprep.subr.mxu0 0.0
        %1398 = vmatpush1.msra.mxu0 0.0
        %1399 = vmatprep.subr.mxu0 0.0
        %1400 = vmatpush1.msra.mxu0 0.0
        %1401 = vmatprep.subr.mxu0 0.0
        %1402 = vmatpush1.msra.mxu0 0.0
        %1403 = vmatprep.subr.mxu0 0.0
        %1404 = vmatpush1.msra.mxu0 0.0
        %1405 = vmatprep.mubr.f32.mxu0 0.0
        %1406 = vmatmul.mubr.f32.gmra.mrb[0].mxu0 %v1337
        %v1407 = vpop.f32.mrb[0].mxu0
        %v1408 = vadd.f32 0.0, %v1407
        %v1409 = vpop.f32.mrb[0].mxu0
        %1410 = vmatprep.mubr.f32.mxu0 0.0
        %1411 = vmatmul.mubr.f32.gmra.mrb[0].mxu0 %v1338
        %v1412 = vpop.f32.mrb[0].mxu0
        %v1413 = vadd.f32 0.0, %v1412
        %v1414 = vpop.f32.mrb[0].mxu0
        %1415 = vdwg.mxu0
        %v1416 = vsub.f32 %v1337, %v1408
        %v1417 = vsub.f32 %v1338, %v1413
        %v1418 = vmul.f32 %v1416, %v1416
        %v1419 = vmul.f32 %v1417, %v1417
        %1420 = vmatprep.subr.mxu0 0.0
        %1421 = vmatpush1.msra.mxu0 %v1318
        %1422 = vmatprep.subr.mxu0 0.0
        %1423 = vmatpush1.msra.mxu0 %v1319
        %1424 = vmatprep.subr.mxu0 0.0
        %1425 = vmatpush1.msra.mxu0 %v1320
        %1426 = vmatprep.subr.mxu0 0.0
        %1427 = vmatpush1.msra.mxu0 %v1321
        %1428 = vmatprep.subr.mxu0 0.0
        %1429 = vmatpush1.msra.mxu0 %v1322
        %1430 = vmatprep.subr.mxu0 0.0
        %1431 = vmatpush1.msra.mxu0 %v1323
        %1432 = vmatprep.subr.mxu0 0.0
        %1433 = vmatpush1.msra.mxu0 %v1324
        %1434 = vmatprep.subr.mxu0 0.0
        %1435 = vmatpush1.msra.mxu0 %v1325
        %1436 = vmatprep.subr.mxu0 0.0
        %1437 = vmatpush1.msra.mxu0 %v1326
        %1438 = vmatprep.subr.mxu0 0.0
        %1439 = vmatpush1.msra.mxu0 %v1327
        %1440 = vmatprep.subr.mxu0 0.0
        %1441 = vmatpush1.msra.mxu0 %v1328
        %1442 = vmatprep.subr.mxu0 0.0
        %1443 = vmatpush1.msra.mxu0 %v1329
        %1444 = vmatprep.subr.mxu0 0.0
        %1445 = vmatpush1.msra.mxu0 %v1330
        %1446 = vmatprep.subr.mxu0 0.0
        %1447 = vmatpush1.msra.mxu0 %v1331
        %1448 = vmatprep.subr.mxu0 0.0
        %1449 = vmatpush1.msra.mxu0 %v1332
        %1450 = vmatprep.subr.mxu0 0.0
        %1451 = vmatpush1.msra.mxu0 %v1333
        %1452 = vmatprep.subr.mxu0 0.0
        %1453 = vmatpush1.msra.mxu0 0.0
        %1454 = vmatprep.subr.mxu0 0.0
        %1455 = vmatpush1.msra.mxu0 0.0
        %1456 = vmatprep.subr.mxu0 0.0
        %1457 = vmatpush1.msra.mxu0 0.0
        %1458 = vmatprep.subr.mxu0 0.0
        %1459 = vmatpush1.msra.mxu0 0.0
        %1460 = vmatprep.subr.mxu0 0.0
        %1461 = vmatpush1.msra.mxu0 0.0
        %1462 = vmatprep.subr.mxu0 0.0
        %1463 = vmatpush1.msra.mxu0 0.0
        %1464 = vmatprep.subr.mxu0 0.0
        %1465 = vmatpush1.msra.mxu0 0.0
        %1466 = vmatprep.subr.mxu0 0.0
        %1467 = vmatpush1.msra.mxu0 0.0
        %1468 = vmatprep.subr.mxu0 0.0
        %1469 = vmatpush1.msra.mxu0 0.0
        %1470 = vmatprep.subr.mxu0 0.0
        %1471 = vmatpush1.msra.mxu0 0.0
        %1472 = vmatprep.subr.mxu0 0.0
        %1473 = vmatpush1.msra.mxu0 0.0
        %1474 = vmatprep.subr.mxu0 0.0
        %1475 = vmatpush1.msra.mxu0 0.0
        %1476 = vmatprep.subr.mxu0 0.0
        %1477 = vmatpush1.msra.mxu0 0.0
        %1478 = vmatprep.subr.mxu0 0.0
        %1479 = vmatpush1.msra.mxu0 0.0
        %1480 = vmatprep.subr.mxu0 0.0
        %1481 = vmatpush1.msra.mxu0 0.0
        %1482 = vmatprep.subr.mxu0 0.0
        %1483 = vmatpush1.msra.mxu0 0.0
        %1484 = vmatprep.mubr.f32.mxu0 0.0
        %1485 = vmatmul.mubr.f32.gmra.mrb[0].mxu0 %v1418
        %v1486 = vpop.f32.mrb[0].mxu0
        %v1487 = vadd.f32 1e-05, %v1486
        %v1488 = vpop.f32.mrb[0].mxu0
        %1489 = vmatprep.mubr.f32.mxu0 0.0
        %1490 = vmatmul.mubr.f32.gmra.mrb[0].mxu0 %v1419
        %v1491 = vpop.f32.mrb[0].mxu0
        %v1492 = vadd.f32 1e-05, %v1491
        %v1493 = vpop.f32.mrb[0].mxu0
        %1494 = vdwg.mxu0
        %v1495 = vrsqrt.pop %v1487
        %v1496 = vrsqrt.pop %v1492
        %v1497 = vmul.f32 %v1416, %v1495
        %v1498 = vmul.f32 %v1417, %v1496
        %v1500 = vlaneseq
        %v1501 = vshrl.u32 %v1500, 7
        %v1502 = vsub.s32 0, %v1501
        %v1503 = vrot.slane %v1339, %v1502
        %v1505 = vmul.f32 %v1497, %v1503
        %v1506 = vmul.f32 %v1498, %v1503
        %v1508 = vlaneseq
        %v1509 = vshrl.u32 %v1508, 7
        %v1510 = vsub.s32 0, %v1509
        %v1511 = vrot.slane %v1340, %v1510
        %v1513 = vadd.f32 %v1505, %v1511
        %v1514 = vadd.f32 %v1506, %v1511
        %v1515 = vld [vmem:[#allocation29] sm:$0xff]
        %v1516 = vld [vmem:[#allocation29 + $0x8] sm:$0xff]
        %v1517 = vld [vmem:[#allocation29 + $0x10] sm:$0xff]
        %v1518 = vld [vmem:[#allocation29 + $0x18] sm:$0xff]
        %v1519 = vld [vmem:[#allocation29 + $0x20] sm:$0xff]
        %v1520 = vld [vmem:[#allocation29 + $0x28] sm:$0xff]
        %v1521 = vld [vmem:[#allocation29 + $0x30] sm:$0xff]
        %v1522 = vld [vmem:[#allocation29 + $0x38] sm:$0xff]
        %v1523 = vld [vmem:[#allocation29 + $0x40] sm:$0xff]
        %v1524 = vld [vmem:[#allocation29 + $0x48] sm:$0xff]
        %v1525 = vld [vmem:[#allocation29 + $0x50] sm:$0xff]
        %v1526 = vld [vmem:[#allocation29 + $0x58] sm:$0xff]
        %v1527 = vld [vmem:[#allocation29 + $0x60] sm:$0xff]
        %v1528 = vld [vmem:[#allocation29 + $0x68] sm:$0xff]
        %v1529 = vld [vmem:[#allocation29 + $0x70] sm:$0xff]
        %v1530 = vld [vmem:[#allocation29 + $0x78] sm:$0xff]
        %v1531 = vld [vmem:[#allocation29 + $0x80] sm:$0xff]
        %v1532 = vld [vmem:[#allocation29 + $0x88] sm:$0xff]
        %v1533 = vld [vmem:[#allocation29 + $0x90] sm:$0xff]
        %v1534 = vld [vmem:[#allocation29 + $0x98] sm:$0xff]
        %v1535 = vld [vmem:[#allocation29 + $0xa0] sm:$0xff]
        %v1536 = vld [vmem:[#allocation29 + $0xa8] sm:$0xff]
        %v1537 = vld [vmem:[#allocation29 + $0xb0] sm:$0xff]
        %v1538 = vld [vmem:[#allocation29 + $0xb8] sm:$0xff]
        %v1539 = vld [vmem:[#allocation29 + $0xc0] sm:$0xff]
        %v1540 = vld [vmem:[#allocation29 + $0xc8] sm:$0xff]
        %v1541 = vld [vmem:[#allocation29 + $0xd0] sm:$0xff]
        %v1542 = vld [vmem:[#allocation29 + $0xd8] sm:$0xff]
        %v1543 = vld [vmem:[#allocation29 + $0xe0] sm:$0xff]
        %v1544 = vld [vmem:[#allocation29 + $0xe8] sm:$0xff]
        %v1545 = vld [vmem:[#allocation29 + $0xf0] sm:$0xff]
        %v1546 = vld [vmem:[#allocation29 + $0xf8] sm:$0xff]
        %v1547 = vld [vmem:[#allocation31] sm:$0x3]
        %v1549 = vlaneseq
        %v1550 = vshrl.u32 %v1549, 7
        %v1551 = vsub.s32 0, %v1550
        %v1552 = vrot.slane %v1547, %v1551
        %v1553 = vlaneseq
        %v1554 = vshrl.u32 %v1553, 7
        %v1555 = vsub.s32 1, %v1554
        %v1556 = vrot.slane %v1547, %v1555
        %1559 = vmatprep.subr.mxu0 %v1516
        %1560 = vmatpush1.msra.mxu0 %v1515
        %1561 = vmatprep.subr.mxu0 %v1518
        %1562 = vmatpush1.msra.mxu0 %v1517
        %1563 = vmatprep.subr.mxu0 %v1520
        %1564 = vmatpush1.msra.mxu0 %v1519
        %1565 = vmatprep.subr.mxu0 %v1522
        %1566 = vmatpush1.msra.mxu0 %v1521
        %1567 = vmatprep.subr.mxu0 %v1524
        %1568 = vmatpush1.msra.mxu0 %v1523
        %1569 = vmatprep.subr.mxu0 %v1526
        %1570 = vmatpush1.msra.mxu0 %v1525
        %1571 = vmatprep.subr.mxu0 %v1528
        %1572 = vmatpush1.msra.mxu0 %v1527
        %1573 = vmatprep.subr.mxu0 %v1530
        %1574 = vmatpush1.msra.mxu0 %v1529
        %1575 = vmatprep.subr.mxu0 %v1532
        %1576 = vmatpush1.msra.mxu0 %v1531
        %1577 = vmatprep.subr.mxu0 %v1534
        %1578 = vmatpush1.msra.mxu0 %v1533
        %1579 = vmatprep.subr.mxu0 %v1536
        %1580 = vmatpush1.msra.mxu0 %v1535
        %1581 = vmatprep.subr.mxu0 %v1538
        %1582 = vmatpush1.msra.mxu0 %v1537
        %1583 = vmatprep.subr.mxu0 %v1540
        %1584 = vmatpush1.msra.mxu0 %v1539
        %1585 = vmatprep.subr.mxu0 %v1542
        %1586 = vmatpush1.msra.mxu0 %v1541
        %1587 = vmatprep.subr.mxu0 %v1544
        %1588 = vmatpush1.msra.mxu0 %v1543
        %1589 = vmatprep.subr.mxu0 %v1546
        %1590 = vmatpush1.msra.mxu0 %v1545
        %1591 = vmatprep.subr.mxu0 0.0
        %1592 = vmatpush1.msra.mxu0 0.0
        %1593 = vmatprep.subr.mxu0 0.0
        %1594 = vmatpush1.msra.mxu0 0.0
        %1595 = vmatprep.subr.mxu0 0.0
        %1596 = vmatpush1.msra.mxu0 0.0
        %1597 = vmatprep.subr.mxu0 0.0
        %1598 = vmatpush1.msra.mxu0 0.0
        %1599 = vmatprep.subr.mxu0 0.0
        %1600 = vmatpush1.msra.mxu0 0.0
        %1601 = vmatprep.subr.mxu0 0.0
        %1602 = vmatpush1.msra.mxu0 0.0
        %1603 = vmatprep.subr.mxu0 0.0
        %1604 = vmatpush1.msra.mxu0 0.0
        %1605 = vmatprep.subr.mxu0 0.0
        %1606 = vmatpush1.msra.mxu0 0.0
        %1607 = vmatprep.subr.mxu0 0.0
        %1608 = vmatpush1.msra.mxu0 0.0
        %1609 = vmatprep.subr.mxu0 0.0
        %1610 = vmatpush1.msra.mxu0 0.0
        %1611 = vmatprep.subr.mxu0 0.0
        %1612 = vmatpush1.msra.mxu0 0.0
        %1613 = vmatprep.subr.mxu0 0.0
        %1614 = vmatpush1.msra.mxu0 0.0
        %1615 = vmatprep.subr.mxu0 0.0
        %1616 = vmatpush1.msra.mxu0 0.0
        %1617 = vmatprep.subr.mxu0 0.0
        %1618 = vmatpush1.msra.mxu0 0.0
        %1619 = vmatprep.subr.mxu0 0.0
        %1620 = vmatpush1.msra.mxu0 0.0
        %1621 = vmatprep.subr.mxu0 0.0
        %1622 = vmatpush1.msra.mxu0 0.0
        %1623 = vmatprep.mubr.f32.mxu0 0.0
        %1624 = vmatmul.mubr.f32.gmra.mrb[0].mxu0 %v1513
        %v1625 = vpop.f32.mrb[0].mxu0
        %v1626 = vadd.f32 %v1552, %v1625
        %v1627 = vpop.f32.mrb[0].mxu0
        %v1628 = vadd.f32 %v1556, %v1627
        %1629 = vmatprep.mubr.f32.mxu0 0.0
        %1630 = vmatmul.mubr.f32.gmra.mrb[0].mxu0 %v1514
        %v1631 = vpop.f32.mrb[0].mxu0
        %v1632 = vadd.f32 %v1552, %v1631
        %v1633 = vpop.f32.mrb[0].mxu0
        %v1634 = vadd.f32 %v1556, %v1633
        %1635 = vdwg.mxu0
        %v1636 = vmax.f32 %v1626, 0.0
        %v1637 = vmax.f32 %v1628, 0.0
        %v1638 = vmax.f32 %v1632, 0.0
        %v1639 = vmax.f32 %v1634, 0.0
        %v1640 = vld [vmem:[#allocation32] sm:$0xff]
        %v1641 = vld [vmem:[#allocation32 + $0x8] sm:$0xff]
        %v1642 = vld [vmem:[#allocation32 + $0x10] sm:$0xff]
        %v1643 = vld [vmem:[#allocation32 + $0x18] sm:$0xff]
        %v1644 = vld [vmem:[#allocation32 + $0x20] sm:$0xff]
        %v1645 = vld [vmem:[#allocation32 + $0x28] sm:$0xff]
        %v1646 = vld [vmem:[#allocation32 + $0x30] sm:$0xff]
        %v1647 = vld [vmem:[#allocation32 + $0x38] sm:$0xff]
        %v1648 = vld [vmem:[#allocation32 + $0x40] sm:$0xff]
        %v1649 = vld [vmem:[#allocation32 + $0x48] sm:$0xff]
        %v1650 = vld [vmem:[#allocation32 + $0x50] sm:$0xff]
        %v1651 = vld [vmem:[#allocation32 + $0x58] sm:$0xff]
        %v1652 = vld [vmem:[#allocation32 + $0x60] sm:$0xff]
        %v1653 = vld [vmem:[#allocation32 + $0x68] sm:$0xff]
        %v1654 = vld [vmem:[#allocation32 + $0x70] sm:$0xff]
        %v1655 = vld [vmem:[#allocation32 + $0x78] sm:$0xff]
        %v1656 = vld [vmem:[#allocation32 + $0x80] sm:$0xff]
        %v1657 = vld [vmem:[#allocation32 + $0x88] sm:$0xff]
        %v1658 = vld [vmem:[#allocation32 + $0x90] sm:$0xff]
        %v1659 = vld [vmem:[#allocation32 + $0x98] sm:$0xff]
        %v1660 = vld [vmem:[#allocation32 + $0xa0] sm:$0xff]
        %v1661 = vld [vmem:[#allocation32 + $0xa8] sm:$0xff]
        %v1662 = vld [vmem:[#allocation32 + $0xb0] sm:$0xff]
        %v1663 = vld [vmem:[#allocation32 + $0xb8] sm:$0xff]
        %v1664 = vld [vmem:[#allocation32 + $0xc0] sm:$0xff]
        %v1665 = vld [vmem:[#allocation32 + $0xc8] sm:$0xff]
        %v1666 = vld [vmem:[#allocation32 + $0xd0] sm:$0xff]
        %v1667 = vld [vmem:[#allocation32 + $0xd8] sm:$0xff]
        %v1668 = vld [vmem:[#allocation32 + $0xe0] sm:$0xff]
        %v1669 = vld [vmem:[#allocation32 + $0xe8] sm:$0xff]
        %v1670 = vld [vmem:[#allocation32 + $0xf0] sm:$0xff]
        %v1671 = vld [vmem:[#allocation32 + $0xf8] sm:$0xff]
        %v1672 = vld [vmem:[#allocation34] sm:$0x1]
        %v1674 = vlaneseq
        %v1675 = vshrl.u32 %v1674, 7
        %v1676 = vsub.s32 0, %v1675
        %v1677 = vrot.slane %v1672, %v1676
        %1679 = vmatprep.subr.mxu0 0.0
        %1680 = vmatpush1.msra.mxu0 %v1640
        %1681 = vmatprep.subr.mxu0 0.0
        %1682 = vmatpush1.msra.mxu0 %v1641
        %1683 = vmatprep.subr.mxu0 0.0
        %1684 = vmatpush1.msra.mxu0 %v1642
        %1685 = vmatprep.subr.mxu0 0.0
        %1686 = vmatpush1.msra.mxu0 %v1643
        %1687 = vmatprep.subr.mxu0 0.0
        %1688 = vmatpush1.msra.mxu0 %v1644
        %1689 = vmatprep.subr.mxu0 0.0
        %1690 = vmatpush1.msra.mxu0 %v1645
        %1691 = vmatprep.subr.mxu0 0.0
        %1692 = vmatpush1.msra.mxu0 %v1646
        %1693 = vmatprep.subr.mxu0 0.0
        %1694 = vmatpush1.msra.mxu0 %v1647
        %1695 = vmatprep.subr.mxu0 0.0
        %1696 = vmatpush1.msra.mxu0 %v1648
        %1697 = vmatprep.subr.mxu0 0.0
        %1698 = vmatpush1.msra.mxu0 %v1649
        %1699 = vmatprep.subr.mxu0 0.0
        %1700 = vmatpush1.msra.mxu0 %v1650
        %1701 = vmatprep.subr.mxu0 0.0
        %1702 = vmatpush1.msra.mxu0 %v1651
        %1703 = vmatprep.subr.mxu0 0.0
        %1704 = vmatpush1.msra.mxu0 %v1652
        %1705 = vmatprep.subr.mxu0 0.0
        %1706 = vmatpush1.msra.mxu0 %v1653
        %1707 = vmatprep.subr.mxu0 0.0
        %1708 = vmatpush1.msra.mxu0 %v1654
        %1709 = vmatprep.subr.mxu0 0.0
        %1710 = vmatpush1.msra.mxu0 %v1655
        %1711 = vmatprep.subr.mxu0 0.0
        %1712 = vmatpush1.msra.mxu0 %v1656
        %1713 = vmatprep.subr.mxu0 0.0
        %1714 = vmatpush1.msra.mxu0 %v1657
        %1715 = vmatprep.subr.mxu0 0.0
        %1716 = vmatpush1.msra.mxu0 %v1658
        %1717 = vmatprep.subr.mxu0 0.0
        %1718 = vmatpush1.msra.mxu0 %v1659
        %1719 = vmatprep.subr.mxu0 0.0
        %1720 = vmatpush1.msra.mxu0 %v1660
        %1721 = vmatprep.subr.mxu0 0.0
        %1722 = vmatpush1.msra.mxu0 %v1661
        %1723 = vmatprep.subr.mxu0 0.0
        %1724 = vmatpush1.msra.mxu0 %v1662
        %1725 = vmatprep.subr.mxu0 0.0
        %1726 = vmatpush1.msra.mxu0 %v1663
        %1727 = vmatprep.subr.mxu0 0.0
        %1728 = vmatpush1.msra.mxu0 %v1664
        %1729 = vmatprep.subr.mxu0 0.0
        %1730 = vmatpush1.msra.mxu0 %v1665
        %1731 = vmatprep.subr.mxu0 0.0
        %1732 = vmatpush1.msra.mxu0 %v1666
        %1733 = vmatprep.subr.mxu0 0.0
        %1734 = vmatpush1.msra.mxu0 %v1667
        %1735 = vmatprep.subr.mxu0 0.0
        %1736 = vmatpush1.msra.mxu0 %v1668
        %1737 = vmatprep.subr.mxu0 0.0
        %1738 = vmatpush1.msra.mxu0 %v1669
        %1739 = vmatprep.subr.mxu0 0.0
        %1740 = vmatpush1.msra.mxu0 %v1670
        %1741 = vmatprep.subr.mxu0 0.0
        %1742 = vmatpush1.msra.mxu0 %v1671
        %1743 = vmatprep.mubr.f32.mxu0 %v1637
        %1744 = vmatmul.mubr.f32.gmra.mrb[0].mxu0 %v1636
        %v1745 = vpop.f32.mrb[0].mxu0
        %v1746 = vadd.f32 %v1677, %v1745
        %v1747 = vpop.f32.mrb[0].mxu0
        %1748 = vmatprep.mubr.f32.mxu0 %v1639
        %1749 = vmatmul.mubr.f32.gmra.mrb[0].mxu0 %v1638
        %v1750 = vpop.f32.mrb[0].mxu0
        %v1751 = vadd.f32 %v1677, %v1750
        %v1752 = vpop.f32.mrb[0].mxu0
        %1753 = vdwg.mxu0
        %v1754 = vadd.f32 %v1513, %v1746
        %v1755 = vadd.f32 %v1514, %v1751
        %v1756 = vld [vmem:[#allocation25] sm:$0x1]
        %v1757 = vld [vmem:[#allocation26] sm:$0x1]
        %1758 = vmatprep.subr.mxu0 0.0
        %1759 = vmatpush1.msra.mxu0 %v1318
        %1760 = vmatprep.subr.mxu0 0.0
        %1761 = vmatpush1.msra.mxu0 %v1319
        %1762 = vmatprep.subr.mxu0 0.0
        %1763 = vmatpush1.msra.mxu0 %v1320
        %1764 = vmatprep.subr.mxu0 0.0
        %1765 = vmatpush1.msra.mxu0 %v1321
        %1766 = vmatprep.subr.mxu0 0.0
        %1767 = vmatpush1.msra.mxu0 %v1322
        %1768 = vmatprep.subr.mxu0 0.0
        %1769 = vmatpush1.msra.mxu0 %v1323
        %1770 = vmatprep.subr.mxu0 0.0
        %1771 = vmatpush1.msra.mxu0 %v1324
        %1772 = vmatprep.subr.mxu0 0.0
        %1773 = vmatpush1.msra.mxu0 %v1325
        %1774 = vmatprep.subr.mxu0 0.0
        %1775 = vmatpush1.msra.mxu0 %v1326
        %1776 = vmatprep.subr.mxu0 0.0
        %1777 = vmatpush1.msra.mxu0 %v1327
        %1778 = vmatprep.subr.mxu0 0.0
        %1779 = vmatpush1.msra.mxu0 %v1328
        %1780 = vmatprep.subr.mxu0 0.0
        %1781 = vmatpush1.msra.mxu0 %v1329
        %1782 = vmatprep.subr.mxu0 0.0
        %1783 = vmatpush1.msra.mxu0 %v1330
        %1784 = vmatprep.subr.mxu0 0.0
        %1785 = vmatpush1.msra.mxu0 %v1331
        %1786 = vmatprep.subr.mxu0 0.0
        %1787 = vmatpush1.msra.mxu0 %v1332
        %1788 = vmatprep.subr.mxu0 0.0
        %1789 = vmatpush1.msra.mxu0 %v1333
        %1790 = vmatprep.subr.mxu0 0.0
        %1791 = vmatpush1.msra.mxu0 0.0
        %1792 = vmatprep.subr.mxu0 0.0
        %1793 = vmatpush1.msra.mxu0 0.0
        %1794 = vmatprep.subr.mxu0 0.0
        %1795 = vmatpush1.msra.mxu0 0.0
        %1796 = vmatprep.subr.mxu0 0.0
        %1797 = vmatpush1.msra.mxu0 0.0
        %1798 = vmatprep.subr.mxu0 0.0
        %1799 = vmatpush1.msra.mxu0 0.0
        %1800 = vmatprep.subr.mxu0 0.0
        %1801 = vmatpush1.msra.mxu0 0.0
        %1802 = vmatprep.subr.mxu0 0.0
        %1803 = vmatpush1.msra.mxu0 0.0
        %1804 = vmatprep.subr.mxu0 0.0
        %1805 = vmatpush1.msra.mxu0 0.0
        %1806 = vmatprep.subr.mxu0 0.0
        %1807 = vmatpush1.msra.mxu0 0.0
        %1808 = vmatprep.subr.mxu0 0.0
        %1809 = vmatpush1.msra.mxu0 0.0
        %1810 = vmatprep.subr.mxu0 0.0
        %1811 = vmatpush1.msra.mxu0 0.0
        %1812 = vmatprep.subr.mxu0 0.0
        %1813 = vmatpush1.msra.mxu0 0.0
        %1814 = vmatprep.subr.mxu0 0.0
        %1815 = vmatpush1.msra.mxu0 0.0
        %1816 = vmatprep.subr.mxu0 0.0
        %1817 = vmatpush1.msra.mxu0 0.0
        %1818 = vmatprep.subr.mxu0 0.0
        %1819 = vmatpush1.msra.mxu0 0.0
        %1820 = vmatprep.subr.mxu0 0.0
        %1821 = vmatpush1.msra.mxu0 0.0
        %1822 = vmatprep.mubr.f32.mxu0 0.0
        %1823 = vmatmul.mubr.f32.gmra.mrb[0].mxu0 %v1754
        %v1824 = vpop.f32.mrb[0].mxu0
        %v1825 = vadd.f32 0.0, %v1824
        %v1826 = vpop.f32.mrb[0].mxu0
        %1827 = vmatprep.mubr.f32.mxu0 0.0
        %1828 = vmatmul.mubr.f32.gmra.mrb[0].mxu0 %v1755
        %v1829 = vpop.f32.mrb[0].mxu0
        %v1830 = vadd.f32 0.0, %v1829
        %v1831 = vpop.f32.mrb[0].mxu0
        %1832 = vdwg.mxu0
        %v1833 = vsub.f32 %v1754, %v1825
        %v1834 = vsub.f32 %v1755, %v1830
        %v1835 = vmul.f32 %v1833, %v1833
        %v1836 = vmul.f32 %v1834, %v1834
        %1837 = vmatprep.subr.mxu0 0.0
        %1838 = vmatpush1.msra.mxu0 %v1318
        %1839 = vmatprep.subr.mxu0 0.0
        %1840 = vmatpush1.msra.mxu0 %v1319
        %1841 = vmatprep.subr.mxu0 0.0
        %1842 = vmatpush1.msra.mxu0 %v1320
        %1843 = vmatprep.subr.mxu0 0.0
        %1844 = vmatpush1.msra.mxu0 %v1321
        %1845 = vmatprep.subr.mxu0 0.0
        %1846 = vmatpush1.msra.mxu0 %v1322
        %1847 = vmatprep.subr.mxu0 0.0
        %1848 = vmatpush1.msra.mxu0 %v1323
        %1849 = vmatprep.subr.mxu0 0.0
        %1850 = vmatpush1.msra.mxu0 %v1324
        %1851 = vmatprep.subr.mxu0 0.0
        %1852 = vmatpush1.msra.mxu0 %v1325
        %1853 = vmatprep.subr.mxu0 0.0
        %1854 = vmatpush1.msra.mxu0 %v1326
        %1855 = vmatprep.subr.mxu0 0.0
        %1856 = vmatpush1.msra.mxu0 %v1327
        %1857 = vmatprep.subr.mxu0 0.0
        %1858 = vmatpush1.msra.mxu0 %v1328
        %1859 = vmatprep.subr.mxu0 0.0
        %1860 = vmatpush1.msra.mxu0 %v1329
        %1861 = vmatprep.subr.mxu0 0.0
        %1862 = vmatpush1.msra.mxu0 %v1330
        %1863 = vmatprep.subr.mxu0 0.0
        %1864 = vmatpush1.msra.mxu0 %v1331
        %1865 = vmatprep.subr.mxu0 0.0
        %1866 = vmatpush1.msra.mxu0 %v1332
        %1867 = vmatprep.subr.mxu0 0.0
        %1868 = vmatpush1.msra.mxu0 %v1333
        %1869 = vmatprep.subr.mxu0 0.0
        %1870 = vmatpush1.msra.mxu0 0.0
        %1871 = vmatprep.subr.mxu0 0.0
        %1872 = vmatpush1.msra.mxu0 0.0
        %1873 = vmatprep.subr.mxu0 0.0
        %1874 = vmatpush1.msra.mxu0 0.0
        %1875 = vmatprep.subr.mxu0 0.0
        %1876 = vmatpush1.msra.mxu0 0.0
        %1877 = vmatprep.subr.mxu0 0.0
        %1878 = vmatpush1.msra.mxu0 0.0
        %1879 = vmatprep.subr.mxu0 0.0
        %1880 = vmatpush1.msra.mxu0 0.0
        %1881 = vmatprep.subr.mxu0 0.0
        %1882 = vmatpush1.msra.mxu0 0.0
        %1883 = vmatprep.subr.mxu0 0.0
        %1884 = vmatpush1.msra.mxu0 0.0
        %1885 = vmatprep.subr.mxu0 0.0
        %1886 = vmatpush1.msra.mxu0 0.0
        %1887 = vmatprep.subr.mxu0 0.0
        %1888 = vmatpush1.msra.mxu0 0.0
        %1889 = vmatprep.subr.mxu0 0.0
        %1890 = vmatpush1.msra.mxu0 0.0
        %1891 = vmatprep.subr.mxu0 0.0
        %1892 = vmatpush1.msra.mxu0 0.0
        %1893 = vmatprep.subr.mxu0 0.0
        %1894 = vmatpush1.msra.mxu0 0.0
        %1895 = vmatprep.subr.mxu0 0.0
        %1896 = vmatpush1.msra.mxu0 0.0
        %1897 = vmatprep.subr.mxu0 0.0
        %1898 = vmatpush1.msra.mxu0 0.0
        %1899 = vmatprep.subr.mxu0 0.0
        %1900 = vmatpush1.msra.mxu0 0.0
        %1901 = vmatprep.mubr.f32.mxu0 0.0
        %1902 = vmatmul.mubr.f32.gmra.mrb[0].mxu0 %v1835
        %v1903 = vpop.f32.mrb[0].mxu0
        %v1904 = vadd.f32 1e-05, %v1903
        %v1905 = vpop.f32.mrb[0].mxu0
        %1906 = vmatprep.mubr.f32.mxu0 0.0
        %1907 = vmatmul.mubr.f32.gmra.mrb[0].mxu0 %v1836
        %v1908 = vpop.f32.mrb[0].mxu0
        %v1909 = vadd.f32 1e-05, %v1908
        %v1910 = vpop.f32.mrb[0].mxu0
        %1911 = vdwg.mxu0
        %v1912 = vrsqrt.pop %v1904
        %v1913 = vrsqrt.pop %v1909
        %v1914 = vmul.f32 %v1833, %v1912
        %v1915 = vmul.f32 %v1834, %v1913
        %v1917 = vlaneseq
        %v1918 = vshrl.u32 %v1917, 7
        %v1919 = vsub.s32 0, %v1918
        %v1920 = vrot.slane %v1756, %v1919
        %v1922 = vmul.f32 %v1914, %v1920
        %v1923 = vmul.f32 %v1915, %v1920
        %v1925 = vlaneseq
        %v1926 = vshrl.u32 %v1925, 7
        %v1927 = vsub.s32 0, %v1926
        %v1928 = vrot.slane %v1757, %v1927
        %v1930 = vadd.f32 %v1922, %v1928
        %v1931 = vadd.f32 %v1923, %v1928
        %1932 = vst [vmem:[%s1024] sm:$0xff] %v1930
        %1933 = vst [vmem:[%s1024 + $0x8] sm:$0xff] %v1931
        %s1934 = sand.u32 %s519, 1
        %s1935 = scalar_lea.sflag [#allocation4], %s1934
        %s1936 = sand.u32 %s519, 1
        %s1937 = smul.addr %s1936, 16
        %s1938 = scalar_lea.vmem [#allocation35], %s1937
        %s1939 = sand.u32 %s545, 1
        %s1940 = scalar_lea.sflag [#allocation37], %s1939
        %s1941 = sand.u32 %s545, 1
        %s1942 = smul.addr %s1941, 16
        %s1943 = scalar_lea.vmem [#allocation36], %s1942
        // Predicated region
        $region189: #{xe_transformer_layer.3} parent=103 // pred_check
          %p1944 = pneg %p529
        $region190: #{xe_transformer_layer.3} parent=103 // pred_check_branch
          %1946 = sbr.rel (%p1944) target = $region192
        $region191: #{xe_transformer_layer.3} parent=103 // pred_region
          %s1948 = ssub.s32 256, 256
          %1949 = vsyncadd %s1935, %s1948
          %s1950 = smul.addr %s55, 2
          %s1951 = smul.addr %s1950, 128
          %s1952 = scalar_lea.hbm %s21, %s1951
          %s1953 = sshll.u32 %s1938, 4
          %s1954 = int_to_ptr.vmem [resolvable:$true] %s1953
          %1959 = dma.vmem_to_hbm [thread:$0]  %s1954, 256, %s1952, %s1935, 128, 128, 8
        $region192: #{xe_transformer_layer.3} parent=103 // pred_fallthru
          _
        // Predicated region
        $region193: #{xe_transformer_layer.3} parent=103 // pred_check
          %p1960 = pneg %p555
        $region194: #{xe_transformer_layer.3} parent=103 // pred_check_branch
          %1962 = sbr.rel (%p1960) target = $region196
        $region195: #{xe_transformer_layer.3} parent=103 // pred_region
          %s1964 = ssub.s32 256, 256
          %1965 = vsyncadd %s1940, %s1964
          %s1966 = smul.addr %s55, 2
          %s1967 = smul.addr %s1966, 128
          %s1968 = scalar_lea.hbm %s22, %s1967
          %s1969 = sshll.u32 %s1943, 4
          %s1970 = int_to_ptr.vmem [resolvable:$true] %s1969
          %1975 = dma.vmem_to_hbm [thread:$0]  %s1970, 256, %s1968, %s1940, 128, 128, 8
        $region196: #{xe_transformer_layer.3} parent=103 // pred_fallthru
          _
      $region104: #{xe_transformer_layer.3} parent=5 // pred_fallthru
        _
      %p1976 = scmp.le.s32.totalorder 2, %s50
      // Predicated region
      $region197: #{xe_transformer_layer.3} parent=5 // pred_check
        %p1977 = pneg %p1976
      $region198: #{xe_transformer_layer.3} parent=5 // pred_check_branch
        %1979 = sbr.rel (%p1977) target = $region200
      $region199: #{xe_transformer_layer.3} parent=5 // pred_region
        %s1980 = ssub.s32 %s50, 2
        // Predicated region
        $region201: #{xe_transformer_layer.3} parent=199 // pred_check
          %p1981 = pneg %p535
        $region202: #{xe_transformer_layer.3} parent=199 // pred_check_branch
          %1983 = sbr.rel (%p1981) target = $region204
        $region203: #{xe_transformer_layer.3} parent=199 // pred_region
          %s1984 = sand.u32 %s520, 1
          %s1985 = scalar_lea.sflag [#allocation4], %s1984
          %s1986 = sand.u32 %s520, 1
          %s1987 = smul.addr %s1986, 16
          %s1988 = scalar_lea.vmem [#allocation35], %s1987
          %1989 = dma.done %s1985, 256
        $region204: #{xe_transformer_layer.3} parent=199 // pred_fallthru
          _
        // Predicated region
        $region205: #{xe_transformer_layer.3} parent=199 // pred_check
          %p1990 = pneg %p561
        $region206: #{xe_transformer_layer.3} parent=199 // pred_check_branch
          %1992 = sbr.rel (%p1990) target = $region208
        $region207: #{xe_transformer_layer.3} parent=199 // pred_region
          %s1993 = sand.u32 %s546, 1
          %s1994 = scalar_lea.sflag [#allocation37], %s1993
          %s1995 = sand.u32 %s546, 1
          %s1996 = smul.addr %s1995, 16
          %s1997 = scalar_lea.vmem [#allocation36], %s1996
          %1998 = dma.done %s1994, 256
        $region208: #{xe_transformer_layer.3} parent=199 // pred_fallthru
          _
      $region200: #{xe_transformer_layer.3} parent=5 // pred_fallthru
        _
    $region6: #{xe_transformer_layer.3} parent=1 // loop_footer
      %s54 = sadd.s32 1, %s50
    $region7: #{xe_transformer_layer.3} parent=1 // loop_footer_branch
      %49 = sbr.rel target = $region3
    $region8: #{xe_transformer_layer.3} parent=1 // loop_exit
      _
    %1999 = vsyncpa [#allocation3], 1
    %s2000 = scalar_lea.sflag [#allocation3], 1
    %2001 = vsyncpa %s2000, 1
    %2002 = vsyncpa [#allocation6], 1
    %s2003 = scalar_lea.sflag [#allocation6], 1
    %2004 = vsyncpa %s2003, 1
    %2005 = vsyncpa [#allocation9], 1
    %2006 = vsyncpa [#allocation12], 1
    %2007 = vsyncpa [#allocation15], 1
    %2008 = vsyncpa [#allocation18], 1
    %2009 = vsyncpa [#allocation21], 1
    %2010 = vsyncpa [#allocation24], 1
    %2011 = vsyncpa [#allocation27], 1
    %2012 = vsyncpa [#allocation30], 1
    %2013 = vsyncpa [#allocation33], 1
    %2014 = vsyncpa [#allocation4], 1
    %s2015 = scalar_lea.sflag [#allocation4], 1
    %2016 = vsyncpa %s2015, 1
    %2017 = vsyncpa [#allocation37], 1
    %s2018 = scalar_lea.sflag [#allocation37], 1
    %2019 = vsyncpa %s2018, 1

// kernel: xe_transformer_layer.2
$region0: #{xe_transformer_layer.2}
  #allocation0 [shape = 'u32[]', space=smem, size = 0x4, offset = 0x4, fixed_abs, tag = 'smem constant byte address 0x4 - core index']
  #allocation1 [shape = 'u32[144,128]{1,0:T(1,128)}', space=vmem, size = 0x12000, scoped, tag = 'internal scratch']
  %s0 = inlined_call_operand.hbm [shape: f32[4,16,32], index: 0, kind: input, shape index: {}]
  %s1 = inlined_call_operand.hbm [shape: f32[4,2,256], index: 1, kind: input, shape index: {}]
  %s2 = inlined_call_operand.hbm [shape: f32[4,16,128], index: 2, kind: input, shape index: {}]
  %s3 = inlined_call_operand.hbm [shape: f32[4,16,1], index: 3, kind: input, shape index: {}]
  %s4 = inlined_call_operand.hbm [shape: f32[4,2,256], index: 4, kind: input, shape index: {}]
  %s5 = inlined_call_operand.hbm [shape: f32[4,2,128], index: 5, kind: input, shape index: {}]
  %s6 = inlined_call_operand.hbm [shape: f32[32,256], index: 6, kind: input, shape index: {}]
  %s7 = inlined_call_operand.hbm [shape: f32[1,256], index: 7, kind: input, shape index: {}]
  %s8 = inlined_call_operand.hbm [shape: f32[256,512], index: 8, kind: input, shape index: {}]
  %s9 = inlined_call_operand.hbm [shape: f32[1,512], index: 9, kind: input, shape index: {}]
  %s10 = inlined_call_operand.hbm [shape: f32[128,512], index: 10, kind: input, shape index: {}]
  %s11 = inlined_call_operand.hbm [shape: f32[1,512], index: 11, kind: input, shape index: {}]
  %s12 = inlined_call_operand.hbm [shape: f32[256,128], index: 12, kind: input, shape index: {}]
  %s13 = inlined_call_operand.hbm [shape: f32[1,128], index: 13, kind: input, shape index: {}]
  %s14 = inlined_call_operand.hbm [shape: f32[128,16], index: 14, kind: input, shape index: {}]
  %s15 = inlined_call_operand.hbm [shape: f32[1,16], index: 15, kind: input, shape index: {}]
  %s16 = inlined_call_operand.hbm [shape: f32[256,256], index: 16, kind: input, shape index: {}]
  %s17 = inlined_call_operand.hbm [shape: f32[256,32], index: 17, kind: input, shape index: {}]
  %s18 = inlined_call_operand.hbm [shape: f32[1,32], index: 18, kind: input, shape index: {}]
  %s19 = inlined_call_operand.hbm [shape: f32[4,16,32], index: 19, kind: output, shape index: {0}]
  %s20 = inlined_call_operand.hbm [shape: f32[4,16,16], index: 20, kind: output, shape index: {1}]
  %21 = xla_tuple %s19, %s20
  %s22 = sld [smem:[#allocation0]]
  $region193: #{xe_transformer_layer.2} parent=0
    _
  %s24 = ssub.s32 1, %s22
  %s25 = scalar_select 0, %s24, %s22
  $region1: #{xe_transformer_layer.2} parent=0
    #allocation2 [shape = 'u8[16384]{0}', space=vmem, size = 0x4000, scoped, tag = 'input window, operand 0']
    #allocation3 [shape = 's32[2]{0}', space=sflag, size = 0x8, scoped, tag = 'scoped memory for xe_transformer_layer.2']
    #allocation4 [shape = 's32[2]{0}', space=sflag, size = 0x8, scoped, tag = 'scoped memory for xe_transformer_layer.2']
    #allocation5 [shape = 'u8[4096]{0}', space=vmem, size = 0x1000, scoped, tag = 'input window, operand 1']
    #allocation6 [shape = 's32[2]{0}', space=sflag, size = 0x8, scoped, tag = 'scoped memory for xe_transformer_layer.2']
    #allocation7 [shape = 'u8[16384]{0}', space=vmem, size = 0x4000, scoped, tag = 'input window, operand 2']
    #allocation8 [shape = 'u8[16384]{0}', space=vmem, size = 0x4000, scoped, tag = 'input window, operand 3']
    #allocation9 [shape = 's32[2]{0}', space=sflag, size = 0x8, scoped, tag = 'scoped memory for xe_transformer_layer.2']
    #allocation10 [shape = 'u8[4096]{0}', space=vmem, size = 0x1000, scoped, tag = 'input window, operand 4']
    #allocation11 [shape = 'u8[2048]{0}', space=vmem, size = 0x800, scoped, tag = 'input window, operand 5']
    #allocation12 [shape = 's32[2]{0}', space=sflag, size = 0x8, scoped, tag = 'scoped memory for xe_transformer_layer.2']
    #allocation13 [shape = 'u8[32768]{0}', space=vmem, size = 0x8000, scoped, tag = 'input window, operand 6, single buffered']
    #allocation14 [shape = 'u8[1024]{0}', space=vmem, size = 0x400, scoped, tag = 'input window, operand 7, single buffered']
    #allocation15 [shape = 's32[1]{0}', space=sflag, size = 0x4, scoped, tag = 'scoped memory for xe_transformer_layer.2']
    #allocation16 [shape = 'u8[524288]{0}', space=vmem, size = 0x80000, scoped, tag = 'input window, operand 8, single buffered']
    #allocation17 [shape = 'u8[2048]{0}', space=vmem, size = 0x800, scoped, tag = 'input window, operand 9, single buffered']
    #allocation18 [shape = 's32[1]{0}', space=sflag, size = 0x4, scoped, tag = 'scoped memory for xe_transformer_layer.2']
    #allocation19 [shape = 'u8[262144]{0}', space=vmem, size = 0x40000, scoped, tag = 'input window, operand 10, single buffered']
    #allocation20 [shape = 'u8[2048]{0}', space=vmem, size = 0x800, scoped, tag = 'input window, operand 11, single buffered']
    #allocation21 [shape = 's32[1]{0}', space=sflag, size = 0x4, scoped, tag = 'scoped memory for xe_transformer_layer.2']
    #allocation22 [shape = 'u8[131072]{0}', space=vmem, size = 0x20000, scoped, tag = 'input window, operand 12, single buffered']
    #allocation23 [shape = 'u8[512]{0}', space=vmem, size = 0x400, scoped, tag = 'input window, operand 13, single buffered']
    #allocation24 [shape = 's32[1]{0}', space=sflag, size = 0x4, scoped, tag = 'scoped memory for xe_transformer_layer.2']
    #allocation25 [shape = 'u8[65536]{0}', space=vmem, size = 0x10000, scoped, tag = 'input window, operand 14, single buffered']
    #allocation26 [shape = 'u8[512]{0}', space=vmem, size = 0x400, scoped, tag = 'input window, operand 15, single buffered']
    #allocation27 [shape = 's32[1]{0}', space=sflag, size = 0x4, scoped, tag = 'scoped memory for xe_transformer_layer.2']
    #allocation28 [shape = 'u8[262144]{0}', space=vmem, size = 0x40000, scoped, tag = 'input window, operand 16, single buffered']
    #allocation29 [shape = 'u8[131072]{0}', space=vmem, size = 0x20000, scoped, tag = 'input window, operand 17, single buffered']
    #allocation30 [shape = 's32[1]{0}', space=sflag, size = 0x4, scoped, tag = 'scoped memory for xe_transformer_layer.2']
    #allocation31 [shape = 'u8[512]{0}', space=vmem, size = 0x400, scoped, tag = 'input window, operand 18, single buffered']
    #allocation32 [shape = 'u8[16384]{0}', space=vmem, size = 0x4000, scoped, tag = 'output window, operand 0']
    #allocation33 [shape = 'u8[16384]{0}', space=vmem, size = 0x4000, scoped, tag = 'output window, operand 1']
    #allocation34 [shape = 's32[2]{0}', space=sflag, size = 0x8, scoped, tag = 'scoped memory for xe_transformer_layer.2']
    %26 = vsyncpa [#allocation3], 0
    %s27 = scalar_lea.sflag [#allocation3], 1
    %28 = vsyncpa %s27, 0
    %29 = vsyncpa [#allocation6], 0
    %s30 = scalar_lea.sflag [#allocation6], 1
    %31 = vsyncpa %s30, 0
    %32 = vsyncpa [#allocation9], 0
    %s33 = scalar_lea.sflag [#allocation9], 1
    %34 = vsyncpa %s33, 0
    %35 = vsyncpa [#allocation12], 0
    %s36 = scalar_lea.sflag [#allocation12], 1
    %37 = vsyncpa %s36, 0
    %38 = vsyncpa [#allocation15], 0
    %39 = vsyncpa [#allocation18], 0
    %40 = vsyncpa [#allocation21], 0
    %41 = vsyncpa [#allocation24], 0
    %42 = vsyncpa [#allocation27], 0
    %43 = vsyncpa [#allocation30], 0
    %44 = vsyncpa [#allocation4], 0
    %s45 = scalar_lea.sflag [#allocation4], 1
    %46 = vsyncpa %s45, 0
    %47 = vsyncpa [#allocation34], 0
    %s48 = scalar_lea.sflag [#allocation34], 1
    %49 = vsyncpa %s48, 0
    loop: start=0, step=1, limit=6
    $region2: #{xe_transformer_layer.2} parent=1 // loop_pre_header
      _
    $region3: #{xe_transformer_layer.2} parent=1 // loop_header
      %s51 = sphi 0, %s55
      %p52 = scmp.ge.s32.totalorder %s51, 6
      %s61 = sphi 0, %s63
      %s64 = sphi 0, %s61
      %s65 = sphi 0, %s64
      %s81 = sphi 0, %s65
      %s87 = sphi 0, %s89
      %s90 = sphi 0, %s87
      %s91 = sphi 0, %s90
      %s107 = sphi 0, %s91
      %s113 = sphi 0, %s115
      %s116 = sphi 0, %s113
      %s117 = sphi 0, %s116
      %s133 = sphi 0, %s117
      %s139 = sphi 0, %s141
      %s142 = sphi 0, %s139
      %s143 = sphi 0, %s142
      %s159 = sphi 0, %s143
      %s165 = sphi 0, %s167
      %s168 = sphi 0, %s165
      %s169 = sphi 0, %s168
      %s185 = sphi 0, %s169
      %s191 = sphi 0, %s193
      %s194 = sphi 0, %s191
      %s195 = sphi 0, %s194
      %s211 = sphi 0, %s195
      %s215 = sphi 0, %s215
      %s217 = sphi 0, %s215
      %s218 = sphi 0, %s217
      %s232 = sphi 0, %s218
      %s236 = sphi 0, %s236
      %s238 = sphi 0, %s236
      %s239 = sphi 0, %s238
      %s253 = sphi 0, %s239
      %s257 = sphi 0, %s257
      %s259 = sphi 0, %s257
      %s260 = sphi 0, %s259
      %s274 = sphi 0, %s260
      %s278 = sphi 0, %s278
      %s280 = sphi 0, %s278
      %s281 = sphi 0, %s280
      %s295 = sphi 0, %s281
      %s299 = sphi 0, %s299
      %s301 = sphi 0, %s299
      %s302 = sphi 0, %s301
      %s316 = sphi 0, %s302
      %s320 = sphi 0, %s320
      %s322 = sphi 0, %s320
      %s323 = sphi 0, %s322
      %s337 = sphi 0, %s323
      %s341 = sphi 0, %s341
      %s343 = sphi 0, %s341
      %s344 = sphi 0, %s343
      %s358 = sphi 0, %s344
      %s362 = sphi 0, %s362
      %s364 = sphi 0, %s362
      %s365 = sphi 0, %s364
      %s379 = sphi 0, %s365
      %s383 = sphi 0, %s383
      %s385 = sphi 0, %s383
      %s386 = sphi 0, %s385
      %s400 = sphi 0, %s386
      %s404 = sphi 0, %s404
      %s406 = sphi 0, %s404
      %s407 = sphi 0, %s406
      %s421 = sphi 0, %s407
      %s425 = sphi 0, %s425
      %s427 = sphi 0, %s425
      %s428 = sphi 0, %s427
      %s442 = sphi 0, %s428
      %s446 = sphi 0, %s446
      %s448 = sphi 0, %s446
      %s449 = sphi 0, %s448
      %s463 = sphi 0, %s449
      %s467 = sphi 0, %s467
      %s469 = sphi 0, %s467
      %s470 = sphi 0, %s469
      %s484 = sphi 0, %s470
      %s490 = sphi 0, %s492
      %s493 = sphi 0, %s490
      %s494 = sphi 0, %s493
      %s510 = sphi 0, %s494
      %s516 = sphi 0, %s518
      %s519 = sphi 0, %s516
      %s520 = sphi 0, %s519
      %s536 = sphi 0, %s520
    $region4: #{xe_transformer_layer.2} parent=1 // loop_header_branch
      %54 = sbr.rel (%p52) target = $region8
    $region5: #{xe_transformer_layer.2} parent=1 // loop_body
      %s56 = ssub.s32 %s51, 1
      %s57 = ssub.s32 %s51, 2
      %s58 = sadd.s32 %s51, 1
      %s59 = ssub.s32 %s51, %s58
      %p60 = scmp.eq.s32.totalorder %s59, 0
      %s62 = sadd.s32 %s61, 1
      %s63 = scalar_select %p60, %s61, %s62
      %p66 = pneg %p60
      %p67 = scmp.eq.s32.totalorder %s51, 3
      %p68 = por %p66, %p67
      %p69 = scmp.ne.s32.totalorder %s61, %s64
      %p70 = scmp.eq.s32.totalorder %s51, 0
      %p71 = por %p69, %p70
      %p72 = scmp.ne.s32.totalorder %s61, %s64
      %p73 = scmp.eq.s32.totalorder %s56, 3
      %p74 = por %p72, %p73
      %p75 = scmp.ne.s32.totalorder %s64, %s65
      %p76 = scmp.eq.s32.totalorder %s56, 0
      %p77 = por %p75, %p76
      %p78 = scmp.ne.s32.totalorder %s64, %s65
      %p79 = scmp.eq.s32.totalorder %s57, 3
      %p80 = por %p78, %p79
      %p82 = scmp.ne.s32.totalorder %s65, %s81
      %p83 = scmp.eq.s32.totalorder %s57, 0
      %p84 = por %p82, %p83
      %s85 = ssub.s32 %s51, %s58
      %p86 = scmp.eq.s32.totalorder %s85, 0
      %s88 = sadd.s32 %s87, 1
      %s89 = scalar_select %p86, %s87, %s88
      %p92 = pneg %p86
      %p93 = scmp.eq.s32.totalorder %s51, 3
      %p94 = por %p92, %p93
      %p95 = scmp.ne.s32.totalorder %s87, %s90
      %p96 = scmp.eq.s32.totalorder %s51, 0
      %p97 = por %p95, %p96
      %p98 = scmp.ne.s32.totalorder %s87, %s90
      %p99 = scmp.eq.s32.totalorder %s56, 3
      %p100 = por %p98, %p99
      %p101 = scmp.ne.s32.totalorder %s90, %s91
      %p102 = scmp.eq.s32.totalorder %s56, 0
      %p103 = por %p101, %p102
      %p104 = scmp.ne.s32.totalorder %s90, %s91
      %p105 = scmp.eq.s32.totalorder %s57, 3
      %p106 = por %p104, %p105
      %p108 = scmp.ne.s32.totalorder %s91, %s107
      %p109 = scmp.eq.s32.totalorder %s57, 0
      %p110 = por %p108, %p109
      %s111 = ssub.s32 %s51, %s58
      %p112 = scmp.eq.s32.totalorder %s111, 0
      %s114 = sadd.s32 %s113, 1
      %s115 = scalar_select %p112, %s113, %s114
      %p118 = pneg %p112
      %p119 = scmp.eq.s32.totalorder %s51, 3
      %p120 = por %p118, %p119
      %p121 = scmp.ne.s32.totalorder %s113, %s116
      %p122 = scmp.eq.s32.totalorder %s51, 0
      %p123 = por %p121, %p122
      %p124 = scmp.ne.s32.totalorder %s113, %s116
      %p125 = scmp.eq.s32.totalorder %s56, 3
      %p126 = por %p124, %p125
      %p127 = scmp.ne.s32.totalorder %s116, %s117
      %p128 = scmp.eq.s32.totalorder %s56, 0
      %p129 = por %p127, %p128
      %p130 = scmp.ne.s32.totalorder %s116, %s117
      %p131 = scmp.eq.s32.totalorder %s57, 3
      %p132 = por %p130, %p131
      %p134 = scmp.ne.s32.totalorder %s117, %s133
      %p135 = scmp.eq.s32.totalorder %s57, 0
      %p136 = por %p134, %p135
      %s137 = ssub.s32 %s51, %s58
      %p138 = scmp.eq.s32.totalorder %s137, 0
      %s140 = sadd.s32 %s139, 1
      %s141 = scalar_select %p138, %s139, %s140
      %p144 = pneg %p138
      %p145 = scmp.eq.s32.totalorder %s51, 3
      %p146 = por %p144, %p145
      %p147 = scmp.ne.s32.totalorder %s139, %s142
      %p148 = scmp.eq.s32.totalorder %s51, 0
      %p149 = por %p147, %p148
      %p150 = scmp.ne.s32.totalorder %s139, %s142
      %p151 = scmp.eq.s32.totalorder %s56, 3
      %p152 = por %p150, %p151
      %p153 = scmp.ne.s32.totalorder %s142, %s143
      %p154 = scmp.eq.s32.totalorder %s56, 0
      %p155 = por %p153, %p154
      %p156 = scmp.ne.s32.totalorder %s142, %s143
      %p157 = scmp.eq.s32.totalorder %s57, 3
      %p158 = por %p156, %p157
      %p160 = scmp.ne.s32.totalorder %s143, %s159
      %p161 = scmp.eq.s32.totalorder %s57, 0
      %p162 = por %p160, %p161
      %s163 = ssub.s32 %s51, %s58
      %p164 = scmp.eq.s32.totalorder %s163, 0
      %s166 = sadd.s32 %s165, 1
      %s167 = scalar_select %p164, %s165, %s166
      %p170 = pneg %p164
      %p171 = scmp.eq.s32.totalorder %s51, 3
      %p172 = por %p170, %p171
      %p173 = scmp.ne.s32.totalorder %s165, %s168
      %p174 = scmp.eq.s32.totalorder %s51, 0
      %p175 = por %p173, %p174
      %p176 = scmp.ne.s32.totalorder %s165, %s168
      %p177 = scmp.eq.s32.totalorder %s56, 3
      %p178 = por %p176, %p177
      %p179 = scmp.ne.s32.totalorder %s168, %s169
      %p180 = scmp.eq.s32.totalorder %s56, 0
      %p181 = por %p179, %p180
      %p182 = scmp.ne.s32.totalorder %s168, %s169
      %p183 = scmp.eq.s32.totalorder %s57, 3
      %p184 = por %p182, %p183
      %p186 = scmp.ne.s32.totalorder %s169, %s185
      %p187 = scmp.eq.s32.totalorder %s57, 0
      %p188 = por %p186, %p187
      %s189 = ssub.s32 %s51, %s58
      %p190 = scmp.eq.s32.totalorder %s189, 0
      %s192 = sadd.s32 %s191, 1
      %s193 = scalar_select %p190, %s191, %s192
      %p196 = pneg %p190
      %p197 = scmp.eq.s32.totalorder %s51, 3
      %p198 = por %p196, %p197
      %p199 = scmp.ne.s32.totalorder %s191, %s194
      %p200 = scmp.eq.s32.totalorder %s51, 0
      %p201 = por %p199, %p200
      %p202 = scmp.ne.s32.totalorder %s191, %s194
      %p203 = scmp.eq.s32.totalorder %s56, 3
      %p204 = por %p202, %p203
      %p205 = scmp.ne.s32.totalorder %s194, %s195
      %p206 = scmp.eq.s32.totalorder %s56, 0
      %p207 = por %p205, %p206
      %p208 = scmp.ne.s32.totalorder %s194, %s195
      %p209 = scmp.eq.s32.totalorder %s57, 3
      %p210 = por %p208, %p209
      %p212 = scmp.ne.s32.totalorder %s195, %s211
      %p213 = scmp.eq.s32.totalorder %s57, 0
      %p214 = por %p212, %p213
      %s216 = sadd.s32 %s215, 1
      %p219 = scmp.eq.s32.totalorder %s51, 3
      %p220 = scmp.ne.s32.totalorder %s215, %s217
      %p221 = scmp.eq.s32.totalorder %s51, 0
      %p222 = por %p220, %p221
      %p223 = scmp.ne.s32.totalorder %s215, %s217
      %p224 = scmp.eq.s32.totalorder %s56, 3
      %p225 = por %p223, %p224
      %p226 = scmp.ne.s32.totalorder %s217, %s218
      %p227 = scmp.eq.s32.totalorder %s56, 0
      %p228 = por %p226, %p227
      %p229 = scmp.ne.s32.totalorder %s217, %s218
      %p230 = scmp.eq.s32.totalorder %s57, 3
      %p231 = por %p229, %p230
      %p233 = scmp.ne.s32.totalorder %s218, %s232
      %p234 = scmp.eq.s32.totalorder %s57, 0
      %p235 = por %p233, %p234
      %s237 = sadd.s32 %s236, 1
      %p240 = scmp.eq.s32.totalorder %s51, 3
      %p241 = scmp.ne.s32.totalorder %s236, %s238
      %p242 = scmp.eq.s32.totalorder %s51, 0
      %p243 = por %p241, %p242
      %p244 = scmp.ne.s32.totalorder %s236, %s238
      %p245 = scmp.eq.s32.totalorder %s56, 3
      %p246 = por %p244, %p245
      %p247 = scmp.ne.s32.totalorder %s238, %s239
      %p248 = scmp.eq.s32.totalorder %s56, 0
      %p249 = por %p247, %p248
      %p250 = scmp.ne.s32.totalorder %s238, %s239
      %p251 = scmp.eq.s32.totalorder %s57, 3
      %p252 = por %p250, %p251
      %p254 = scmp.ne.s32.totalorder %s239, %s253
      %p255 = scmp.eq.s32.totalorder %s57, 0
      %p256 = por %p254, %p255
      %s258 = sadd.s32 %s257, 1
      %p261 = scmp.eq.s32.totalorder %s51, 3
      %p262 = scmp.ne.s32.totalorder %s257, %s259
      %p263 = scmp.eq.s32.totalorder %s51, 0
      %p264 = por %p262, %p263
      %p265 = scmp.ne.s32.totalorder %s257, %s259
      %p266 = scmp.eq.s32.totalorder %s56, 3
      %p267 = por %p265, %p266
      %p268 = scmp.ne.s32.totalorder %s259, %s260
      %p269 = scmp.eq.s32.totalorder %s56, 0
      %p270 = por %p268, %p269
      %p271 = scmp.ne.s32.totalorder %s259, %s260
      %p272 = scmp.eq.s32.totalorder %s57, 3
      %p273 = por %p271, %p272
      %p275 = scmp.ne.s32.totalorder %s260, %s274
      %p276 = scmp.eq.s32.totalorder %s57, 0
      %p277 = por %p275, %p276
      %s279 = sadd.s32 %s278, 1
      %p282 = scmp.eq.s32.totalorder %s51, 3
      %p283 = scmp.ne.s32.totalorder %s278, %s280
      %p284 = scmp.eq.s32.totalorder %s51, 0
      %p285 = por %p283, %p284
      %p286 = scmp.ne.s32.totalorder %s278, %s280
      %p287 = scmp.eq.s32.totalorder %s56, 3
      %p288 = por %p286, %p287
      %p289 = scmp.ne.s32.totalorder %s280, %s281
      %p290 = scmp.eq.s32.totalorder %s56, 0
      %p291 = por %p289, %p290
      %p292 = scmp.ne.s32.totalorder %s280, %s281
      %p293 = scmp.eq.s32.totalorder %s57, 3
      %p294 = por %p292, %p293
      %p296 = scmp.ne.s32.totalorder %s281, %s295
      %p297 = scmp.eq.s32.totalorder %s57, 0
      %p298 = por %p296, %p297
      %s300 = sadd.s32 %s299, 1
      %p303 = scmp.eq.s32.totalorder %s51, 3
      %p304 = scmp.ne.s32.totalorder %s299, %s301
      %p305 = scmp.eq.s32.totalorder %s51, 0
      %p306 = por %p304, %p305
      %p307 = scmp.ne.s32.totalorder %s299, %s301
      %p308 = scmp.eq.s32.totalorder %s56, 3
      %p309 = por %p307, %p308
      %p310 = scmp.ne.s32.totalorder %s301, %s302
      %p311 = scmp.eq.s32.totalorder %s56, 0
      %p312 = por %p310, %p311
      %p313 = scmp.ne.s32.totalorder %s301, %s302
      %p314 = scmp.eq.s32.totalorder %s57, 3
      %p315 = por %p313, %p314
      %p317 = scmp.ne.s32.totalorder %s302, %s316
      %p318 = scmp.eq.s32.totalorder %s57, 0
      %p319 = por %p317, %p318
      %s321 = sadd.s32 %s320, 1
      %p324 = scmp.eq.s32.totalorder %s51, 3
      %p325 = scmp.ne.s32.totalorder %s320, %s322
      %p326 = scmp.eq.s32.totalorder %s51, 0
      %p327 = por %p325, %p326
      %p328 = scmp.ne.s32.totalorder %s320, %s322
      %p329 = scmp.eq.s32.totalorder %s56, 3
      %p330 = por %p328, %p329
      %p331 = scmp.ne.s32.totalorder %s322, %s323
      %p332 = scmp.eq.s32.totalorder %s56, 0
      %p333 = por %p331, %p332
      %p334 = scmp.ne.s32.totalorder %s322, %s323
      %p335 = scmp.eq.s32.totalorder %s57, 3
      %p336 = por %p334, %p335
      %p338 = scmp.ne.s32.totalorder %s323, %s337
      %p339 = scmp.eq.s32.totalorder %s57, 0
      %p340 = por %p338, %p339
      %s342 = sadd.s32 %s341, 1
      %p345 = scmp.eq.s32.totalorder %s51, 3
      %p346 = scmp.ne.s32.totalorder %s341, %s343
      %p347 = scmp.eq.s32.totalorder %s51, 0
      %p348 = por %p346, %p347
      %p349 = scmp.ne.s32.totalorder %s341, %s343
      %p350 = scmp.eq.s32.totalorder %s56, 3
      %p351 = por %p349, %p350
      %p352 = scmp.ne.s32.totalorder %s343, %s344
      %p353 = scmp.eq.s32.totalorder %s56, 0
      %p354 = por %p352, %p353
      %p355 = scmp.ne.s32.totalorder %s343, %s344
      %p356 = scmp.eq.s32.totalorder %s57, 3
      %p357 = por %p355, %p356
      %p359 = scmp.ne.s32.totalorder %s344, %s358
      %p360 = scmp.eq.s32.totalorder %s57, 0
      %p361 = por %p359, %p360
      %s363 = sadd.s32 %s362, 1
      %p366 = scmp.eq.s32.totalorder %s51, 3
      %p367 = scmp.ne.s32.totalorder %s362, %s364
      %p368 = scmp.eq.s32.totalorder %s51, 0
      %p369 = por %p367, %p368
      %p370 = scmp.ne.s32.totalorder %s362, %s364
      %p371 = scmp.eq.s32.totalorder %s56, 3
      %p372 = por %p370, %p371
      %p373 = scmp.ne.s32.totalorder %s364, %s365
      %p374 = scmp.eq.s32.totalorder %s56, 0
      %p375 = por %p373, %p374
      %p376 = scmp.ne.s32.totalorder %s364, %s365
      %p377 = scmp.eq.s32.totalorder %s57, 3
      %p378 = por %p376, %p377
      %p380 = scmp.ne.s32.totalorder %s365, %s379
      %p381 = scmp.eq.s32.totalorder %s57, 0
      %p382 = por %p380, %p381
      %s384 = sadd.s32 %s383, 1
      %p387 = scmp.eq.s32.totalorder %s51, 3
      %p388 = scmp.ne.s32.totalorder %s383, %s385
      %p389 = scmp.eq.s32.totalorder %s51, 0
      %p390 = por %p388, %p389
      %p391 = scmp.ne.s32.totalorder %s383, %s385
      %p392 = scmp.eq.s32.totalorder %s56, 3
      %p393 = por %p391, %p392
      %p394 = scmp.ne.s32.totalorder %s385, %s386
      %p395 = scmp.eq.s32.totalorder %s56, 0
      %p396 = por %p394, %p395
      %p397 = scmp.ne.s32.totalorder %s385, %s386
      %p398 = scmp.eq.s32.totalorder %s57, 3
      %p399 = por %p397, %p398
      %p401 = scmp.ne.s32.totalorder %s386, %s400
      %p402 = scmp.eq.s32.totalorder %s57, 0
      %p403 = por %p401, %p402
      %s405 = sadd.s32 %s404, 1
      %p408 = scmp.eq.s32.totalorder %s51, 3
      %p409 = scmp.ne.s32.totalorder %s404, %s406
      %p410 = scmp.eq.s32.totalorder %s51, 0
      %p411 = por %p409, %p410
      %p412 = scmp.ne.s32.totalorder %s404, %s406
      %p413 = scmp.eq.s32.totalorder %s56, 3
      %p414 = por %p412, %p413
      %p415 = scmp.ne.s32.totalorder %s406, %s407
      %p416 = scmp.eq.s32.totalorder %s56, 0
      %p417 = por %p415, %p416
      %p418 = scmp.ne.s32.totalorder %s406, %s407
      %p419 = scmp.eq.s32.totalorder %s57, 3
      %p420 = por %p418, %p419
      %p422 = scmp.ne.s32.totalorder %s407, %s421
      %p423 = scmp.eq.s32.totalorder %s57, 0
      %p424 = por %p422, %p423
      %s426 = sadd.s32 %s425, 1
      %p429 = scmp.eq.s32.totalorder %s51, 3
      %p430 = scmp.ne.s32.totalorder %s425, %s427
      %p431 = scmp.eq.s32.totalorder %s51, 0
      %p432 = por %p430, %p431
      %p433 = scmp.ne.s32.totalorder %s425, %s427
      %p434 = scmp.eq.s32.totalorder %s56, 3
      %p435 = por %p433, %p434
      %p436 = scmp.ne.s32.totalorder %s427, %s428
      %p437 = scmp.eq.s32.totalorder %s56, 0
      %p438 = por %p436, %p437
      %p439 = scmp.ne.s32.totalorder %s427, %s428
      %p440 = scmp.eq.s32.totalorder %s57, 3
      %p441 = por %p439, %p440
      %p443 = scmp.ne.s32.totalorder %s428, %s442
      %p444 = scmp.eq.s32.totalorder %s57, 0
      %p445 = por %p443, %p444
      %s447 = sadd.s32 %s446, 1
      %p450 = scmp.eq.s32.totalorder %s51, 3
      %p451 = scmp.ne.s32.totalorder %s446, %s448
      %p452 = scmp.eq.s32.totalorder %s51, 0
      %p453 = por %p451, %p452
      %p454 = scmp.ne.s32.totalorder %s446, %s448
      %p455 = scmp.eq.s32.totalorder %s56, 3
      %p456 = por %p454, %p455
      %p457 = scmp.ne.s32.totalorder %s448, %s449
      %p458 = scmp.eq.s32.totalorder %s56, 0
      %p459 = por %p457, %p458
      %p460 = scmp.ne.s32.totalorder %s448, %s449
      %p461 = scmp.eq.s32.totalorder %s57, 3
      %p462 = por %p460, %p461
      %p464 = scmp.ne.s32.totalorder %s449, %s463
      %p465 = scmp.eq.s32.totalorder %s57, 0
      %p466 = por %p464, %p465
      %s468 = sadd.s32 %s467, 1
      %p471 = scmp.eq.s32.totalorder %s51, 3
      %p472 = scmp.ne.s32.totalorder %s467, %s469
      %p473 = scmp.eq.s32.totalorder %s51, 0
      %p474 = por %p472, %p473
      %p475 = scmp.ne.s32.totalorder %s467, %s469
      %p476 = scmp.eq.s32.totalorder %s56, 3
      %p477 = por %p475, %p476
      %p478 = scmp.ne.s32.totalorder %s469, %s470
      %p479 = scmp.eq.s32.totalorder %s56, 0
      %p480 = por %p478, %p479
      %p481 = scmp.ne.s32.totalorder %s469, %s470
      %p482 = scmp.eq.s32.totalorder %s57, 3
      %p483 = por %p481, %p482
      %p485 = scmp.ne.s32.totalorder %s470, %s484
      %p486 = scmp.eq.s32.totalorder %s57, 0
      %p487 = por %p485, %p486
      %s488 = ssub.s32 %s51, %s58
      %p489 = scmp.eq.s32.totalorder %s488, 0
      %s491 = sadd.s32 %s490, 1
      %s492 = scalar_select %p489, %s490, %s491
      %p495 = pneg %p489
      %p496 = scmp.eq.s32.totalorder %s51, 3
      %p497 = por %p495, %p496
      %p498 = scmp.ne.s32.totalorder %s490, %s493
      %p499 = scmp.eq.s32.totalorder %s51, 0
      %p500 = por %p498, %p499
      %p501 = scmp.ne.s32.totalorder %s490, %s493
      %p502 = scmp.eq.s32.totalorder %s56, 3
      %p503 = por %p501, %p502
      %p504 = scmp.ne.s32.totalorder %s493, %s494
      %p505 = scmp.eq.s32.totalorder %s56, 0
      %p506 = por %p504, %p505
      %p507 = scmp.ne.s32.totalorder %s493, %s494
      %p508 = scmp.eq.s32.totalorder %s57, 3
      %p509 = por %p507, %p508
      %p511 = scmp.ne.s32.totalorder %s494, %s510
      %p512 = scmp.eq.s32.totalorder %s57, 0
      %p513 = por %p511, %p512
      %s514 = ssub.s32 %s51, %s58
      %p515 = scmp.eq.s32.totalorder %s514, 0
      %s517 = sadd.s32 %s516, 1
      %s518 = scalar_select %p515, %s516, %s517
      %p521 = pneg %p515
      %p522 = scmp.eq.s32.totalorder %s51, 3
      %p523 = por %p521, %p522
      %p524 = scmp.ne.s32.totalorder %s516, %s519
      %p525 = scmp.eq.s32.totalorder %s51, 0
      %p526 = por %p524, %p525
      %p527 = scmp.ne.s32.totalorder %s516, %s519
      %p528 = scmp.eq.s32.totalorder %s56, 3
      %p529 = por %p527, %p528
      %p530 = scmp.ne.s32.totalorder %s519, %s520
      %p531 = scmp.eq.s32.totalorder %s56, 0
      %p532 = por %p530, %p531
      %p533 = scmp.ne.s32.totalorder %s519, %s520
      %p534 = scmp.eq.s32.totalorder %s57, 3
      %p535 = por %p533, %p534
      %p537 = scmp.ne.s32.totalorder %s520, %s536
      %p538 = scmp.eq.s32.totalorder %s57, 0
      %p539 = por %p537, %p538
      %p540 = scmp.le.s32.totalorder 1, %s51
      %p541 = scmp.lt.s32.totalorder %s51, 5
      %p542 = pnand %p540, %p541
      %p543 = pneg %p542
      // Predicated region
      $region9: #{xe_transformer_layer.2} parent=5 // pred_check
        _
      $region10: #{xe_transformer_layer.2} parent=5 // pred_check_branch
        %545 = sbr.rel (%p542) target = $region12
      $region11: #{xe_transformer_layer.2} parent=5 // pred_region
        %s546 = ssub.s32 %s51, 1
        // Predicated region
        $region13: #{xe_transformer_layer.2} parent=11 // pred_check
          %p547 = pneg %p228
        $region14: #{xe_transformer_layer.2} parent=11 // pred_check_branch
          %549 = sbr.rel (%p547) target = $region16
        $region15: #{xe_transformer_layer.2} parent=11 // pred_region
          %s551 = ssub.s32 1024, 1024
          %552 = vsyncadd [#allocation12], %s551
          %s553 = sshll.u32 [#allocation13], 4
          %s554 = int_to_ptr.vmem [resolvable:$true] %s553
          %559 = dma.hbm_to_vmem [thread:$0]  %s6, 1024, %s554, [#allocation12], 256, 256, 16
        $region16: #{xe_transformer_layer.2} parent=11 // pred_fallthru
          _
        // Predicated region
        $region17: #{xe_transformer_layer.2} parent=11 // pred_check
          %p560 = pneg %p249
        $region18: #{xe_transformer_layer.2} parent=11 // pred_check_branch
          %562 = sbr.rel (%p560) target = $region20
        $region19: #{xe_transformer_layer.2} parent=11 // pred_region
          %s564 = ssub.s32 32, 32
          %565 = vsyncadd [#allocation15], %s564
          %s567 = sshll.u32 [#allocation14], 4
          %s568 = int_to_ptr.vmem [resolvable:$true] %s567
          %570 = dma.hbm_to_vmem [thread:$0]  %s7, 32, %s568, [#allocation15]
        $region20: #{xe_transformer_layer.2} parent=11 // pred_fallthru
          _
        // Predicated region
        $region21: #{xe_transformer_layer.2} parent=11 // pred_check
          %p571 = pneg %p270
        $region22: #{xe_transformer_layer.2} parent=11 // pred_check_branch
          %573 = sbr.rel (%p571) target = $region24
        $region23: #{xe_transformer_layer.2} parent=11 // pred_region
          %s575 = ssub.s32 16384, 16384
          %576 = vsyncadd [#allocation15], %s575
          %s577 = sshll.u32 [#allocation16], 4
          %s578 = int_to_ptr.vmem [resolvable:$true] %s577
          %583 = dma.hbm_to_vmem [thread:$0]  %s8, 16384, %s578, [#allocation15], 512, 512, 32
        $region24: #{xe_transformer_layer.2} parent=11 // pred_fallthru
          _
        // Predicated region
        $region25: #{xe_transformer_layer.2} parent=11 // pred_check
          %p584 = pneg %p291
        $region26: #{xe_transformer_layer.2} parent=11 // pred_check_branch
          %586 = sbr.rel (%p584) target = $region28
        $region27: #{xe_transformer_layer.2} parent=11 // pred_region
          %s588 = ssub.s32 64, 64
          %589 = vsyncadd [#allocation18], %s588
          %s591 = sshll.u32 [#allocation17], 4
          %s592 = int_to_ptr.vmem [resolvable:$true] %s591
          %594 = dma.hbm_to_vmem [thread:$0]  %s9, 64, %s592, [#allocation18]
        $region28: #{xe_transformer_layer.2} parent=11 // pred_fallthru
          _
        // Predicated region
        $region29: #{xe_transformer_layer.2} parent=11 // pred_check
          %p595 = pneg %p312
        $region30: #{xe_transformer_layer.2} parent=11 // pred_check_branch
          %597 = sbr.rel (%p595) target = $region32
        $region31: #{xe_transformer_layer.2} parent=11 // pred_region
          %s599 = ssub.s32 8192, 8192
          %600 = vsyncadd [#allocation18], %s599
          %s601 = sshll.u32 [#allocation19], 4
          %s602 = int_to_ptr.vmem [resolvable:$true] %s601
          %607 = dma.hbm_to_vmem [thread:$0]  %s10, 8192, %s602, [#allocation18], 512, 512, 32
        $region32: #{xe_transformer_layer.2} parent=11 // pred_fallthru
          _
        // Predicated region
        $region33: #{xe_transformer_layer.2} parent=11 // pred_check
          %p608 = pneg %p333
        $region34: #{xe_transformer_layer.2} parent=11 // pred_check_branch
          %610 = sbr.rel (%p608) target = $region36
        $region35: #{xe_transformer_layer.2} parent=11 // pred_region
          %s612 = ssub.s32 64, 64
          %613 = vsyncadd [#allocation21], %s612
          %s615 = sshll.u32 [#allocation20], 4
          %s616 = int_to_ptr.vmem [resolvable:$true] %s615
          %618 = dma.hbm_to_vmem [thread:$0]  %s11, 64, %s616, [#allocation21]
        $region36: #{xe_transformer_layer.2} parent=11 // pred_fallthru
          _
        // Predicated region
        $region37: #{xe_transformer_layer.2} parent=11 // pred_check
          %p619 = pneg %p354
        $region38: #{xe_transformer_layer.2} parent=11 // pred_check_branch
          %621 = sbr.rel (%p619) target = $region40
        $region39: #{xe_transformer_layer.2} parent=11 // pred_region
          %s623 = ssub.s32 4096, 4096
          %624 = vsyncadd [#allocation21], %s623
          %s625 = sshll.u32 [#allocation22], 4
          %s626 = int_to_ptr.vmem [resolvable:$true] %s625
          %631 = dma.hbm_to_vmem [thread:$0]  %s12, 4096, %s626, [#allocation21], 128, 128, 8
        $region40: #{xe_transformer_layer.2} parent=11 // pred_fallthru
          _
        // Predicated region
        $region41: #{xe_transformer_layer.2} parent=11 // pred_check
          %p632 = pneg %p375
        $region42: #{xe_transformer_layer.2} parent=11 // pred_check_branch
          %634 = sbr.rel (%p632) target = $region44
        $region43: #{xe_transformer_layer.2} parent=11 // pred_region
          %s636 = ssub.s32 16, 16
          %637 = vsyncadd [#allocation24], %s636
          %s639 = sshll.u32 [#allocation23], 4
          %s640 = int_to_ptr.vmem [resolvable:$true] %s639
          %642 = dma.hbm_to_vmem [thread:$0]  %s13, 16, %s640, [#allocation24]
        $region44: #{xe_transformer_layer.2} parent=11 // pred_fallthru
          _
        // Predicated region
        $region45: #{xe_transformer_layer.2} parent=11 // pred_check
          %p643 = pneg %p396
        $region46: #{xe_transformer_layer.2} parent=11 // pred_check_branch
          %645 = sbr.rel (%p643) target = $region48
        $region47: #{xe_transformer_layer.2} parent=11 // pred_region
          %s647 = ssub.s32 2048, 2048
          %648 = vsyncadd [#allocation24], %s647
          %s649 = sshll.u32 [#allocation25], 4
          %s650 = int_to_ptr.vmem [resolvable:$true] %s649
          %655 = dma.hbm_to_vmem [thread:$0]  %s14, 2048, %s650, [#allocation24], 128, 128, 8
        $region48: #{xe_transformer_layer.2} parent=11 // pred_fallthru
          _
        // Predicated region
        $region49: #{xe_transformer_layer.2} parent=11 // pred_check
          %p656 = pneg %p417
        $region50: #{xe_transformer_layer.2} parent=11 // pred_check_branch
          %658 = sbr.rel (%p656) target = $region52
        $region51: #{xe_transformer_layer.2} parent=11 // pred_region
          %s660 = ssub.s32 16, 16
          %661 = vsyncadd [#allocation27], %s660
          %s663 = sshll.u32 [#allocation26], 4
          %s664 = int_to_ptr.vmem [resolvable:$true] %s663
          %666 = dma.hbm_to_vmem [thread:$0]  %s15, 16, %s664, [#allocation27]
        $region52: #{xe_transformer_layer.2} parent=11 // pred_fallthru
          _
        // Predicated region
        $region53: #{xe_transformer_layer.2} parent=11 // pred_check
          %p667 = pneg %p438
        $region54: #{xe_transformer_layer.2} parent=11 // pred_check_branch
          %669 = sbr.rel (%p667) target = $region56
        $region55: #{xe_transformer_layer.2} parent=11 // pred_region
          %s671 = ssub.s32 8192, 8192
          %672 = vsyncadd [#allocation27], %s671
          %s673 = sshll.u32 [#allocation28], 4
          %s674 = int_to_ptr.vmem [resolvable:$true] %s673
          %679 = dma.hbm_to_vmem [thread:$0]  %s16, 8192, %s674, [#allocation27], 256, 256, 16
        $region56: #{xe_transformer_layer.2} parent=11 // pred_fallthru
          _
        // Predicated region
        $region57: #{xe_transformer_layer.2} parent=11 // pred_check
          %p680 = pneg %p459
        $region58: #{xe_transformer_layer.2} parent=11 // pred_check_branch
          %682 = sbr.rel (%p680) target = $region60
        $region59: #{xe_transformer_layer.2} parent=11 // pred_region
          %s684 = ssub.s32 4096, 4096
          %685 = vsyncadd [#allocation30], %s684
          %s686 = sshll.u32 [#allocation29], 4
          %s687 = int_to_ptr.vmem [resolvable:$true] %s686
          %692 = dma.hbm_to_vmem [thread:$0]  %s17, 4096, %s687, [#allocation30], 128, 128, 8
        $region60: #{xe_transformer_layer.2} parent=11 // pred_fallthru
          _
        // Predicated region
        $region61: #{xe_transformer_layer.2} parent=11 // pred_check
          %p693 = pneg %p480
        $region62: #{xe_transformer_layer.2} parent=11 // pred_check_branch
          %695 = sbr.rel (%p693) target = $region64
        $region63: #{xe_transformer_layer.2} parent=11 // pred_region
          %s697 = ssub.s32 16, 16
          %698 = vsyncadd [#allocation30], %s697
          %s700 = sshll.u32 [#allocation31], 4
          %s701 = int_to_ptr.vmem [resolvable:$true] %s700
          %703 = dma.hbm_to_vmem [thread:$0]  %s18, 16, %s701, [#allocation30]
        $region64: #{xe_transformer_layer.2} parent=11 // pred_fallthru
          _
      $region12: #{xe_transformer_layer.2} parent=5 // pred_fallthru
        _
      %p704 = scmp.lt.s32.totalorder %s51, 4
      // Predicated region
      $region65: #{xe_transformer_layer.2} parent=5 // pred_check
        %p705 = pneg %p704
      $region66: #{xe_transformer_layer.2} parent=5 // pred_check_branch
        %707 = sbr.rel (%p705) target = $region68
      $region67: #{xe_transformer_layer.2} parent=5 // pred_region
        // Predicated region
        $region69: #{xe_transformer_layer.2} parent=67 // pred_check
          %p708 = pneg %p71
        $region70: #{xe_transformer_layer.2} parent=67 // pred_check_branch
          %710 = sbr.rel (%p708) target = $region72
        $region71: #{xe_transformer_layer.2} parent=67 // pred_region
          %s711 = sand.u32 %s61, 1
          %s712 = scalar_lea.sflag [#allocation3], %s711
          %s713 = sand.u32 %s61, 1
          %s714 = smul.addr %s713, 16
          %s715 = scalar_lea.vmem [#allocation2], %s714
          %s717 = ssub.s32 256, 256
          %718 = vsyncadd %s712, %s717
          %s719 = smul.addr %s51, 2
          %s720 = smul.addr %s719, 128
          %s721 = scalar_lea.hbm %s0, %s720
          %s722 = sshll.u32 %s715, 4
          %s723 = int_to_ptr.vmem [resolvable:$true] %s722
          %728 = dma.hbm_to_vmem [thread:$0]  %s721, 256, %s723, %s712, 128, 128, 8
        $region72: #{xe_transformer_layer.2} parent=67 // pred_fallthru
          _
        // Predicated region
        $region73: #{xe_transformer_layer.2} parent=67 // pred_check
          %p729 = pneg %p97
        $region74: #{xe_transformer_layer.2} parent=67 // pred_check_branch
          %731 = sbr.rel (%p729) target = $region76
        $region75: #{xe_transformer_layer.2} parent=67 // pred_region
          %s732 = sand.u32 %s51, 1
          %s733 = scalar_lea.sflag [#allocation6], %s732
          %s734 = sand.u32 %s87, 1
          %s735 = smul.addr %s734, 4
          %s736 = scalar_lea.vmem [#allocation5], %s735
          %s738 = ssub.s32 64, 64
          %739 = vsyncadd %s733, %s738
          %s740 = smul.addr %s51, 2
          %s741 = smul.addr %s740, 32
          %s742 = scalar_lea.hbm %s1, %s741
          %s744 = sshll.u32 %s736, 4
          %s745 = int_to_ptr.vmem [resolvable:$true] %s744
          %747 = dma.hbm_to_vmem [thread:$0]  %s742, 64, %s745, %s733
        $region76: #{xe_transformer_layer.2} parent=67 // pred_fallthru
          _
        // Predicated region
        $region77: #{xe_transformer_layer.2} parent=67 // pred_check
          %p748 = pneg %p123
        $region78: #{xe_transformer_layer.2} parent=67 // pred_check_branch
          %750 = sbr.rel (%p748) target = $region80
        $region79: #{xe_transformer_layer.2} parent=67 // pred_region
          %s751 = sand.u32 %s51, 1
          %s752 = scalar_lea.sflag [#allocation6], %s751
          %s753 = sand.u32 %s113, 1
          %s754 = smul.addr %s753, 16
          %s755 = scalar_lea.vmem [#allocation7], %s754
          %s757 = ssub.s32 256, 256
          %758 = vsyncadd %s752, %s757
          %s759 = smul.addr %s51, 2
          %s760 = smul.addr %s759, 128
          %s761 = scalar_lea.hbm %s2, %s760
          %s762 = sshll.u32 %s755, 4
          %s763 = int_to_ptr.vmem [resolvable:$true] %s762
          %768 = dma.hbm_to_vmem [thread:$0]  %s761, 256, %s763, %s752, 128, 128, 8
        $region80: #{xe_transformer_layer.2} parent=67 // pred_fallthru
          _
        // Predicated region
        $region81: #{xe_transformer_layer.2} parent=67 // pred_check
          %p769 = pneg %p149
        $region82: #{xe_transformer_layer.2} parent=67 // pred_check_branch
          %771 = sbr.rel (%p769) target = $region84
        $region83: #{xe_transformer_layer.2} parent=67 // pred_region
          %s772 = sand.u32 %s51, 1
          %s773 = scalar_lea.sflag [#allocation9], %s772
          %s774 = sand.u32 %s139, 1
          %s775 = smul.addr %s774, 16
          %s776 = scalar_lea.vmem [#allocation8], %s775
          %s778 = ssub.s32 256, 256
          %779 = vsyncadd %s773, %s778
          %s780 = smul.addr %s51, 2
          %s781 = smul.addr %s780, 128
          %s782 = scalar_lea.hbm %s3, %s781
          %s783 = sshll.u32 %s776, 4
          %s784 = int_to_ptr.vmem [resolvable:$true] %s783
          %789 = dma.hbm_to_vmem [thread:$0]  %s782, 256, %s784, %s773, 128, 128, 8
        $region84: #{xe_transformer_layer.2} parent=67 // pred_fallthru
          _
        // Predicated region
        $region85: #{xe_transformer_layer.2} parent=67 // pred_check
          %p790 = pneg %p175
        $region86: #{xe_transformer_layer.2} parent=67 // pred_check_branch
          %792 = sbr.rel (%p790) target = $region88
        $region87: #{xe_transformer_layer.2} parent=67 // pred_region
          %s793 = sand.u32 %s51, 1
          %s794 = scalar_lea.sflag [#allocation9], %s793
          %s795 = sand.u32 %s165, 1
          %s796 = smul.addr %s795, 4
          %s797 = scalar_lea.vmem [#allocation10], %s796
          %s799 = ssub.s32 64, 64
          %800 = vsyncadd %s794, %s799
          %s801 = smul.addr %s51, 2
          %s802 = smul.addr %s801, 32
          %s803 = scalar_lea.hbm %s4, %s802
          %s805 = sshll.u32 %s797, 4
          %s806 = int_to_ptr.vmem [resolvable:$true] %s805
          %808 = dma.hbm_to_vmem [thread:$0]  %s803, 64, %s806, %s794
        $region88: #{xe_transformer_layer.2} parent=67 // pred_fallthru
          _
        // Predicated region
        $region89: #{xe_transformer_layer.2} parent=67 // pred_check
          %p809 = pneg %p201
        $region90: #{xe_transformer_layer.2} parent=67 // pred_check_branch
          %811 = sbr.rel (%p809) target = $region92
        $region91: #{xe_transformer_layer.2} parent=67 // pred_region
          %s812 = sand.u32 %s51, 1
          %s813 = scalar_lea.sflag [#allocation12], %s812
          %s814 = sand.u32 %s191, 1
          %s815 = smul.addr %s814, 2
          %s816 = scalar_lea.vmem [#allocation11], %s815
          %s818 = ssub.s32 32, 32
          %819 = vsyncadd %s813, %s818
          %s820 = smul.addr %s51, 32
          %s821 = scalar_lea.hbm %s5, %s820
          %s823 = sshll.u32 %s816, 4
          %s824 = int_to_ptr.vmem [resolvable:$true] %s823
          %826 = dma.hbm_to_vmem [thread:$0]  %s821, 32, %s824, %s813
        $region92: #{xe_transformer_layer.2} parent=67 // pred_fallthru
          _
      $region68: #{xe_transformer_layer.2} parent=5 // pred_fallthru
        _
      %p827 = scmp.le.s32.totalorder 1, %s51
      %p828 = scmp.lt.s32.totalorder %s51, 5
      %p829 = pnand %p827, %p828
      %p830 = pneg %p829
      // Predicated region
      $region93: #{xe_transformer_layer.2} parent=5 // pred_check
        _
      $region94: #{xe_transformer_layer.2} parent=5 // pred_check_branch
        %832 = sbr.rel (%p829) target = $region96
      $region95: #{xe_transformer_layer.2} parent=5 // pred_region
        %s833 = ssub.s32 %s51, 1
        %s834 = sand.u32 %s64, 1
        %s835 = scalar_lea.sflag [#allocation3], %s834
        %s836 = sand.u32 %s64, 1
        %s837 = smul.addr %s836, 16
        %s838 = scalar_lea.vmem [#allocation2], %s837
        // Predicated region
        $region97: #{xe_transformer_layer.2} parent=95 // pred_check
          %p839 = pneg %p77
        $region98: #{xe_transformer_layer.2} parent=95 // pred_check_branch
          %841 = sbr.rel (%p839) target = $region100
        $region99: #{xe_transformer_layer.2} parent=95 // pred_region
          %842 = dma.done %s835, 256
        $region100: #{xe_transformer_layer.2} parent=95 // pred_fallthru
          _
        %s843 = sand.u32 %s56, 1
        %s844 = scalar_lea.sflag [#allocation6], %s843
        %s845 = sand.u32 %s90, 1
        %s846 = smul.addr %s845, 4
        %s847 = scalar_lea.vmem [#allocation5], %s846
        // Predicated region
        $region101: #{xe_transformer_layer.2} parent=95 // pred_check
          %p848 = pneg %p103
        $region102: #{xe_transformer_layer.2} parent=95 // pred_check_branch
          %850 = sbr.rel (%p848) target = $region104
        $region103: #{xe_transformer_layer.2} parent=95 // pred_region
          %851 = dma.done %s844, 64
        $region104: #{xe_transformer_layer.2} parent=95 // pred_fallthru
          _
        %s852 = sand.u32 %s56, 1
        %s853 = scalar_lea.sflag [#allocation6], %s852
        %s854 = sand.u32 %s116, 1
        %s855 = smul.addr %s854, 16
        %s856 = scalar_lea.vmem [#allocation7], %s855
        // Predicated region
        $region105: #{xe_transformer_layer.2} parent=95 // pred_check
          %p857 = pneg %p129
        $region106: #{xe_transformer_layer.2} parent=95 // pred_check_branch
          %859 = sbr.rel (%p857) target = $region108
        $region107: #{xe_transformer_layer.2} parent=95 // pred_region
          %860 = dma.done %s853, 256
        $region108: #{xe_transformer_layer.2} parent=95 // pred_fallthru
          _
        %s861 = sand.u32 %s56, 1
        %s862 = scalar_lea.sflag [#allocation9], %s861
        %s863 = sand.u32 %s142, 1
        %s864 = smul.addr %s863, 16
        %s865 = scalar_lea.vmem [#allocation8], %s864
        // Predicated region
        $region109: #{xe_transformer_layer.2} parent=95 // pred_check
          %p866 = pneg %p155
        $region110: #{xe_transformer_layer.2} parent=95 // pred_check_branch
          %868 = sbr.rel (%p866) target = $region112
        $region111: #{xe_transformer_layer.2} parent=95 // pred_region
          %869 = dma.done %s862, 256
        $region112: #{xe_transformer_layer.2} parent=95 // pred_fallthru
          _
        %s870 = sand.u32 %s56, 1
        %s871 = scalar_lea.sflag [#allocation9], %s870
        %s872 = sand.u32 %s168, 1
        %s873 = smul.addr %s872, 4
        %s874 = scalar_lea.vmem [#allocation10], %s873
        // Predicated region
        $region113: #{xe_transformer_layer.2} parent=95 // pred_check
          %p875 = pneg %p181
        $region114: #{xe_transformer_layer.2} parent=95 // pred_check_branch
          %877 = sbr.rel (%p875) target = $region116
        $region115: #{xe_transformer_layer.2} parent=95 // pred_region
          %878 = dma.done %s871, 64
        $region116: #{xe_transformer_layer.2} parent=95 // pred_fallthru
          _
        %s879 = sand.u32 %s56, 1
        %s880 = scalar_lea.sflag [#allocation12], %s879
        %s881 = sand.u32 %s194, 1
        %s882 = smul.addr %s881, 2
        %s883 = scalar_lea.vmem [#allocation11], %s882
        // Predicated region
        $region117: #{xe_transformer_layer.2} parent=95 // pred_check
          %p884 = pneg %p207
        $region118: #{xe_transformer_layer.2} parent=95 // pred_check_branch
          %886 = sbr.rel (%p884) target = $region120
        $region119: #{xe_transformer_layer.2} parent=95 // pred_region
          %887 = dma.done %s880, 32
        $region120: #{xe_transformer_layer.2} parent=95 // pred_fallthru
          _
        // Predicated region
        $region121: #{xe_transformer_layer.2} parent=95 // pred_check
          %p888 = pneg %p228
        $region122: #{xe_transformer_layer.2} parent=95 // pred_check_branch
          %890 = sbr.rel (%p888) target = $region124
        $region123: #{xe_transformer_layer.2} parent=95 // pred_region
          %891 = dma.done [#allocation12], 1024
        $region124: #{xe_transformer_layer.2} parent=95 // pred_fallthru
          _
        // Predicated region
        $region125: #{xe_transformer_layer.2} parent=95 // pred_check
          %p892 = pneg %p249
        $region126: #{xe_transformer_layer.2} parent=95 // pred_check_branch
          %894 = sbr.rel (%p892) target = $region128
        $region127: #{xe_transformer_layer.2} parent=95 // pred_region
          %895 = dma.done [#allocation15], 32
        $region128: #{xe_transformer_layer.2} parent=95 // pred_fallthru
          _
        // Predicated region
        $region129: #{xe_transformer_layer.2} parent=95 // pred_check
          %p896 = pneg %p270
        $region130: #{xe_transformer_layer.2} parent=95 // pred_check_branch
          %898 = sbr.rel (%p896) target = $region132
        $region131: #{xe_transformer_layer.2} parent=95 // pred_region
          %899 = dma.done [#allocation15], 16384
        $region132: #{xe_transformer_layer.2} parent=95 // pred_fallthru
          _
        // Predicated region
        $region133: #{xe_transformer_layer.2} parent=95 // pred_check
          %p900 = pneg %p291
        $region134: #{xe_transformer_layer.2} parent=95 // pred_check_branch
          %902 = sbr.rel (%p900) target = $region136
        $region135: #{xe_transformer_layer.2} parent=95 // pred_region
          %903 = dma.done [#allocation18], 64
        $region136: #{xe_transformer_layer.2} parent=95 // pred_fallthru
          _
        // Predicated region
        $region137: #{xe_transformer_layer.2} parent=95 // pred_check
          %p904 = pneg %p312
        $region138: #{xe_transformer_layer.2} parent=95 // pred_check_branch
          %906 = sbr.rel (%p904) target = $region140
        $region139: #{xe_transformer_layer.2} parent=95 // pred_region
          %907 = dma.done [#allocation18], 8192
        $region140: #{xe_transformer_layer.2} parent=95 // pred_fallthru
          _
        // Predicated region
        $region141: #{xe_transformer_layer.2} parent=95 // pred_check
          %p908 = pneg %p333
        $region142: #{xe_transformer_layer.2} parent=95 // pred_check_branch
          %910 = sbr.rel (%p908) target = $region144
        $region143: #{xe_transformer_layer.2} parent=95 // pred_region
          %911 = dma.done [#allocation21], 64
        $region144: #{xe_transformer_layer.2} parent=95 // pred_fallthru
          _
        // Predicated region
        $region145: #{xe_transformer_layer.2} parent=95 // pred_check
          %p912 = pneg %p354
        $region146: #{xe_transformer_layer.2} parent=95 // pred_check_branch
          %914 = sbr.rel (%p912) target = $region148
        $region147: #{xe_transformer_layer.2} parent=95 // pred_region
          %915 = dma.done [#allocation21], 4096
        $region148: #{xe_transformer_layer.2} parent=95 // pred_fallthru
          _
        // Predicated region
        $region149: #{xe_transformer_layer.2} parent=95 // pred_check
          %p916 = pneg %p375
        $region150: #{xe_transformer_layer.2} parent=95 // pred_check_branch
          %918 = sbr.rel (%p916) target = $region152
        $region151: #{xe_transformer_layer.2} parent=95 // pred_region
          %919 = dma.done [#allocation24], 16
        $region152: #{xe_transformer_layer.2} parent=95 // pred_fallthru
          _
        // Predicated region
        $region153: #{xe_transformer_layer.2} parent=95 // pred_check
          %p920 = pneg %p396
        $region154: #{xe_transformer_layer.2} parent=95 // pred_check_branch
          %922 = sbr.rel (%p920) target = $region156
        $region155: #{xe_transformer_layer.2} parent=95 // pred_region
          %923 = dma.done [#allocation24], 2048
        $region156: #{xe_transformer_layer.2} parent=95 // pred_fallthru
          _
        // Predicated region
        $region157: #{xe_transformer_layer.2} parent=95 // pred_check
          %p924 = pneg %p417
        $region158: #{xe_transformer_layer.2} parent=95 // pred_check_branch
          %926 = sbr.rel (%p924) target = $region160
        $region159: #{xe_transformer_layer.2} parent=95 // pred_region
          %927 = dma.done [#allocation27], 16
        $region160: #{xe_transformer_layer.2} parent=95 // pred_fallthru
          _
        // Predicated region
        $region161: #{xe_transformer_layer.2} parent=95 // pred_check
          %p928 = pneg %p438
        $region162: #{xe_transformer_layer.2} parent=95 // pred_check_branch
          %930 = sbr.rel (%p928) target = $region164
        $region163: #{xe_transformer_layer.2} parent=95 // pred_region
          %931 = dma.done [#allocation27], 8192
        $region164: #{xe_transformer_layer.2} parent=95 // pred_fallthru
          _
        // Predicated region
        $region165: #{xe_transformer_layer.2} parent=95 // pred_check
          %p932 = pneg %p459
        $region166: #{xe_transformer_layer.2} parent=95 // pred_check_branch
          %934 = sbr.rel (%p932) target = $region168
        $region167: #{xe_transformer_layer.2} parent=95 // pred_region
          %935 = dma.done [#allocation30], 4096
        $region168: #{xe_transformer_layer.2} parent=95 // pred_fallthru
          _
        // Predicated region
        $region169: #{xe_transformer_layer.2} parent=95 // pred_check
          %p936 = pneg %p480
        $region170: #{xe_transformer_layer.2} parent=95 // pred_check_branch
          %938 = sbr.rel (%p936) target = $region172
        $region171: #{xe_transformer_layer.2} parent=95 // pred_region
          %939 = dma.done [#allocation30], 16
        $region172: #{xe_transformer_layer.2} parent=95 // pred_fallthru
          _
        %s940 = sand.u32 %s64, 1
        %s941 = scalar_lea.sflag [#allocation3], %s940
        %s942 = sand.u32 %s64, 1
        %s943 = smul.addr %s942, 16
        %s944 = scalar_lea.vmem [#allocation2], %s943
        %p945 = pneg %p77
        %p946 = pneg %p74
        %s947 = sand.u32 %s56, 1
        %s948 = scalar_lea.sflag [#allocation6], %s947
        %s949 = sand.u32 %s90, 1
        %s950 = smul.addr %s949, 4
        %s951 = scalar_lea.vmem [#allocation5], %s950
        %p952 = pneg %p103
        %p953 = pneg %p100
        %s954 = sand.u32 %s56, 1
        %s955 = scalar_lea.sflag [#allocation6], %s954
        %s956 = sand.u32 %s116, 1
        %s957 = smul.addr %s956, 16
        %s958 = scalar_lea.vmem [#allocation7], %s957
        %p959 = pneg %p129
        %p960 = pneg %p126
        %s961 = sand.u32 %s56, 1
        %s962 = scalar_lea.sflag [#allocation9], %s961
        %s963 = sand.u32 %s142, 1
        %s964 = smul.addr %s963, 16
        %s965 = scalar_lea.vmem [#allocation8], %s964
        %p966 = pneg %p155
        %p967 = pneg %p152
        %s968 = sand.u32 %s56, 1
        %s969 = scalar_lea.sflag [#allocation9], %s968
        %s970 = sand.u32 %s168, 1
        %s971 = smul.addr %s970, 4
        %s972 = scalar_lea.vmem [#allocation10], %s971
        %p973 = pneg %p181
        %p974 = pneg %p178
        %s975 = sand.u32 %s56, 1
        %s976 = scalar_lea.sflag [#allocation12], %s975
        %s977 = sand.u32 %s194, 1
        %s978 = smul.addr %s977, 2
        %s979 = scalar_lea.vmem [#allocation11], %s978
        %p980 = pneg %p207
        %p981 = pneg %p204
        %p982 = pneg %p228
        %p983 = pneg %p225
        %p984 = pneg %p249
        %p985 = pneg %p246
        %p986 = pneg %p270
        %p987 = pneg %p267
        %p988 = pneg %p291
        %p989 = pneg %p288
        %p990 = pneg %p312
        %p991 = pneg %p309
        %p992 = pneg %p333
        %p993 = pneg %p330
        %p994 = pneg %p354
        %p995 = pneg %p351
        %p996 = pneg %p375
        %p997 = pneg %p372
        %p998 = pneg %p396
        %p999 = pneg %p393
        %p1000 = pneg %p417
        %p1001 = pneg %p414
        %p1002 = pneg %p438
        %p1003 = pneg %p435
        %p1004 = pneg %p459
        %p1005 = pneg %p456
        %p1006 = pneg %p480
        %p1007 = pneg %p477
        %p1008 = pneg %p506
        %p1009 = pneg %p503
        %s1010 = sand.u32 %s493, 1
        %s1011 = scalar_lea.sflag [#allocation4], %s1010
        %s1012 = sand.u32 %s493, 1
        %s1013 = smul.addr %s1012, 16
        %s1014 = scalar_lea.vmem [#allocation32], %s1013
        %p1015 = pneg %p532
        %p1016 = pneg %p529
        %s1017 = sand.u32 %s519, 1
        %s1018 = scalar_lea.sflag [#allocation34], %s1017
        %s1019 = sand.u32 %s519, 1
        %s1020 = smul.addr %s1019, 16
        %s1021 = scalar_lea.vmem [#allocation33], %s1020
        %v1022 = vld [vmem:[%s838] sm:$0xff]
        %v1023 = vld [vmem:[%s838 + $0x8] sm:$0xff]
        %v1024 = vld [vmem:[%s847] sm:$0xf]
        %v1025 = vld [vmem:[%s856] sm:$0xff]
        %v1026 = vld [vmem:[%s856 + $0x8] sm:$0xff]
        %v1027 = vld [vmem:[%s865] sm:$0xff]
        %v1028 = vld [vmem:[%s865 + $0x8] sm:$0xff]
        %v1029 = vld [vmem:[%s874] sm:$0xf]
        %v1030 = vld [vmem:[%s883] sm:$0x3]
        %v1031 = vld [vmem:[#allocation13] sm:$0xff]
        %v1032 = vld [vmem:[#allocation13 + $0x8] sm:$0xff]
        %v1033 = vld [vmem:[#allocation13 + $0x10] sm:$0xff]
        %v1034 = vld [vmem:[#allocation13 + $0x18] sm:$0xff]
        %v1035 = vld [vmem:[#allocation13 + $0x20] sm:$0xff]
        %v1036 = vld [vmem:[#allocation13 + $0x28] sm:$0xff]
        %v1037 = vld [vmem:[#allocation13 + $0x30] sm:$0xff]
        %v1038 = vld [vmem:[#allocation13 + $0x38] sm:$0xff]
        %v1039 = vld [vmem:[#allocation14] sm:$0x3]
        %v1041 = vlaneseq
        %v1042 = vshrl.u32 %v1041, 7
        %v1043 = vsub.s32 0, %v1042
        %v1044 = vrot.slane %v1039, %v1043
        %v1045 = vlaneseq
        %v1046 = vshrl.u32 %v1045, 7
        %v1047 = vsub.s32 1, %v1046
        %v1048 = vrot.slane %v1039, %v1047
        %vm1051 = vcmask 261120
        %v1053 = vsel %vm1051, %v1022, 0
        %v1056 = vsel %vm1051, %v1023, 0
        %1058 = vmatprep.subr.mxu0 %v1032
        %1059 = vmatpush1.msra.mxu0 %v1031
        %1060 = vmatprep.subr.mxu0 %v1034
        %1061 = vmatpush1.msra.mxu0 %v1033
        %1062 = vmatprep.subr.mxu0 %v1036
        %1063 = vmatpush1.msra.mxu0 %v1035
        %1064 = vmatprep.subr.mxu0 %v1038
        %1065 = vmatpush1.msra.mxu0 %v1037
        %1066 = vmatprep.subr.mxu0 0.0
        %1067 = vmatpush1.msra.mxu0 0.0
        %1068 = vmatprep.subr.mxu0 0.0
        %1069 = vmatpush1.msra.mxu0 0.0
        %1070 = vmatprep.subr.mxu0 0.0
        %1071 = vmatpush1.msra.mxu0 0.0
        %1072 = vmatprep.subr.mxu0 0.0
        %1073 = vmatpush1.msra.mxu0 0.0
        %1074 = vmatprep.subr.mxu0 0.0
        %1075 = vmatpush1.msra.mxu0 0.0
        %1076 = vmatprep.subr.mxu0 0.0
        %1077 = vmatpush1.msra.mxu0 0.0
        %1078 = vmatprep.subr.mxu0 0.0
        %1079 = vmatpush1.msra.mxu0 0.0
        %1080 = vmatprep.subr.mxu0 0.0
        %1081 = vmatpush1.msra.mxu0 0.0
        %1082 = vmatprep.subr.mxu0 0.0
        %1083 = vmatpush1.msra.mxu0 0.0
        %1084 = vmatprep.subr.mxu0 0.0
        %1085 = vmatpush1.msra.mxu0 0.0
        %1086 = vmatprep.subr.mxu0 0.0
        %1087 = vmatpush1.msra.mxu0 0.0
        %1088 = vmatprep.subr.mxu0 0.0
        %1089 = vmatpush1.msra.mxu0 0.0
        %1090 = vmatprep.subr.mxu0 0.0
        %1091 = vmatpush1.msra.mxu0 0.0
        %1092 = vmatprep.subr.mxu0 0.0
        %1093 = vmatpush1.msra.mxu0 0.0
        %1094 = vmatprep.subr.mxu0 0.0
        %1095 = vmatpush1.msra.mxu0 0.0
        %1096 = vmatprep.subr.mxu0 0.0
        %1097 = vmatpush1.msra.mxu0 0.0
        %1098 = vmatprep.subr.mxu0 0.0
        %1099 = vmatpush1.msra.mxu0 0.0
        %1100 = vmatprep.subr.mxu0 0.0
        %1101 = vmatpush1.msra.mxu0 0.0
        %1102 = vmatprep.subr.mxu0 0.0
        %1103 = vmatpush1.msra.mxu0 0.0
        %1104 = vmatprep.subr.mxu0 0.0
        %1105 = vmatpush1.msra.mxu0 0.0
        %1106 = vmatprep.subr.mxu0 0.0
        %1107 = vmatpush1.msra.mxu0 0.0
        %1108 = vmatprep.subr.mxu0 0.0
        %1109 = vmatpush1.msra.mxu0 0.0
        %1110 = vmatprep.subr.mxu0 0.0
        %1111 = vmatpush1.msra.mxu0 0.0
        %1112 = vmatprep.subr.mxu0 0.0
        %1113 = vmatpush1.msra.mxu0 0.0
        %1114 = vmatprep.subr.mxu0 0.0
        %1115 = vmatpush1.msra.mxu0 0.0
        %1116 = vmatprep.subr.mxu0 0.0
        %1117 = vmatpush1.msra.mxu0 0.0
        %1118 = vmatprep.subr.mxu0 0.0
        %1119 = vmatpush1.msra.mxu0 0.0
        %1120 = vmatprep.subr.mxu0 0.0
        %1121 = vmatpush1.msra.mxu0 0.0
        %1122 = vmatprep.mubr.f32.mxu0 0.0
        %1123 = vmatmul.mubr.f32.gmra.mrb[0].mxu0 %v1053
        %v1124 = vpop.f32.mrb[0].mxu0
        %v1125 = vadd.f32 %v1044, %v1124
        %v1126 = vpop.f32.mrb[0].mxu0
        %v1127 = vadd.f32 %v1048, %v1126
        %1128 = vmatprep.mubr.f32.mxu0 0.0
        %1129 = vmatmul.mubr.f32.gmra.mrb[0].mxu0 %v1056
        %v1130 = vpop.f32.mrb[0].mxu0
        %v1131 = vadd.f32 %v1044, %v1130
        %v1132 = vpop.f32.mrb[0].mxu0
        %v1133 = vadd.f32 %v1048, %v1132
        %1134 = vdwg.mxu0
        %v1135 = vld [vmem:[#allocation16] sm:$0xff]
        %v1136 = vld [vmem:[#allocation16 + $0x8] sm:$0xff]
        %v1137 = vld [vmem:[#allocation16 + $0x10] sm:$0xff]
        %v1138 = vld [vmem:[#allocation16 + $0x18] sm:$0xff]
        %v1139 = vld [vmem:[#allocation16 + $0x20] sm:$0xff]
        %v1140 = vld [vmem:[#allocation16 + $0x28] sm:$0xff]
        %v1141 = vld [vmem:[#allocation16 + $0x30] sm:$0xff]
        %v1142 = vld [vmem:[#allocation16 + $0x38] sm:$0xff]
        %v1143 = vld [vmem:[#allocation16 + $0x40] sm:$0xff]
        %v1144 = vld [vmem:[#allocation16 + $0x48] sm:$0xff]
        %v1145 = vld [vmem:[#allocation16 + $0x50] sm:$0xff]
        %v1146 = vld [vmem:[#allocation16 + $0x58] sm:$0xff]
        %v1147 = vld [vmem:[#allocation16 + $0x60] sm:$0xff]
        %v1148 = vld [vmem:[#allocation16 + $0x68] sm:$0xff]
        %v1149 = vld [vmem:[#allocation16 + $0x70] sm:$0xff]
        %v1150 = vld [vmem:[#allocation16 + $0x78] sm:$0xff]
        %v1151 = vld [vmem:[#allocation16 + $0x80] sm:$0xff]
        %v1152 = vld [vmem:[#allocation16 + $0x88] sm:$0xff]
        %v1153 = vld [vmem:[#allocation16 + $0x90] sm:$0xff]
        %v1154 = vld [vmem:[#allocation16 + $0x98] sm:$0xff]
        %v1155 = vld [vmem:[#allocation16 + $0xa0] sm:$0xff]
        %v1156 = vld [vmem:[#allocation16 + $0xa8] sm:$0xff]
        %v1157 = vld [vmem:[#allocation16 + $0xb0] sm:$0xff]
        %v1158 = vld [vmem:[#allocation16 + $0xb8] sm:$0xff]
        %v1159 = vld [vmem:[#allocation16 + $0xc0] sm:$0xff]
        %v1160 = vld [vmem:[#allocation16 + $0xc8] sm:$0xff]
        %v1161 = vld [vmem:[#allocation16 + $0xd0] sm:$0xff]
        %v1162 = vld [vmem:[#allocation16 + $0xd8] sm:$0xff]
        %v1163 = vld [vmem:[#allocation16 + $0xe0] sm:$0xff]
        %v1164 = vld [vmem:[#allocation16 + $0xe8] sm:$0xff]
        %v1165 = vld [vmem:[#allocation16 + $0xf0] sm:$0xff]
        %v1166 = vld [vmem:[#allocation16 + $0xf8] sm:$0xff]
        %v1167 = vld [vmem:[#allocation16 + $0x100] sm:$0xff]
        %v1168 = vld [vmem:[#allocation16 + $0x108] sm:$0xff]
        %v1169 = vld [vmem:[#allocation16 + $0x110] sm:$0xff]
        %v1170 = vld [vmem:[#allocation16 + $0x118] sm:$0xff]
        %v1171 = vld [vmem:[#allocation16 + $0x120] sm:$0xff]
        %v1172 = vld [vmem:[#allocation16 + $0x128] sm:$0xff]
        %v1173 = vld [vmem:[#allocation16 + $0x130] sm:$0xff]
        %v1174 = vld [vmem:[#allocation16 + $0x138] sm:$0xff]
        %v1175 = vld [vmem:[#allocation16 + $0x140] sm:$0xff]
        %v1176 = vld [vmem:[#allocation16 + $0x148] sm:$0xff]
        %v1177 = vld [vmem:[#allocation16 + $0x150] sm:$0xff]
        %v1178 = vld [vmem:[#allocation16 + $0x158] sm:$0xff]
        %v1179 = vld [vmem:[#allocation16 + $0x160] sm:$0xff]
        %v1180 = vld [vmem:[#allocation16 + $0x168] sm:$0xff]
        %v1181 = vld [vmem:[#allocation16 + $0x170] sm:$0xff]
        %v1182 = vld [vmem:[#allocation16 + $0x178] sm:$0xff]
        %v1183 = vld [vmem:[#allocation16 + $0x180] sm:$0xff]
        %v1184 = vld [vmem:[#allocation16 + $0x188] sm:$0xff]
        %v1185 = vld [vmem:[#allocation16 + $0x190] sm:$0xff]
        %v1186 = vld [vmem:[#allocation16 + $0x198] sm:$0xff]
        %v1187 = vld [vmem:[#allocation16 + $0x1a0] sm:$0xff]
        %v1188 = vld [vmem:[#allocation16 + $0x1a8] sm:$0xff]
        %v1189 = vld [vmem:[#allocation16 + $0x1b0] sm:$0xff]
        %v1190 = vld [vmem:[#allocation16 + $0x1b8] sm:$0xff]
        %v1191 = vld [vmem:[#allocation16 + $0x1c0] sm:$0xff]
        %v1192 = vld [vmem:[#allocation16 + $0x1c8] sm:$0xff]
        %v1193 = vld [vmem:[#allocation16 + $0x1d0] sm:$0xff]
        %v1194 = vld [vmem:[#allocation16 + $0x1d8] sm:$0xff]
        %v1195 = vld [vmem:[#allocation16 + $0x1e0] sm:$0xff]
        %v1196 = vld [vmem:[#allocation16 + $0x1e8] sm:$0xff]
        %v1197 = vld [vmem:[#allocation16 + $0x1f0] sm:$0xff]
        %v1198 = vld [vmem:[#allocation16 + $0x1f8] sm:$0xff]
        %v1199 = vld [vmem:[#allocation16 + $0x200] sm:$0xff]
        %v1200 = vld [vmem:[#allocation16 + $0x208] sm:$0xff]
        %v1201 = vld [vmem:[#allocation16 + $0x210] sm:$0xff]
        %v1202 = vld [vmem:[#allocation16 + $0x218] sm:$0xff]
        %v1203 = vld [vmem:[#allocation16 + $0x220] sm:$0xff]
        %v1204 = vld [vmem:[#allocation16 + $0x228] sm:$0xff]
        %v1205 = vld [vmem:[#allocation16 + $0x230] sm:$0xff]
        %v1206 = vld [vmem:[#allocation16 + $0x238] sm:$0xff]
        %v1207 = vld [vmem:[#allocation16 + $0x240] sm:$0xff]
        %v1208 = vld [vmem:[#allocation16 + $0x248] sm:$0xff]
        %v1209 = vld [vmem:[#allocation16 + $0x250] sm:$0xff]
        %v1210 = vld [vmem:[#allocation16 + $0x258] sm:$0xff]
        %v1211 = vld [vmem:[#allocation16 + $0x260] sm:$0xff]
        %v1212 = vld [vmem:[#allocation16 + $0x268] sm:$0xff]
        %v1213 = vld [vmem:[#allocation16 + $0x270] sm:$0xff]
        %v1214 = vld [vmem:[#allocation16 + $0x278] sm:$0xff]
        %v1215 = vld [vmem:[#allocation16 + $0x280] sm:$0xff]
        %v1216 = vld [vmem:[#allocation16 + $0x288] sm:$0xff]
        %v1217 = vld [vmem:[#allocation16 + $0x290] sm:$0xff]
        %v1218 = vld [vmem:[#allocation16 + $0x298] sm:$0xff]
        %v1219 = vld [vmem:[#allocation16 + $0x2a0] sm:$0xff]
        %v1220 = vld [vmem:[#allocation16 + $0x2a8] sm:$0xff]
        %v1221 = vld [vmem:[#allocation16 + $0x2b0] sm:$0xff]
        %v1222 = vld [vmem:[#allocation16 + $0x2b8] sm:$0xff]
        %v1223 = vld [vmem:[#allocation16 + $0x2c0] sm:$0xff]
        %v1224 = vld [vmem:[#allocation16 + $0x2c8] sm:$0xff]
        %v1225 = vld [vmem:[#allocation16 + $0x2d0] sm:$0xff]
        %v1226 = vld [vmem:[#allocation16 + $0x2d8] sm:$0xff]
        %v1227 = vld [vmem:[#allocation16 + $0x2e0] sm:$0xff]
        %v1228 = vld [vmem:[#allocation16 + $0x2e8] sm:$0xff]
        %v1229 = vld [vmem:[#allocation16 + $0x2f0] sm:$0xff]
        %v1230 = vld [vmem:[#allocation16 + $0x2f8] sm:$0xff]
        %v1231 = vld [vmem:[#allocation16 + $0x300] sm:$0xff]
        %v1232 = vld [vmem:[#allocation16 + $0x308] sm:$0xff]
        %v1233 = vld [vmem:[#allocation16 + $0x310] sm:$0xff]
        %v1234 = vld [vmem:[#allocation16 + $0x318] sm:$0xff]
        %v1235 = vld [vmem:[#allocation16 + $0x320] sm:$0xff]
        %v1236 = vld [vmem:[#allocation16 + $0x328] sm:$0xff]
        %v1237 = vld [vmem:[#allocation16 + $0x330] sm:$0xff]
        %v1238 = vld [vmem:[#allocation16 + $0x338] sm:$0xff]
        %v1239 = vld [vmem:[#allocation16 + $0x340] sm:$0xff]
        %v1240 = vld [vmem:[#allocation16 + $0x348] sm:$0xff]
        %v1241 = vld [vmem:[#allocation16 + $0x350] sm:$0xff]
        %v1242 = vld [vmem:[#allocation16 + $0x358] sm:$0xff]
        %v1243 = vld [vmem:[#allocation16 + $0x360] sm:$0xff]
        %v1244 = vld [vmem:[#allocation16 + $0x368] sm:$0xff]
        %v1245 = vld [vmem:[#allocation16 + $0x370] sm:$0xff]
        %v1246 = vld [vmem:[#allocation16 + $0x378] sm:$0xff]
        %v1247 = vld [vmem:[#allocation16 + $0x380] sm:$0xff]
        %v1248 = vld [vmem:[#allocation16 + $0x388] sm:$0xff]
        %v1249 = vld [vmem:[#allocation16 + $0x390] sm:$0xff]
        %v1250 = vld [vmem:[#allocation16 + $0x398] sm:$0xff]
        %v1251 = vld [vmem:[#allocation16 + $0x3a0] sm:$0xff]
        %v1252 = vld [vmem:[#allocation16 + $0x3a8] sm:$0xff]
        %v1253 = vld [vmem:[#allocation16 + $0x3b0] sm:$0xff]
        %v1254 = vld [vmem:[#allocation16 + $0x3b8] sm:$0xff]
        %v1255 = vld [vmem:[#allocation16 + $0x3c0] sm:$0xff]
        %v1256 = vld [vmem:[#allocation16 + $0x3c8] sm:$0xff]
        %v1257 = vld [vmem:[#allocation16 + $0x3d0] sm:$0xff]
        %v1258 = vld [vmem:[#allocation16 + $0x3d8] sm:$0xff]
        %v1259 = vld [vmem:[#allocation16 + $0x3e0] sm:$0xff]
        %v1260 = vld [vmem:[#allocation16 + $0x3e8] sm:$0xff]
        %v1261 = vld [vmem:[#allocation16 + $0x3f0] sm:$0xff]
        %v1262 = vld [vmem:[#allocation16 + $0x3f8] sm:$0xff]
        %v1263 = vld [vmem:[#allocation17] sm:$0xf]
        %v1265 = vlaneseq
        %v1266 = vshrl.u32 %v1265, 7
        %v1267 = vsub.s32 0, %v1266
        %v1268 = vrot.slane %v1263, %v1267
        %v1269 = vlaneseq
        %v1270 = vshrl.u32 %v1269, 7
        %v1271 = vsub.s32 1, %v1270
        %v1272 = vrot.slane %v1263, %v1271
        %v1273 = vlaneseq
        %v1274 = vshrl.u32 %v1273, 7
        %v1275 = vsub.s32 2, %v1274
        %v1276 = vrot.slane %v1263, %v1275
        %v1277 = vlaneseq
        %v1278 = vshrl.u32 %v1277, 7
        %v1279 = vsub.s32 3, %v1278
        %v1280 = vrot.slane %v1263, %v1279
        %v1287 = vunpack.c.l.s4 1983009808
        %v1288 = vunpack.c.0.s8 %v1287
        %v1289 = vlaneseq
        %v1290 = vshrl.u32 %v1289, 7
        %v1291 = vsub.s32 %v1288, %v1290
        %v1292 = vrot.slane %v1024, %v1291
        %v1293 = vcombine.high %v1292, %v1292
        %1296 = vmatprep.subr.mxu0 %v1136
        %1297 = vmatpush1.msra.mxu0 %v1135
        %1298 = vmatprep.subr.mxu0 %v1140
        %1299 = vmatpush1.msra.mxu0 %v1139
        %1300 = vmatprep.subr.mxu0 %v1144
        %1301 = vmatpush1.msra.mxu0 %v1143
        %1302 = vmatprep.subr.mxu0 %v1148
        %1303 = vmatpush1.msra.mxu0 %v1147
        %1304 = vmatprep.subr.mxu0 %v1152
        %1305 = vmatpush1.msra.mxu0 %v1151
        %1306 = vmatprep.subr.mxu0 %v1156
        %1307 = vmatpush1.msra.mxu0 %v1155
        %1308 = vmatprep.subr.mxu0 %v1160
        %1309 = vmatpush1.msra.mxu0 %v1159
        %1310 = vmatprep.subr.mxu0 %v1164
        %1311 = vmatpush1.msra.mxu0 %v1163
        %1312 = vmatprep.subr.mxu0 %v1168
        %1313 = vmatpush1.msra.mxu0 %v1167
        %1314 = vmatprep.subr.mxu0 %v1172
        %1315 = vmatpush1.msra.mxu0 %v1171
        %1316 = vmatprep.subr.mxu0 %v1176
        %1317 = vmatpush1.msra.mxu0 %v1175
        %1318 = vmatprep.subr.mxu0 %v1180
        %1319 = vmatpush1.msra.mxu0 %v1179
        %1320 = vmatprep.subr.mxu0 %v1184
        %1321 = vmatpush1.msra.mxu0 %v1183
        %1322 = vmatprep.subr.mxu0 %v1188
        %1323 = vmatpush1.msra.mxu0 %v1187
        %1324 = vmatprep.subr.mxu0 %v1192
        %1325 = vmatpush1.msra.mxu0 %v1191
        %1326 = vmatprep.subr.mxu0 %v1196
        %1327 = vmatpush1.msra.mxu0 %v1195
        %1328 = vmatprep.subr.mxu0 %v1200
        %1329 = vmatpush1.msra.mxu0 %v1199
        %1330 = vmatprep.subr.mxu0 %v1204
        %1331 = vmatpush1.msra.mxu0 %v1203
        %1332 = vmatprep.subr.mxu0 %v1208
        %1333 = vmatpush1.msra.mxu0 %v1207
        %1334 = vmatprep.subr.mxu0 %v1212
        %1335 = vmatpush1.msra.mxu0 %v1211
        %1336 = vmatprep.subr.mxu0 %v1216
        %1337 = vmatpush1.msra.mxu0 %v1215
        %1338 = vmatprep.subr.mxu0 %v1220
        %1339 = vmatpush1.msra.mxu0 %v1219
        %1340 = vmatprep.subr.mxu0 %v1224
        %1341 = vmatpush1.msra.mxu0 %v1223
        %1342 = vmatprep.subr.mxu0 %v1228
        %1343 = vmatpush1.msra.mxu0 %v1227
        %1344 = vmatprep.subr.mxu0 %v1232
        %1345 = vmatpush1.msra.mxu0 %v1231
        %1346 = vmatprep.subr.mxu0 %v1236
        %1347 = vmatpush1.msra.mxu0 %v1235
        %1348 = vmatprep.subr.mxu0 %v1240
        %1349 = vmatpush1.msra.mxu0 %v1239
        %1350 = vmatprep.subr.mxu0 %v1244
        %1351 = vmatpush1.msra.mxu0 %v1243
        %1352 = vmatprep.subr.mxu0 %v1248
        %1353 = vmatpush1.msra.mxu0 %v1247
        %1354 = vmatprep.subr.mxu0 %v1252
        %1355 = vmatpush1.msra.mxu0 %v1251
        %1356 = vmatprep.subr.mxu0 %v1256
        %1357 = vmatpush1.msra.mxu0 %v1255
        %1358 = vmatprep.subr.mxu0 %v1260
        %1359 = vmatpush1.msra.mxu0 %v1259
        %1360 = vmatprep.mubr.f32.mxu0 %v1293
        %1361 = vmatmul.mubr.f32.gmra.mrb[0].mxu0 %v1292
        %v1362 = vpop.f32.mrb[0].mxu0
        %v1363 = vadd.f32 %v1268, %v1362
        %v1364 = vpop.f32.mrb[0].mxu0
        %v1365 = vadd.f32 %v1272, %v1364
        %1366 = vdwg.mxu0
        %1367 = vmatprep.subr.mxu0 %v1138
        %1368 = vmatpush1.msra.mxu0 %v1137
        %1369 = vmatprep.subr.mxu0 %v1142
        %1370 = vmatpush1.msra.mxu0 %v1141
        %1371 = vmatprep.subr.mxu0 %v1146
        %1372 = vmatpush1.msra.mxu0 %v1145
        %1373 = vmatprep.subr.mxu0 %v1150
        %1374 = vmatpush1.msra.mxu0 %v1149
        %1375 = vmatprep.subr.mxu0 %v1154
        %1376 = vmatpush1.msra.mxu0 %v1153
        %1377 = vmatprep.subr.mxu0 %v1158
        %1378 = vmatpush1.msra.mxu0 %v1157
        %1379 = vmatprep.subr.mxu0 %v1162
        %1380 = vmatpush1.msra.mxu0 %v1161
        %1381 = vmatprep.subr.mxu0 %v1166
        %1382 = vmatpush1.msra.mxu0 %v1165
        %1383 = vmatprep.subr.mxu0 %v1170
        %1384 = vmatpush1.msra.mxu0 %v1169
        %1385 = vmatprep.subr.mxu0 %v1174
        %1386 = vmatpush1.msra.mxu0 %v1173
        %1387 = vmatprep.subr.mxu0 %v1178
        %1388 = vmatpush1.msra.mxu0 %v1177
        %1389 = vmatprep.subr.mxu0 %v1182
        %1390 = vmatpush1.msra.mxu0 %v1181
        %1391 = vmatprep.subr.mxu0 %v1186
        %1392 = vmatpush1.msra.mxu0 %v1185
        %1393 = vmatprep.subr.mxu0 %v1190
        %1394 = vmatpush1.msra.mxu0 %v1189
        %1395 = vmatprep.subr.mxu0 %v1194
        %1396 = vmatpush1.msra.mxu0 %v1193
        %1397 = vmatprep.subr.mxu0 %v1198
        %1398 = vmatpush1.msra.mxu0 %v1197
        %1399 = vmatprep.subr.mxu0 %v1202
        %1400 = vmatpush1.msra.mxu0 %v1201
        %1401 = vmatprep.subr.mxu0 %v1206
        %1402 = vmatpush1.msra.mxu0 %v1205
        %1403 = vmatprep.subr.mxu0 %v1210
        %1404 = vmatpush1.msra.mxu0 %v1209
        %1405 = vmatprep.subr.mxu0 %v1214
        %1406 = vmatpush1.msra.mxu0 %v1213
        %1407 = vmatprep.subr.mxu0 %v1218
        %1408 = vmatpush1.msra.mxu0 %v1217
        %1409 = vmatprep.subr.mxu0 %v1222
        %1410 = vmatpush1.msra.mxu0 %v1221
        %1411 = vmatprep.subr.mxu0 %v1226
        %1412 = vmatpush1.msra.mxu0 %v1225
        %1413 = vmatprep.subr.mxu0 %v1230
        %1414 = vmatpush1.msra.mxu0 %v1229
        %1415 = vmatprep.subr.mxu0 %v1234
        %1416 = vmatpush1.msra.mxu0 %v1233
        %1417 = vmatprep.subr.mxu0 %v1238
        %1418 = vmatpush1.msra.mxu0 %v1237
        %1419 = vmatprep.subr.mxu0 %v1242
        %1420 = vmatpush1.msra.mxu0 %v1241
        %1421 = vmatprep.subr.mxu0 %v1246
        %1422 = vmatpush1.msra.mxu0 %v1245
        %1423 = vmatprep.subr.mxu0 %v1250
        %1424 = vmatpush1.msra.mxu0 %v1249
        %1425 = vmatprep.subr.mxu0 %v1254
        %1426 = vmatpush1.msra.mxu0 %v1253
        %1427 = vmatprep.subr.mxu0 %v1258
        %1428 = vmatpush1.msra.mxu0 %v1257
        %1429 = vmatprep.subr.mxu0 %v1262
        %1430 = vmatpush1.msra.mxu0 %v1261
        %1431 = vmatprep.mubr.f32.mxu0 %v1293
        %1432 = vmatmul.mubr.f32.gmra.mrb[0].mxu0 %v1292
        %v1433 = vpop.f32.mrb[0].mxu0
        %v1434 = vadd.f32 %v1276, %v1433
        %v1435 = vpop.f32.mrb[0].mxu0
        %v1436 = vadd.f32 %v1280, %v1435
        %1437 = vdwg.mxu0
        %v1438 = vld [vmem:[#allocation19] sm:$0xff]
        %v1439 = vld [vmem:[#allocation19 + $0x8] sm:$0xff]
        %v1440 = vld [vmem:[#allocation19 + $0x10] sm:$0xff]
        %v1441 = vld [vmem:[#allocation19 + $0x18] sm:$0xff]
        %v1442 = vld [vmem:[#allocation19 + $0x20] sm:$0xff]
        %v1443 = vld [vmem:[#allocation19 + $0x28] sm:$0xff]
        %v1444 = vld [vmem:[#allocation19 + $0x30] sm:$0xff]
        %v1445 = vld [vmem:[#allocation19 + $0x38] sm:$0xff]
        %v1446 = vld [vmem:[#allocation19 + $0x40] sm:$0xff]
        %v1447 = vld [vmem:[#allocation19 + $0x48] sm:$0xff]
        %v1448 = vld [vmem:[#allocation19 + $0x50] sm:$0xff]
        %v1449 = vld [vmem:[#allocation19 + $0x58] sm:$0xff]
        %v1450 = vld [vmem:[#allocation19 + $0x60] sm:$0xff]
        %v1451 = vld [vmem:[#allocation19 + $0x68] sm:$0xff]
        %v1452 = vld [vmem:[#allocation19 + $0x70] sm:$0xff]
        %v1453 = vld [vmem:[#allocation19 + $0x78] sm:$0xff]
        %v1454 = vld [vmem:[#allocation19 + $0x80] sm:$0xff]
        %v1455 = vld [vmem:[#allocation19 + $0x88] sm:$0xff]
        %v1456 = vld [vmem:[#allocation19 + $0x90] sm:$0xff]
        %v1457 = vld [vmem:[#allocation19 + $0x98] sm:$0xff]
        %v1458 = vld [vmem:[#allocation19 + $0xa0] sm:$0xff]
        %v1459 = vld [vmem:[#allocation19 + $0xa8] sm:$0xff]
        %v1460 = vld [vmem:[#allocation19 + $0xb0] sm:$0xff]
        %v1461 = vld [vmem:[#allocation19 + $0xb8] sm:$0xff]
        %v1462 = vld [vmem:[#allocation19 + $0xc0] sm:$0xff]
        %v1463 = vld [vmem:[#allocation19 + $0xc8] sm:$0xff]
        %v1464 = vld [vmem:[#allocation19 + $0xd0] sm:$0xff]
        %v1465 = vld [vmem:[#allocation19 + $0xd8] sm:$0xff]
        %v1466 = vld [vmem:[#allocation19 + $0xe0] sm:$0xff]
        %v1467 = vld [vmem:[#allocation19 + $0xe8] sm:$0xff]
        %v1468 = vld [vmem:[#allocation19 + $0xf0] sm:$0xff]
        %v1469 = vld [vmem:[#allocation19 + $0xf8] sm:$0xff]
        %v1470 = vld [vmem:[#allocation19 + $0x100] sm:$0xff]
        %v1471 = vld [vmem:[#allocation19 + $0x108] sm:$0xff]
        %v1472 = vld [vmem:[#allocation19 + $0x110] sm:$0xff]
        %v1473 = vld [vmem:[#allocation19 + $0x118] sm:$0xff]
        %v1474 = vld [vmem:[#allocation19 + $0x120] sm:$0xff]
        %v1475 = vld [vmem:[#allocation19 + $0x128] sm:$0xff]
        %v1476 = vld [vmem:[#allocation19 + $0x130] sm:$0xff]
        %v1477 = vld [vmem:[#allocation19 + $0x138] sm:$0xff]
        %v1478 = vld [vmem:[#allocation19 + $0x140] sm:$0xff]
        %v1479 = vld [vmem:[#allocation19 + $0x148] sm:$0xff]
        %v1480 = vld [vmem:[#allocation19 + $0x150] sm:$0xff]
        %v1481 = vld [vmem:[#allocation19 + $0x158] sm:$0xff]
        %v1482 = vld [vmem:[#allocation19 + $0x160] sm:$0xff]
        %v1483 = vld [vmem:[#allocation19 + $0x168] sm:$0xff]
        %v1484 = vld [vmem:[#allocation19 + $0x170] sm:$0xff]
        %v1485 = vld [vmem:[#allocation19 + $0x178] sm:$0xff]
        %v1486 = vld [vmem:[#allocation19 + $0x180] sm:$0xff]
        %v1487 = vld [vmem:[#allocation19 + $0x188] sm:$0xff]
        %v1488 = vld [vmem:[#allocation19 + $0x190] sm:$0xff]
        %v1489 = vld [vmem:[#allocation19 + $0x198] sm:$0xff]
        %v1490 = vld [vmem:[#allocation19 + $0x1a0] sm:$0xff]
        %v1491 = vld [vmem:[#allocation19 + $0x1a8] sm:$0xff]
        %v1492 = vld [vmem:[#allocation19 + $0x1b0] sm:$0xff]
        %v1493 = vld [vmem:[#allocation19 + $0x1b8] sm:$0xff]
        %v1494 = vld [vmem:[#allocation19 + $0x1c0] sm:$0xff]
        %v1495 = vld [vmem:[#allocation19 + $0x1c8] sm:$0xff]
        %v1496 = vld [vmem:[#allocation19 + $0x1d0] sm:$0xff]
        %v1497 = vld [vmem:[#allocation19 + $0x1d8] sm:$0xff]
        %v1498 = vld [vmem:[#allocation19 + $0x1e0] sm:$0xff]
        %v1499 = vld [vmem:[#allocation19 + $0x1e8] sm:$0xff]
        %v1500 = vld [vmem:[#allocation19 + $0x1f0] sm:$0xff]
        %v1501 = vld [vmem:[#allocation19 + $0x1f8] sm:$0xff]
        %v1502 = vld [vmem:[#allocation20] sm:$0xf]
        %v1504 = vlaneseq
        %v1505 = vshrl.u32 %v1504, 7
        %v1506 = vsub.s32 0, %v1505
        %v1507 = vrot.slane %v1502, %v1506
        %v1508 = vlaneseq
        %v1509 = vshrl.u32 %v1508, 7
        %v1510 = vsub.s32 1, %v1509
        %v1511 = vrot.slane %v1502, %v1510
        %v1512 = vlaneseq
        %v1513 = vshrl.u32 %v1512, 7
        %v1514 = vsub.s32 2, %v1513
        %v1515 = vrot.slane %v1502, %v1514
        %v1516 = vlaneseq
        %v1517 = vshrl.u32 %v1516, 7
        %v1518 = vsub.s32 3, %v1517
        %v1519 = vrot.slane %v1502, %v1518
        %1524 = vmatprep.subr.mxu0 %v1439
        %1525 = vmatpush1.msra.mxu0 %v1438
        %1526 = vmatprep.subr.mxu0 %v1443
        %1527 = vmatpush1.msra.mxu0 %v1442
        %1528 = vmatprep.subr.mxu0 %v1447
        %1529 = vmatpush1.msra.mxu0 %v1446
        %1530 = vmatprep.subr.mxu0 %v1451
        %1531 = vmatpush1.msra.mxu0 %v1450
        %1532 = vmatprep.subr.mxu0 %v1455
        %1533 = vmatpush1.msra.mxu0 %v1454
        %1534 = vmatprep.subr.mxu0 %v1459
        %1535 = vmatpush1.msra.mxu0 %v1458
        %1536 = vmatprep.subr.mxu0 %v1463
        %1537 = vmatpush1.msra.mxu0 %v1462
        %1538 = vmatprep.subr.mxu0 %v1467
        %1539 = vmatpush1.msra.mxu0 %v1466
        %1540 = vmatprep.subr.mxu0 %v1471
        %1541 = vmatpush1.msra.mxu0 %v1470
        %1542 = vmatprep.subr.mxu0 %v1475
        %1543 = vmatpush1.msra.mxu0 %v1474
        %1544 = vmatprep.subr.mxu0 %v1479
        %1545 = vmatpush1.msra.mxu0 %v1478
        %1546 = vmatprep.subr.mxu0 %v1483
        %1547 = vmatpush1.msra.mxu0 %v1482
        %1548 = vmatprep.subr.mxu0 %v1487
        %1549 = vmatpush1.msra.mxu0 %v1486
        %1550 = vmatprep.subr.mxu0 %v1491
        %1551 = vmatpush1.msra.mxu0 %v1490
        %1552 = vmatprep.subr.mxu0 %v1495
        %1553 = vmatpush1.msra.mxu0 %v1494
        %1554 = vmatprep.subr.mxu0 %v1499
        %1555 = vmatpush1.msra.mxu0 %v1498
        %1556 = vmatprep.subr.mxu0 0.0
        %1557 = vmatpush1.msra.mxu0 0.0
        %1558 = vmatprep.subr.mxu0 0.0
        %1559 = vmatpush1.msra.mxu0 0.0
        %1560 = vmatprep.subr.mxu0 0.0
        %1561 = vmatpush1.msra.mxu0 0.0
        %1562 = vmatprep.subr.mxu0 0.0
        %1563 = vmatpush1.msra.mxu0 0.0
        %1564 = vmatprep.subr.mxu0 0.0
        %1565 = vmatpush1.msra.mxu0 0.0
        %1566 = vmatprep.subr.mxu0 0.0
        %1567 = vmatpush1.msra.mxu0 0.0
        %1568 = vmatprep.subr.mxu0 0.0
        %1569 = vmatpush1.msra.mxu0 0.0
        %1570 = vmatprep.subr.mxu0 0.0
        %1571 = vmatpush1.msra.mxu0 0.0
        %1572 = vmatprep.subr.mxu0 0.0
        %1573 = vmatpush1.msra.mxu0 0.0
        %1574 = vmatprep.subr.mxu0 0.0
        %1575 = vmatpush1.msra.mxu0 0.0
        %1576 = vmatprep.subr.mxu0 0.0
        %1577 = vmatpush1.msra.mxu0 0.0
        %1578 = vmatprep.subr.mxu0 0.0
        %1579 = vmatpush1.msra.mxu0 0.0
        %1580 = vmatprep.subr.mxu0 0.0
        %1581 = vmatpush1.msra.mxu0 0.0
        %1582 = vmatprep.subr.mxu0 0.0
        %1583 = vmatpush1.msra.mxu0 0.0
        %1584 = vmatprep.subr.mxu0 0.0
        %1585 = vmatpush1.msra.mxu0 0.0
        %1586 = vmatprep.subr.mxu0 0.0
        %1587 = vmatpush1.msra.mxu0 0.0
        %1588 = vmatprep.mubr.f32.mxu0 0.0
        %1589 = vmatmul.mubr.f32.gmra.mrb[0].mxu0 %v1025
        %v1590 = vpop.f32.mrb[0].mxu0
        %v1591 = vadd.f32 %v1507, %v1590
        %v1592 = vpop.f32.mrb[0].mxu0
        %v1593 = vadd.f32 %v1511, %v1592
        %1594 = vmatprep.mubr.f32.mxu0 0.0
        %1595 = vmatmul.mubr.f32.gmra.mrb[0].mxu0 %v1026
        %v1596 = vpop.f32.mrb[0].mxu0
        %v1597 = vadd.f32 %v1507, %v1596
        %v1598 = vpop.f32.mrb[0].mxu0
        %v1599 = vadd.f32 %v1511, %v1598
        %1600 = vdwg.mxu0
        %1601 = vmatprep.subr.mxu0 %v1441
        %1602 = vmatpush1.msra.mxu0 %v1440
        %1603 = vmatprep.subr.mxu0 %v1445
        %1604 = vmatpush1.msra.mxu0 %v1444
        %1605 = vmatprep.subr.mxu0 %v1449
        %1606 = vmatpush1.msra.mxu0 %v1448
        %1607 = vmatprep.subr.mxu0 %v1453
        %1608 = vmatpush1.msra.mxu0 %v1452
        %1609 = vmatprep.subr.mxu0 %v1457
        %1610 = vmatpush1.msra.mxu0 %v1456
        %1611 = vmatprep.subr.mxu0 %v1461
        %1612 = vmatpush1.msra.mxu0 %v1460
        %1613 = vmatprep.subr.mxu0 %v1465
        %1614 = vmatpush1.msra.mxu0 %v1464
        %1615 = vmatprep.subr.mxu0 %v1469
        %1616 = vmatpush1.msra.mxu0 %v1468
        %1617 = vmatprep.subr.mxu0 %v1473
        %1618 = vmatpush1.msra.mxu0 %v1472
        %1619 = vmatprep.subr.mxu0 %v1477
        %1620 = vmatpush1.msra.mxu0 %v1476
        %1621 = vmatprep.subr.mxu0 %v1481
        %1622 = vmatpush1.msra.mxu0 %v1480
        %1623 = vmatprep.subr.mxu0 %v1485
        %1624 = vmatpush1.msra.mxu0 %v1484
        %1625 = vmatprep.subr.mxu0 %v1489
        %1626 = vmatpush1.msra.mxu0 %v1488
        %1627 = vmatprep.subr.mxu0 %v1493
        %1628 = vmatpush1.msra.mxu0 %v1492
        %1629 = vmatprep.subr.mxu0 %v1497
        %1630 = vmatpush1.msra.mxu0 %v1496
        %1631 = vmatprep.subr.mxu0 %v1501
        %1632 = vmatpush1.msra.mxu0 %v1500
        %1633 = vmatprep.subr.mxu0 0.0
        %1634 = vmatpush1.msra.mxu0 0.0
        %1635 = vmatprep.subr.mxu0 0.0
        %1636 = vmatpush1.msra.mxu0 0.0
        %1637 = vmatprep.subr.mxu0 0.0
        %1638 = vmatpush1.msra.mxu0 0.0
        %1639 = vmatprep.subr.mxu0 0.0
        %1640 = vmatpush1.msra.mxu0 0.0
        %1641 = vmatprep.subr.mxu0 0.0
        %1642 = vmatpush1.msra.mxu0 0.0
        %1643 = vmatprep.subr.mxu0 0.0
        %1644 = vmatpush1.msra.mxu0 0.0
        %1645 = vmatprep.subr.mxu0 0.0
        %1646 = vmatpush1.msra.mxu0 0.0
        %1647 = vmatprep.subr.mxu0 0.0
        %1648 = vmatpush1.msra.mxu0 0.0
        %1649 = vmatprep.subr.mxu0 0.0
        %1650 = vmatpush1.msra.mxu0 0.0
        %1651 = vmatprep.subr.mxu0 0.0
        %1652 = vmatpush1.msra.mxu0 0.0
        %1653 = vmatprep.subr.mxu0 0.0
        %1654 = vmatpush1.msra.mxu0 0.0
        %1655 = vmatprep.subr.mxu0 0.0
        %1656 = vmatpush1.msra.mxu0 0.0
        %1657 = vmatprep.subr.mxu0 0.0
        %1658 = vmatpush1.msra.mxu0 0.0
        %1659 = vmatprep.subr.mxu0 0.0
        %1660 = vmatpush1.msra.mxu0 0.0
        %1661 = vmatprep.subr.mxu0 0.0
        %1662 = vmatpush1.msra.mxu0 0.0
        %1663 = vmatprep.subr.mxu0 0.0
        %1664 = vmatpush1.msra.mxu0 0.0
        %1665 = vmatprep.mubr.f32.mxu0 0.0
        %1666 = vmatmul.mubr.f32.gmra.mrb[0].mxu0 %v1025
        %v1667 = vpop.f32.mrb[0].mxu0
        %v1668 = vadd.f32 %v1515, %v1667
        %v1669 = vpop.f32.mrb[0].mxu0
        %v1670 = vadd.f32 %v1519, %v1669
        %1671 = vmatprep.mubr.f32.mxu0 0.0
        %1672 = vmatmul.mubr.f32.gmra.mrb[0].mxu0 %v1026
        %v1673 = vpop.f32.mrb[0].mxu0
        %v1674 = vadd.f32 %v1515, %v1673
        %v1675 = vpop.f32.mrb[0].mxu0
        %v1676 = vadd.f32 %v1519, %v1675
        %1677 = vdwg.mxu0
        %v1680 = vcombine.low %v1363, %v1365
        %v1682 = vunpack.c.l.s4 1966171168
        %v1683 = vunpack.c.0.s8 %v1682
        %v1684 = vlaneseq
        %v1685 = vshrl.u32 %v1684, 7
        %v1686 = vsub.s32 %v1683, %v1685
        %v1687 = vrot.slane %v1680, %v1686
        %v1688 = vcombine.high %v1687, %v1687
        %v1690 = vunpack.c.l.s4 1966171168
        %v1691 = vunpack.c.0.s8 %v1690
        %v1692 = vlaneseq
        %v1693 = vshrl.u32 %v1692, 7
        %v1694 = vsub.s32 %v1691, %v1693
        %v1695 = vrot.slane %v1687, %v1694
        %v1697 = vunpack.c.l.s4 1966171168
        %v1698 = vunpack.c.0.s8 %v1697
        %v1699 = vlaneseq
        %v1700 = vshrl.u32 %v1699, 7
        %v1701 = vsub.s32 %v1698, %v1700
        %v1702 = vrot.slane %v1688, %v1701
        %v1703 = vlaneseq
        %v1704 = vshrl.u32 %v1703, 7
        %v1705 = vsub.s32 0, %v1704
        %v1706 = vrot.slane %v1695, %v1705
        %v1707 = vlaneseq
        %v1708 = vshrl.u32 %v1707, 7
        %v1709 = vsub.s32 1, %v1708
        %v1710 = vrot.slane %v1695, %v1709
        %v1711 = vlaneseq
        %v1712 = vshrl.u32 %v1711, 7
        %v1713 = vsub.s32 0, %v1712
        %v1714 = vrot.slane %v1702, %v1713
        %v1715 = vlaneseq
        %v1716 = vshrl.u32 %v1715, 7
        %v1717 = vsub.s32 1, %v1716
        %v1718 = vrot.slane %v1702, %v1717
        %v1723 = vmul.f32 %v1125, %v1706
        %v1724 = vmul.f32 %v1127, %v1710
        %v1725 = vmul.f32 %v1131, %v1714
        %v1726 = vmul.f32 %v1133, %v1718
        %v1727 = vadd.f32 %v1591, 1.0
        %v1728 = vadd.f32 %v1593, 1.0
        %v1729 = vadd.f32 %v1597, 1.0
        %v1730 = vadd.f32 %v1599, 1.0
        %v1731 = vmul.f32 %v1723, %v1727
        %v1732 = vmul.f32 %v1724, %v1728
        %v1733 = vmul.f32 %v1725, %v1729
        %v1734 = vmul.f32 %v1726, %v1730
        %v1735 = vadd.f32 %v1731, %v1668
        %v1736 = vadd.f32 %v1732, %v1670
        %v1737 = vadd.f32 %v1733, %v1674
        %v1738 = vadd.f32 %v1734, %v1676
        %v1741 = vunpack.c.l.s4 1966171168
        %v1742 = vunpack.c.0.s8 %v1741
        %v1743 = vlaneseq
        %v1744 = vshrl.u32 %v1743, 7
        %v1745 = vsub.s32 %v1742, %v1744
        %v1746 = vrot.slane %v1030, %v1745
        %v1747 = vcombine.high %v1746, %v1746
        %v1749 = vunpack.c.l.s4 1966171168
        %v1750 = vunpack.c.0.s8 %v1749
        %v1751 = vlaneseq
        %v1752 = vshrl.u32 %v1751, 7
        %v1753 = vsub.s32 %v1750, %v1752
        %v1754 = vrot.slane %v1746, %v1753
        %v1756 = vunpack.c.l.s4 1966171168
        %v1757 = vunpack.c.0.s8 %v1756
        %v1758 = vlaneseq
        %v1759 = vshrl.u32 %v1758, 7
        %v1760 = vsub.s32 %v1757, %v1759
        %v1761 = vrot.slane %v1747, %v1760
        %1763 = vset.pattern.permute.xlu0 0
        %1764 = vperm.xlu0 %1763, %v1027
        %v1765 = vpop.permute.xlu0 %1764
        %1768 = vset.pattern.permute.xlu0 0
        %1769 = vperm.xlu0 %1768, %v1028
        %v1770 = vpop.permute.xlu0 %1769
        %v1772 = vlaneseq
        %v1773 = vshrl.u32 %v1772, 7
        %v1774 = vsub.s32 0, %v1773
        %v1775 = vrot.slane %v1754, %v1774
        %v1776 = vlaneseq
        %v1777 = vshrl.u32 %v1776, 7
        %v1778 = vsub.s32 0, %v1777
        %v1779 = vrot.slane %v1761, %v1778
        %v1782 = vmul.f32 %v1765, %v1775
        %v1783 = vmul.f32 %v1770, %v1779
        %v1784 = vld [vmem:[#allocation22] sm:$0xff]
        %v1785 = vld [vmem:[#allocation22 + $0x8] sm:$0xff]
        %v1786 = vld [vmem:[#allocation22 + $0x10] sm:$0xff]
        %v1787 = vld [vmem:[#allocation22 + $0x18] sm:$0xff]
        %v1788 = vld [vmem:[#allocation22 + $0x20] sm:$0xff]
        %v1789 = vld [vmem:[#allocation22 + $0x28] sm:$0xff]
        %v1790 = vld [vmem:[#allocation22 + $0x30] sm:$0xff]
        %v1791 = vld [vmem:[#allocation22 + $0x38] sm:$0xff]
        %v1792 = vld [vmem:[#allocation22 + $0x40] sm:$0xff]
        %v1793 = vld [vmem:[#allocation22 + $0x48] sm:$0xff]
        %v1794 = vld [vmem:[#allocation22 + $0x50] sm:$0xff]
        %v1795 = vld [vmem:[#allocation22 + $0x58] sm:$0xff]
        %v1796 = vld [vmem:[#allocation22 + $0x60] sm:$0xff]
        %v1797 = vld [vmem:[#allocation22 + $0x68] sm:$0xff]
        %v1798 = vld [vmem:[#allocation22 + $0x70] sm:$0xff]
        %v1799 = vld [vmem:[#allocation22 + $0x78] sm:$0xff]
        %v1800 = vld [vmem:[#allocation22 + $0x80] sm:$0xff]
        %v1801 = vld [vmem:[#allocation22 + $0x88] sm:$0xff]
        %v1802 = vld [vmem:[#allocation22 + $0x90] sm:$0xff]
        %v1803 = vld [vmem:[#allocation22 + $0x98] sm:$0xff]
        %v1804 = vld [vmem:[#allocation22 + $0xa0] sm:$0xff]
        %v1805 = vld [vmem:[#allocation22 + $0xa8] sm:$0xff]
        %v1806 = vld [vmem:[#allocation22 + $0xb0] sm:$0xff]
        %v1807 = vld [vmem:[#allocation22 + $0xb8] sm:$0xff]
        %v1808 = vld [vmem:[#allocation22 + $0xc0] sm:$0xff]
        %v1809 = vld [vmem:[#allocation22 + $0xc8] sm:$0xff]
        %v1810 = vld [vmem:[#allocation22 + $0xd0] sm:$0xff]
        %v1811 = vld [vmem:[#allocation22 + $0xd8] sm:$0xff]
        %v1812 = vld [vmem:[#allocation22 + $0xe0] sm:$0xff]
        %v1813 = vld [vmem:[#allocation22 + $0xe8] sm:$0xff]
        %v1814 = vld [vmem:[#allocation22 + $0xf0] sm:$0xff]
        %v1815 = vld [vmem:[#allocation22 + $0xf8] sm:$0xff]
        %v1816 = vld [vmem:[#allocation23] sm:$0x1]
        %v1818 = vlaneseq
        %v1819 = vshrl.u32 %v1818, 7
        %v1820 = vsub.s32 0, %v1819
        %v1821 = vrot.slane %v1816, %v1820
        %1823 = vmatprep.subr.mxu0 0.0
        %1824 = vmatpush1.msra.mxu0 %v1784
        %1825 = vmatprep.subr.mxu0 0.0
        %1826 = vmatpush1.msra.mxu0 %v1785
        %1827 = vmatprep.subr.mxu0 0.0
        %1828 = vmatpush1.msra.mxu0 %v1786
        %1829 = vmatprep.subr.mxu0 0.0
        %1830 = vmatpush1.msra.mxu0 %v1787
        %1831 = vmatprep.subr.mxu0 0.0
        %1832 = vmatpush1.msra.mxu0 %v1788
        %1833 = vmatprep.subr.mxu0 0.0
        %1834 = vmatpush1.msra.mxu0 %v1789
        %1835 = vmatprep.subr.mxu0 0.0
        %1836 = vmatpush1.msra.mxu0 %v1790
        %1837 = vmatprep.subr.mxu0 0.0
        %1838 = vmatpush1.msra.mxu0 %v1791
        %1839 = vmatprep.subr.mxu0 0.0
        %1840 = vmatpush1.msra.mxu0 %v1792
        %1841 = vmatprep.subr.mxu0 0.0
        %1842 = vmatpush1.msra.mxu0 %v1793
        %1843 = vmatprep.subr.mxu0 0.0
        %1844 = vmatpush1.msra.mxu0 %v1794
        %1845 = vmatprep.subr.mxu0 0.0
        %1846 = vmatpush1.msra.mxu0 %v1795
        %1847 = vmatprep.subr.mxu0 0.0
        %1848 = vmatpush1.msra.mxu0 %v1796
        %1849 = vmatprep.subr.mxu0 0.0
        %1850 = vmatpush1.msra.mxu0 %v1797
        %1851 = vmatprep.subr.mxu0 0.0
        %1852 = vmatpush1.msra.mxu0 %v1798
        %1853 = vmatprep.subr.mxu0 0.0
        %1854 = vmatpush1.msra.mxu0 %v1799
        %1855 = vmatprep.subr.mxu0 0.0
        %1856 = vmatpush1.msra.mxu0 %v1800
        %1857 = vmatprep.subr.mxu0 0.0
        %1858 = vmatpush1.msra.mxu0 %v1801
        %1859 = vmatprep.subr.mxu0 0.0
        %1860 = vmatpush1.msra.mxu0 %v1802
        %1861 = vmatprep.subr.mxu0 0.0
        %1862 = vmatpush1.msra.mxu0 %v1803
        %1863 = vmatprep.subr.mxu0 0.0
        %1864 = vmatpush1.msra.mxu0 %v1804
        %1865 = vmatprep.subr.mxu0 0.0
        %1866 = vmatpush1.msra.mxu0 %v1805
        %1867 = vmatprep.subr.mxu0 0.0
        %1868 = vmatpush1.msra.mxu0 %v1806
        %1869 = vmatprep.subr.mxu0 0.0
        %1870 = vmatpush1.msra.mxu0 %v1807
        %1871 = vmatprep.subr.mxu0 0.0
        %1872 = vmatpush1.msra.mxu0 %v1808
        %1873 = vmatprep.subr.mxu0 0.0
        %1874 = vmatpush1.msra.mxu0 %v1809
        %1875 = vmatprep.subr.mxu0 0.0
        %1876 = vmatpush1.msra.mxu0 %v1810
        %1877 = vmatprep.subr.mxu0 0.0
        %1878 = vmatpush1.msra.mxu0 %v1811
        %1879 = vmatprep.subr.mxu0 0.0
        %1880 = vmatpush1.msra.mxu0 %v1812
        %1881 = vmatprep.subr.mxu0 0.0
        %1882 = vmatpush1.msra.mxu0 %v1813
        %1883 = vmatprep.subr.mxu0 0.0
        %1884 = vmatpush1.msra.mxu0 %v1814
        %1885 = vmatprep.subr.mxu0 0.0
        %1886 = vmatpush1.msra.mxu0 %v1815
        %1887 = vmatprep.mubr.f32.mxu0 %v1736
        %1888 = vmatmul.mubr.f32.gmra.mrb[0].mxu0 %v1735
        %v1889 = vpop.f32.mrb[0].mxu0
        %v1890 = vadd.f32 %v1821, %v1889
        %v1891 = vpop.f32.mrb[0].mxu0
        %1892 = vmatprep.mubr.f32.mxu0 %v1738
        %1893 = vmatmul.mubr.f32.gmra.mrb[0].mxu0 %v1737
        %v1894 = vpop.f32.mrb[0].mxu0
        %v1895 = vadd.f32 %v1821, %v1894
        %v1896 = vpop.f32.mrb[0].mxu0
        %1897 = vdwg.mxu0
        %v1898 = vmul.f32 %v1890, %v1782
        %v1899 = vmul.f32 %v1895, %v1783
        %v1900 = vld [vmem:[#allocation25] sm:$0xff]
        %v1901 = vld [vmem:[#allocation25 + $0x8] sm:$0xff]
        %v1902 = vld [vmem:[#allocation25 + $0x10] sm:$0xff]
        %v1903 = vld [vmem:[#allocation25 + $0x18] sm:$0xff]
        %v1904 = vld [vmem:[#allocation25 + $0x20] sm:$0xff]
        %v1905 = vld [vmem:[#allocation25 + $0x28] sm:$0xff]
        %v1906 = vld [vmem:[#allocation25 + $0x30] sm:$0xff]
        %v1907 = vld [vmem:[#allocation25 + $0x38] sm:$0xff]
        %v1908 = vld [vmem:[#allocation25 + $0x40] sm:$0xff]
        %v1909 = vld [vmem:[#allocation25 + $0x48] sm:$0xff]
        %v1910 = vld [vmem:[#allocation25 + $0x50] sm:$0xff]
        %v1911 = vld [vmem:[#allocation25 + $0x58] sm:$0xff]
        %v1912 = vld [vmem:[#allocation25 + $0x60] sm:$0xff]
        %v1913 = vld [vmem:[#allocation25 + $0x68] sm:$0xff]
        %v1914 = vld [vmem:[#allocation25 + $0x70] sm:$0xff]
        %v1915 = vld [vmem:[#allocation25 + $0x78] sm:$0xff]
        %v1916 = vld [vmem:[#allocation26] sm:$0x1]
        %v1918 = vlaneseq
        %v1919 = vshrl.u32 %v1918, 7
        %v1920 = vsub.s32 0, %v1919
        %v1921 = vrot.slane %v1916, %v1920
        %1923 = vmatprep.subr.mxu0 0.0
        %1924 = vmatpush1.msra.mxu0 %v1900
        %1925 = vmatprep.subr.mxu0 0.0
        %1926 = vmatpush1.msra.mxu0 %v1901
        %1927 = vmatprep.subr.mxu0 0.0
        %1928 = vmatpush1.msra.mxu0 %v1902
        %1929 = vmatprep.subr.mxu0 0.0
        %1930 = vmatpush1.msra.mxu0 %v1903
        %1931 = vmatprep.subr.mxu0 0.0
        %1932 = vmatpush1.msra.mxu0 %v1904
        %1933 = vmatprep.subr.mxu0 0.0
        %1934 = vmatpush1.msra.mxu0 %v1905
        %1935 = vmatprep.subr.mxu0 0.0
        %1936 = vmatpush1.msra.mxu0 %v1906
        %1937 = vmatprep.subr.mxu0 0.0
        %1938 = vmatpush1.msra.mxu0 %v1907
        %1939 = vmatprep.subr.mxu0 0.0
        %1940 = vmatpush1.msra.mxu0 %v1908
        %1941 = vmatprep.subr.mxu0 0.0
        %1942 = vmatpush1.msra.mxu0 %v1909
        %1943 = vmatprep.subr.mxu0 0.0
        %1944 = vmatpush1.msra.mxu0 %v1910
        %1945 = vmatprep.subr.mxu0 0.0
        %1946 = vmatpush1.msra.mxu0 %v1911
        %1947 = vmatprep.subr.mxu0 0.0
        %1948 = vmatpush1.msra.mxu0 %v1912
        %1949 = vmatprep.subr.mxu0 0.0
        %1950 = vmatpush1.msra.mxu0 %v1913
        %1951 = vmatprep.subr.mxu0 0.0
        %1952 = vmatpush1.msra.mxu0 %v1914
        %1953 = vmatprep.subr.mxu0 0.0
        %1954 = vmatpush1.msra.mxu0 %v1915
        %1955 = vmatprep.subr.mxu0 0.0
        %1956 = vmatpush1.msra.mxu0 0.0
        %1957 = vmatprep.subr.mxu0 0.0
        %1958 = vmatpush1.msra.mxu0 0.0
        %1959 = vmatprep.subr.mxu0 0.0
        %1960 = vmatpush1.msra.mxu0 0.0
        %1961 = vmatprep.subr.mxu0 0.0
        %1962 = vmatpush1.msra.mxu0 0.0
        %1963 = vmatprep.subr.mxu0 0.0
        %1964 = vmatpush1.msra.mxu0 0.0
        %1965 = vmatprep.subr.mxu0 0.0
        %1966 = vmatpush1.msra.mxu0 0.0
        %1967 = vmatprep.subr.mxu0 0.0
        %1968 = vmatpush1.msra.mxu0 0.0
        %1969 = vmatprep.subr.mxu0 0.0
        %1970 = vmatpush1.msra.mxu0 0.0
        %1971 = vmatprep.subr.mxu0 0.0
        %1972 = vmatpush1.msra.mxu0 0.0
        %1973 = vmatprep.subr.mxu0 0.0
        %1974 = vmatpush1.msra.mxu0 0.0
        %1975 = vmatprep.subr.mxu0 0.0
        %1976 = vmatpush1.msra.mxu0 0.0
        %1977 = vmatprep.subr.mxu0 0.0
        %1978 = vmatpush1.msra.mxu0 0.0
        %1979 = vmatprep.subr.mxu0 0.0
        %1980 = vmatpush1.msra.mxu0 0.0
        %1981 = vmatprep.subr.mxu0 0.0
        %1982 = vmatpush1.msra.mxu0 0.0
        %1983 = vmatprep.subr.mxu0 0.0
        %1984 = vmatpush1.msra.mxu0 0.0
        %1985 = vmatprep.subr.mxu0 0.0
        %1986 = vmatpush1.msra.mxu0 0.0
        %1987 = vmatprep.mubr.f32.mxu0 0.0
        %1988 = vmatmul.mubr.f32.gmra.mrb[0].mxu0 %v1898
        %v1989 = vpop.f32.mrb[0].mxu0
        %v1990 = vadd.f32 %v1921, %v1989
        %v1991 = vpop.f32.mrb[0].mxu0
        %1992 = vmatprep.mubr.f32.mxu0 0.0
        %1993 = vmatmul.mubr.f32.gmra.mrb[0].mxu0 %v1899
        %v1994 = vpop.f32.mrb[0].mxu0
        %v1995 = vadd.f32 %v1921, %v1994
        %v1996 = vpop.f32.mrb[0].mxu0
        %1997 = vdwg.mxu0
        %vm1998 = vcmask 130048
        %1999 = vst.msk [vmem:[%s1021] sm:$0xff] %vm1998, %v1990
        %2000 = vst.msk [vmem:[%s1021 + $0x8] sm:$0xff] %vm1998, %v1995
        %v2003 = vunpack.c.l.s4 1966171168
        %v2004 = vunpack.c.0.s8 %v2003
        %v2005 = vlaneseq
        %v2006 = vshrl.u32 %v2005, 7
        %v2007 = vsub.s32 %v2004, %v2006
        %v2008 = vrot.slane %v1029, %v2007
        %v2009 = vcombine.high %v2008, %v2008
        %vm2012 = vcmp.gt.f32.partialorder %v2008, 0.0
        %vm2013 = vcmp.gt.f32.partialorder %v2009, 0.0
        %v2014 = vsel %vm2012, 1, 0
        %v2015 = vsel %vm2013, 1, 0
        %v2016 = vlaneseq
        %v2017 = vshrl.u32 %v2016, 7
        %v2018 = vsub.s32 0, %v2017
        %v2019 = vrot.slane %v2014, %v2018
        %v2020 = vlaneseq
        %v2021 = vshrl.u32 %v2020, 7
        %v2022 = vsub.s32 1, %v2021
        %v2023 = vrot.slane %v2014, %v2022
        %v2024 = vlaneseq
        %v2025 = vshrl.u32 %v2024, 7
        %v2026 = vsub.s32 0, %v2025
        %v2027 = vrot.slane %v2015, %v2026
        %v2028 = vlaneseq
        %v2029 = vshrl.u32 %v2028, 7
        %v2030 = vsub.s32 1, %v2029
        %v2031 = vrot.slane %v2015, %v2030
        %vm2032 = vcmp.eq.s32.totalorder %v2019, 1
        %vm2033 = vcmp.eq.s32.totalorder %v2023, 1
        %vm2034 = vcmp.eq.s32.totalorder %v2027, 1
        %vm2035 = vcmp.eq.s32.totalorder %v2031, 1
        %v2036 = vsel %vm2032, %v1735, -1e+30
        %v2037 = vsel %vm2033, %v1736, -1e+30
        %v2038 = vsel %vm2034, %v1737, -1e+30
        %v2039 = vsel %vm2035, %v1738, -1e+30
        %v2040 = vmax.f32 %v2036, %v2037
        %2041 = vmax.xlane.f32.xlu0 %v2040
        %v2042 = vpop.xlane.xlu0 %2041
        %v2043 = vmax.f32 %v2038, %v2039
        %2044 = vmax.xlane.f32.xlu0 %v2043
        %v2045 = vpop.xlane.xlu0 %2044
        %v2046 = vsub.f32 %v2036, %v2042
        %v2047 = vsub.f32 %v2037, %v2042
        %v2048 = vsub.f32 %v2038, %v2045
        %v2049 = vsub.f32 %v2039, %v2045
        %v2050 = vmul.f32 %v2046, 1.442695
        %v2051 = vpow.pop %v2050
        %v2052 = vmul.f32 %v2047, 1.442695
        %v2053 = vpow.pop %v2052
        %v2054 = vmul.f32 %v2048, 1.442695
        %v2055 = vpow.pop %v2054
        %v2056 = vmul.f32 %v2049, 1.442695
        %v2057 = vpow.pop %v2056
        %v2058 = vld [vmem:[#allocation28] sm:$0xff]
        %v2059 = vld [vmem:[#allocation28 + $0x8] sm:$0xff]
        %v2060 = vld [vmem:[#allocation28 + $0x10] sm:$0xff]
        %v2061 = vld [vmem:[#allocation28 + $0x18] sm:$0xff]
        %v2062 = vld [vmem:[#allocation28 + $0x20] sm:$0xff]
        %v2063 = vld [vmem:[#allocation28 + $0x28] sm:$0xff]
        %v2064 = vld [vmem:[#allocation28 + $0x30] sm:$0xff]
        %v2065 = vld [vmem:[#allocation28 + $0x38] sm:$0xff]
        %v2066 = vld [vmem:[#allocation28 + $0x40] sm:$0xff]
        %v2067 = vld [vmem:[#allocation28 + $0x48] sm:$0xff]
        %v2068 = vld [vmem:[#allocation28 + $0x50] sm:$0xff]
        %v2069 = vld [vmem:[#allocation28 + $0x58] sm:$0xff]
        %v2070 = vld [vmem:[#allocation28 + $0x60] sm:$0xff]
        %v2071 = vld [vmem:[#allocation28 + $0x68] sm:$0xff]
        %v2072 = vld [vmem:[#allocation28 + $0x70] sm:$0xff]
        %v2073 = vld [vmem:[#allocation28 + $0x78] sm:$0xff]
        %v2074 = vld [vmem:[#allocation28 + $0x80] sm:$0xff]
        %v2075 = vld [vmem:[#allocation28 + $0x88] sm:$0xff]
        %v2076 = vld [vmem:[#allocation28 + $0x90] sm:$0xff]
        %v2077 = vld [vmem:[#allocation28 + $0x98] sm:$0xff]
        %v2078 = vld [vmem:[#allocation28 + $0xa0] sm:$0xff]
        %v2079 = vld [vmem:[#allocation28 + $0xa8] sm:$0xff]
        %v2080 = vld [vmem:[#allocation28 + $0xb0] sm:$0xff]
        %v2081 = vld [vmem:[#allocation28 + $0xb8] sm:$0xff]
        %v2082 = vld [vmem:[#allocation28 + $0xc0] sm:$0xff]
        %v2083 = vld [vmem:[#allocation28 + $0xc8] sm:$0xff]
        %v2084 = vld [vmem:[#allocation28 + $0xd0] sm:$0xff]
        %v2085 = vld [vmem:[#allocation28 + $0xd8] sm:$0xff]
        %v2086 = vld [vmem:[#allocation28 + $0xe0] sm:$0xff]
        %v2087 = vld [vmem:[#allocation28 + $0xe8] sm:$0xff]
        %v2088 = vld [vmem:[#allocation28 + $0xf0] sm:$0xff]
        %v2089 = vld [vmem:[#allocation28 + $0xf8] sm:$0xff]
        %v2090 = vld [vmem:[#allocation28 + $0x100] sm:$0xff]
        %v2091 = vld [vmem:[#allocation28 + $0x108] sm:$0xff]
        %v2092 = vld [vmem:[#allocation28 + $0x110] sm:$0xff]
        %v2093 = vld [vmem:[#allocation28 + $0x118] sm:$0xff]
        %v2094 = vld [vmem:[#allocation28 + $0x120] sm:$0xff]
        %v2095 = vld [vmem:[#allocation28 + $0x128] sm:$0xff]
        %v2096 = vld [vmem:[#allocation28 + $0x130] sm:$0xff]
        %v2097 = vld [vmem:[#allocation28 + $0x138] sm:$0xff]
        %v2098 = vld [vmem:[#allocation28 + $0x140] sm:$0xff]
        %v2099 = vld [vmem:[#allocation28 + $0x148] sm:$0xff]
        %v2100 = vld [vmem:[#allocation28 + $0x150] sm:$0xff]
        %v2101 = vld [vmem:[#allocation28 + $0x158] sm:$0xff]
        %v2102 = vld [vmem:[#allocation28 + $0x160] sm:$0xff]
        %v2103 = vld [vmem:[#allocation28 + $0x168] sm:$0xff]
        %v2104 = vld [vmem:[#allocation28 + $0x170] sm:$0xff]
        %v2105 = vld [vmem:[#allocation28 + $0x178] sm:$0xff]
        %v2106 = vld [vmem:[#allocation28 + $0x180] sm:$0xff]
        %v2107 = vld [vmem:[#allocation28 + $0x188] sm:$0xff]
        %v2108 = vld [vmem:[#allocation28 + $0x190] sm:$0xff]
        %v2109 = vld [vmem:[#allocation28 + $0x198] sm:$0xff]
        %v2110 = vld [vmem:[#allocation28 + $0x1a0] sm:$0xff]
        %v2111 = vld [vmem:[#allocation28 + $0x1a8] sm:$0xff]
        %v2112 = vld [vmem:[#allocation28 + $0x1b0] sm:$0xff]
        %v2113 = vld [vmem:[#allocation28 + $0x1b8] sm:$0xff]
        %v2114 = vld [vmem:[#allocation28 + $0x1c0] sm:$0xff]
        %v2115 = vld [vmem:[#allocation28 + $0x1c8] sm:$0xff]
        %v2116 = vld [vmem:[#allocation28 + $0x1d0] sm:$0xff]
        %v2117 = vld [vmem:[#allocation28 + $0x1d8] sm:$0xff]
        %v2118 = vld [vmem:[#allocation28 + $0x1e0] sm:$0xff]
        %v2119 = vld [vmem:[#allocation28 + $0x1e8] sm:$0xff]
        %v2120 = vld [vmem:[#allocation28 + $0x1f0] sm:$0xff]
        %v2121 = vld [vmem:[#allocation28 + $0x1f8] sm:$0xff]
        %2122 = vmatprep.subr.mxu0 %v2059
        %2123 = vmatpush1.msra.mxu0 %v2058
        %2124 = vmatprep.subr.mxu0 %v2061
        %2125 = vmatpush1.msra.mxu0 %v2060
        %2126 = vmatprep.subr.mxu0 %v2063
        %2127 = vmatpush1.msra.mxu0 %v2062
        %2128 = vmatprep.subr.mxu0 %v2065
        %2129 = vmatpush1.msra.mxu0 %v2064
        %2130 = vmatprep.subr.mxu0 %v2067
        %2131 = vmatpush1.msra.mxu0 %v2066
        %2132 = vmatprep.subr.mxu0 %v2069
        %2133 = vmatpush1.msra.mxu0 %v2068
        %2134 = vmatprep.subr.mxu0 %v2071
        %2135 = vmatpush1.msra.mxu0 %v2070
        %2136 = vmatprep.subr.mxu0 %v2073
        %2137 = vmatpush1.msra.mxu0 %v2072
        %2138 = vmatprep.subr.mxu0 %v2075
        %2139 = vmatpush1.msra.mxu0 %v2074
        %2140 = vmatprep.subr.mxu0 %v2077
        %2141 = vmatpush1.msra.mxu0 %v2076
        %2142 = vmatprep.subr.mxu0 %v2079
        %2143 = vmatpush1.msra.mxu0 %v2078
        %2144 = vmatprep.subr.mxu0 %v2081
        %2145 = vmatpush1.msra.mxu0 %v2080
        %2146 = vmatprep.subr.mxu0 %v2083
        %2147 = vmatpush1.msra.mxu0 %v2082
        %2148 = vmatprep.subr.mxu0 %v2085
        %2149 = vmatpush1.msra.mxu0 %v2084
        %2150 = vmatprep.subr.mxu0 %v2087
        %2151 = vmatpush1.msra.mxu0 %v2086
        %2152 = vmatprep.subr.mxu0 %v2089
        %2153 = vmatpush1.msra.mxu0 %v2088
        %2154 = vmatprep.subr.mxu0 %v2091
        %2155 = vmatpush1.msra.mxu0 %v2090
        %2156 = vmatprep.subr.mxu0 %v2093
        %2157 = vmatpush1.msra.mxu0 %v2092
        %2158 = vmatprep.subr.mxu0 %v2095
        %2159 = vmatpush1.msra.mxu0 %v2094
        %2160 = vmatprep.subr.mxu0 %v2097
        %2161 = vmatpush1.msra.mxu0 %v2096
        %2162 = vmatprep.subr.mxu0 %v2099
        %2163 = vmatpush1.msra.mxu0 %v2098
        %2164 = vmatprep.subr.mxu0 %v2101
        %2165 = vmatpush1.msra.mxu0 %v2100
        %2166 = vmatprep.subr.mxu0 %v2103
        %2167 = vmatpush1.msra.mxu0 %v2102
        %2168 = vmatprep.subr.mxu0 %v2105
        %2169 = vmatpush1.msra.mxu0 %v2104
        %2170 = vmatprep.subr.mxu0 %v2107
        %2171 = vmatpush1.msra.mxu0 %v2106
        %2172 = vmatprep.subr.mxu0 %v2109
        %2173 = vmatpush1.msra.mxu0 %v2108
        %2174 = vmatprep.subr.mxu0 %v2111
        %2175 = vmatpush1.msra.mxu0 %v2110
        %2176 = vmatprep.subr.mxu0 %v2113
        %2177 = vmatpush1.msra.mxu0 %v2112
        %2178 = vmatprep.subr.mxu0 %v2115
        %2179 = vmatpush1.msra.mxu0 %v2114
        %2180 = vmatprep.subr.mxu0 %v2117
        %2181 = vmatpush1.msra.mxu0 %v2116
        %2182 = vmatprep.subr.mxu0 %v2119
        %2183 = vmatpush1.msra.mxu0 %v2118
        %2184 = vmatprep.subr.mxu0 %v2121
        %2185 = vmatpush1.msra.mxu0 %v2120
        %2186 = vmatprep.mubr.f32.mxu0 %v2053
        %2187 = vmatmul.mubr.f32.gmra.mrb[0].mxu0 %v2051
        %v2188 = vpop.f32.mrb[0].mxu0
        %v2189 = vadd.f32 0.0, %v2188
        %v2190 = vpop.f32.mrb[0].mxu0
        %v2191 = vadd.f32 0.0, %v2190
        %2192 = vmatprep.mubr.f32.mxu0 %v2057
        %2193 = vmatmul.mubr.f32.gmra.mrb[0].mxu0 %v2055
        %v2194 = vpop.f32.mrb[0].mxu0
        %v2195 = vadd.f32 0.0, %v2194
        %v2196 = vpop.f32.mrb[0].mxu0
        %v2197 = vadd.f32 0.0, %v2196
        %2198 = vdwg.mxu0
        %v2199 = vrcp.pop %v2189
        %v2200 = vmul.f32 %v2051, %v2199
        %v2201 = vrcp.pop %v2191
        %v2202 = vmul.f32 %v2053, %v2201
        %v2203 = vrcp.pop %v2195
        %v2204 = vmul.f32 %v2055, %v2203
        %v2205 = vrcp.pop %v2197
        %v2206 = vmul.f32 %v2057, %v2205
        %v2209 = vcombine.low %v1434, %v1436
        %v2211 = vunpack.c.l.s4 1966171168
        %v2212 = vunpack.c.0.s8 %v2211
        %v2213 = vlaneseq
        %v2214 = vshrl.u32 %v2213, 7
        %v2215 = vsub.s32 %v2212, %v2214
        %v2216 = vrot.slane %v2209, %v2215
        %v2217 = vcombine.high %v2216, %v2216
        %v2219 = vunpack.c.l.s4 1966171168
        %v2220 = vunpack.c.0.s8 %v2219
        %v2221 = vlaneseq
        %v2222 = vshrl.u32 %v2221, 7
        %v2223 = vsub.s32 %v2220, %v2222
        %v2224 = vrot.slane %v2216, %v2223
        %v2226 = vunpack.c.l.s4 1966171168
        %v2227 = vunpack.c.0.s8 %v2226
        %v2228 = vlaneseq
        %v2229 = vshrl.u32 %v2228, 7
        %v2230 = vsub.s32 %v2227, %v2229
        %v2231 = vrot.slane %v2217, %v2230
        %v2232 = vlaneseq
        %v2233 = vshrl.u32 %v2232, 7
        %v2234 = vsub.s32 0, %v2233
        %v2235 = vrot.slane %v2224, %v2234
        %v2236 = vlaneseq
        %v2237 = vshrl.u32 %v2236, 7
        %v2238 = vsub.s32 1, %v2237
        %v2239 = vrot.slane %v2224, %v2238
        %v2240 = vlaneseq
        %v2241 = vshrl.u32 %v2240, 7
        %v2242 = vsub.s32 0, %v2241
        %v2243 = vrot.slane %v2231, %v2242
        %v2244 = vlaneseq
        %v2245 = vshrl.u32 %v2244, 7
        %v2246 = vsub.s32 1, %v2245
        %v2247 = vrot.slane %v2231, %v2246
        %v2252 = vmul.f32 %v2200, %v2235
        %v2253 = vmul.f32 %v2202, %v2239
        %v2254 = vmul.f32 %v2204, %v2243
        %v2255 = vmul.f32 %v2206, %v2247
        %v2256 = vld [vmem:[#allocation29] sm:$0xff]
        %v2257 = vld [vmem:[#allocation29 + $0x8] sm:$0xff]
        %v2258 = vld [vmem:[#allocation29 + $0x10] sm:$0xff]
        %v2259 = vld [vmem:[#allocation29 + $0x18] sm:$0xff]
        %v2260 = vld [vmem:[#allocation29 + $0x20] sm:$0xff]
        %v2261 = vld [vmem:[#allocation29 + $0x28] sm:$0xff]
        %v2262 = vld [vmem:[#allocation29 + $0x30] sm:$0xff]
        %v2263 = vld [vmem:[#allocation29 + $0x38] sm:$0xff]
        %v2264 = vld [vmem:[#allocation29 + $0x40] sm:$0xff]
        %v2265 = vld [vmem:[#allocation29 + $0x48] sm:$0xff]
        %v2266 = vld [vmem:[#allocation29 + $0x50] sm:$0xff]
        %v2267 = vld [vmem:[#allocation29 + $0x58] sm:$0xff]
        %v2268 = vld [vmem:[#allocation29 + $0x60] sm:$0xff]
        %v2269 = vld [vmem:[#allocation29 + $0x68] sm:$0xff]
        %v2270 = vld [vmem:[#allocation29 + $0x70] sm:$0xff]
        %v2271 = vld [vmem:[#allocation29 + $0x78] sm:$0xff]
        %v2272 = vld [vmem:[#allocation29 + $0x80] sm:$0xff]
        %v2273 = vld [vmem:[#allocation29 + $0x88] sm:$0xff]
        %v2274 = vld [vmem:[#allocation29 + $0x90] sm:$0xff]
        %v2275 = vld [vmem:[#allocation29 + $0x98] sm:$0xff]
        %v2276 = vld [vmem:[#allocation29 + $0xa0] sm:$0xff]
        %v2277 = vld [vmem:[#allocation29 + $0xa8] sm:$0xff]
        %v2278 = vld [vmem:[#allocation29 + $0xb0] sm:$0xff]
        %v2279 = vld [vmem:[#allocation29 + $0xb8] sm:$0xff]
        %v2280 = vld [vmem:[#allocation29 + $0xc0] sm:$0xff]
        %v2281 = vld [vmem:[#allocation29 + $0xc8] sm:$0xff]
        %v2282 = vld [vmem:[#allocation29 + $0xd0] sm:$0xff]
        %v2283 = vld [vmem:[#allocation29 + $0xd8] sm:$0xff]
        %v2284 = vld [vmem:[#allocation29 + $0xe0] sm:$0xff]
        %v2285 = vld [vmem:[#allocation29 + $0xe8] sm:$0xff]
        %v2286 = vld [vmem:[#allocation29 + $0xf0] sm:$0xff]
        %v2287 = vld [vmem:[#allocation29 + $0xf8] sm:$0xff]
        %v2288 = vld [vmem:[#allocation31] sm:$0x1]
        %v2290 = vlaneseq
        %v2291 = vshrl.u32 %v2290, 7
        %v2292 = vsub.s32 0, %v2291
        %v2293 = vrot.slane %v2288, %v2292
        %2295 = vmatprep.subr.mxu0 0.0
        %2296 = vmatpush1.msra.mxu0 %v2256
        %2297 = vmatprep.subr.mxu0 0.0
        %2298 = vmatpush1.msra.mxu0 %v2257
        %2299 = vmatprep.subr.mxu0 0.0
        %2300 = vmatpush1.msra.mxu0 %v2258
        %2301 = vmatprep.subr.mxu0 0.0
        %2302 = vmatpush1.msra.mxu0 %v2259
        %2303 = vmatprep.subr.mxu0 0.0
        %2304 = vmatpush1.msra.mxu0 %v2260
        %2305 = vmatprep.subr.mxu0 0.0
        %2306 = vmatpush1.msra.mxu0 %v2261
        %2307 = vmatprep.subr.mxu0 0.0
        %2308 = vmatpush1.msra.mxu0 %v2262
        %2309 = vmatprep.subr.mxu0 0.0
        %2310 = vmatpush1.msra.mxu0 %v2263
        %2311 = vmatprep.subr.mxu0 0.0
        %2312 = vmatpush1.msra.mxu0 %v2264
        %2313 = vmatprep.subr.mxu0 0.0
        %2314 = vmatpush1.msra.mxu0 %v2265
        %2315 = vmatprep.subr.mxu0 0.0
        %2316 = vmatpush1.msra.mxu0 %v2266
        %2317 = vmatprep.subr.mxu0 0.0
        %2318 = vmatpush1.msra.mxu0 %v2267
        %2319 = vmatprep.subr.mxu0 0.0
        %2320 = vmatpush1.msra.mxu0 %v2268
        %2321 = vmatprep.subr.mxu0 0.0
        %2322 = vmatpush1.msra.mxu0 %v2269
        %2323 = vmatprep.subr.mxu0 0.0
        %2324 = vmatpush1.msra.mxu0 %v2270
        %2325 = vmatprep.subr.mxu0 0.0
        %2326 = vmatpush1.msra.mxu0 %v2271
        %2327 = vmatprep.subr.mxu0 0.0
        %2328 = vmatpush1.msra.mxu0 %v2272
        %2329 = vmatprep.subr.mxu0 0.0
        %2330 = vmatpush1.msra.mxu0 %v2273
        %2331 = vmatprep.subr.mxu0 0.0
        %2332 = vmatpush1.msra.mxu0 %v2274
        %2333 = vmatprep.subr.mxu0 0.0
        %2334 = vmatpush1.msra.mxu0 %v2275
        %2335 = vmatprep.subr.mxu0 0.0
        %2336 = vmatpush1.msra.mxu0 %v2276
        %2337 = vmatprep.subr.mxu0 0.0
        %2338 = vmatpush1.msra.mxu0 %v2277
        %2339 = vmatprep.subr.mxu0 0.0
        %2340 = vmatpush1.msra.mxu0 %v2278
        %2341 = vmatprep.subr.mxu0 0.0
        %2342 = vmatpush1.msra.mxu0 %v2279
        %2343 = vmatprep.subr.mxu0 0.0
        %2344 = vmatpush1.msra.mxu0 %v2280
        %2345 = vmatprep.subr.mxu0 0.0
        %2346 = vmatpush1.msra.mxu0 %v2281
        %2347 = vmatprep.subr.mxu0 0.0
        %2348 = vmatpush1.msra.mxu0 %v2282
        %2349 = vmatprep.subr.mxu0 0.0
        %2350 = vmatpush1.msra.mxu0 %v2283
        %2351 = vmatprep.subr.mxu0 0.0
        %2352 = vmatpush1.msra.mxu0 %v2284
        %2353 = vmatprep.subr.mxu0 0.0
        %2354 = vmatpush1.msra.mxu0 %v2285
        %2355 = vmatprep.subr.mxu0 0.0
        %2356 = vmatpush1.msra.mxu0 %v2286
        %2357 = vmatprep.subr.mxu0 0.0
        %2358 = vmatpush1.msra.mxu0 %v2287
        %2359 = vmatprep.mubr.f32.mxu0 %v2253
        %2360 = vmatmul.mubr.f32.gmra.mrb[0].mxu0 %v2252
        %v2361 = vpop.f32.mrb[0].mxu0
        %v2362 = vadd.f32 %v2293, %v2361
        %v2363 = vpop.f32.mrb[0].mxu0
        %2364 = vmatprep.mubr.f32.mxu0 %v2255
        %2365 = vmatmul.mubr.f32.gmra.mrb[0].mxu0 %v2254
        %v2366 = vpop.f32.mrb[0].mxu0
        %v2367 = vadd.f32 %v2293, %v2366
        %v2368 = vpop.f32.mrb[0].mxu0
        %2369 = vdwg.mxu0
        %v2370 = vmul.f32 %v2362, %v1765
        %v2371 = vmul.f32 %v2367, %v1770
        %2372 = vst.msk [vmem:[%s1014] sm:$0xff] %vm1051, %v2370
        %2373 = vst.msk [vmem:[%s1014 + $0x8] sm:$0xff] %vm1051, %v2371
        %s2374 = sand.u32 %s493, 1
        %s2375 = scalar_lea.sflag [#allocation4], %s2374
        %s2376 = sand.u32 %s493, 1
        %s2377 = smul.addr %s2376, 16
        %s2378 = scalar_lea.vmem [#allocation32], %s2377
        %s2379 = sand.u32 %s519, 1
        %s2380 = scalar_lea.sflag [#allocation34], %s2379
        %s2381 = sand.u32 %s519, 1
        %s2382 = smul.addr %s2381, 16
        %s2383 = scalar_lea.vmem [#allocation33], %s2382
        // Predicated region
        $region173: #{xe_transformer_layer.2} parent=95 // pred_check
          %p2384 = pneg %p503
        $region174: #{xe_transformer_layer.2} parent=95 // pred_check_branch
          %2386 = sbr.rel (%p2384) target = $region176
        $region175: #{xe_transformer_layer.2} parent=95 // pred_region
          %s2388 = ssub.s32 256, 256
          %2389 = vsyncadd %s2375, %s2388
          %s2390 = smul.addr %s56, 2
          %s2391 = smul.addr %s2390, 128
          %s2392 = scalar_lea.hbm %s19, %s2391
          %s2393 = sshll.u32 %s2378, 4
          %s2394 = int_to_ptr.vmem [resolvable:$true] %s2393
          %2399 = dma.vmem_to_hbm [thread:$0]  %s2394, 256, %s2392, %s2375, 128, 128, 8
        $region176: #{xe_transformer_layer.2} parent=95 // pred_fallthru
          _
        // Predicated region
        $region177: #{xe_transformer_layer.2} parent=95 // pred_check
          %p2400 = pneg %p529
        $region178: #{xe_transformer_layer.2} parent=95 // pred_check_branch
          %2402 = sbr.rel (%p2400) target = $region180
        $region179: #{xe_transformer_layer.2} parent=95 // pred_region
          %s2404 = ssub.s32 256, 256
          %2405 = vsyncadd %s2380, %s2404
          %s2406 = smul.addr %s56, 2
          %s2407 = smul.addr %s2406, 128
          %s2408 = scalar_lea.hbm %s20, %s2407
          %s2409 = sshll.u32 %s2383, 4
          %s2410 = int_to_ptr.vmem [resolvable:$true] %s2409
          %2415 = dma.vmem_to_hbm [thread:$0]  %s2410, 256, %s2408, %s2380, 128, 128, 8
        $region180: #{xe_transformer_layer.2} parent=95 // pred_fallthru
          _
      $region96: #{xe_transformer_layer.2} parent=5 // pred_fallthru
        _
      %p2416 = scmp.le.s32.totalorder 2, %s51
      // Predicated region
      $region181: #{xe_transformer_layer.2} parent=5 // pred_check
        %p2417 = pneg %p2416
      $region182: #{xe_transformer_layer.2} parent=5 // pred_check_branch
        %2419 = sbr.rel (%p2417) target = $region184
      $region183: #{xe_transformer_layer.2} parent=5 // pred_region
        %s2420 = ssub.s32 %s51, 2
        // Predicated region
        $region185: #{xe_transformer_layer.2} parent=183 // pred_check
          %p2421 = pneg %p509
        $region186: #{xe_transformer_layer.2} parent=183 // pred_check_branch
          %2423 = sbr.rel (%p2421) target = $region188
        $region187: #{xe_transformer_layer.2} parent=183 // pred_region
          %s2424 = sand.u32 %s494, 1
          %s2425 = scalar_lea.sflag [#allocation4], %s2424
          %s2426 = sand.u32 %s494, 1
          %s2427 = smul.addr %s2426, 16
          %s2428 = scalar_lea.vmem [#allocation32], %s2427
          %2429 = dma.done %s2425, 256
        $region188: #{xe_transformer_layer.2} parent=183 // pred_fallthru
          _
        // Predicated region
        $region189: #{xe_transformer_layer.2} parent=183 // pred_check
          %p2430 = pneg %p535
        $region190: #{xe_transformer_layer.2} parent=183 // pred_check_branch
          %2432 = sbr.rel (%p2430) target = $region192
        $region191: #{xe_transformer_layer.2} parent=183 // pred_region
          %s2433 = sand.u32 %s520, 1
          %s2434 = scalar_lea.sflag [#allocation34], %s2433
          %s2435 = sand.u32 %s520, 1
          %s2436 = smul.addr %s2435, 16
          %s2437 = scalar_lea.vmem [#allocation33], %s2436
          %2438 = dma.done %s2434, 256
        $region192: #{xe_transformer_layer.2} parent=183 // pred_fallthru
          _
      $region184: #{xe_transformer_layer.2} parent=5 // pred_fallthru
        _
    $region6: #{xe_transformer_layer.2} parent=1 // loop_footer
      %s55 = sadd.s32 1, %s51
    $region7: #{xe_transformer_layer.2} parent=1 // loop_footer_branch
      %50 = sbr.rel target = $region3
    $region8: #{xe_transformer_layer.2} parent=1 // loop_exit
      _
    %2439 = vsyncpa [#allocation3], 1
    %s2440 = scalar_lea.sflag [#allocation3], 1
    %2441 = vsyncpa %s2440, 1
    %2442 = vsyncpa [#allocation6], 1
    %s2443 = scalar_lea.sflag [#allocation6], 1
    %2444 = vsyncpa %s2443, 1
    %2445 = vsyncpa [#allocation9], 1
    %s2446 = scalar_lea.sflag [#allocation9], 1
    %2447 = vsyncpa %s2446, 1
    %2448 = vsyncpa [#allocation12], 1
    %s2449 = scalar_lea.sflag [#allocation12], 1
    %2450 = vsyncpa %s2449, 1
    %2451 = vsyncpa [#allocation15], 1
    %2452 = vsyncpa [#allocation18], 1
    %2453 = vsyncpa [#allocation21], 1
    %2454 = vsyncpa [#allocation24], 1
    %2455 = vsyncpa [#allocation27], 1
    %2456 = vsyncpa [#allocation30], 1
    %2457 = vsyncpa [#allocation4], 1
    %s2458 = scalar_lea.sflag [#allocation4], 1
    %2459 = vsyncpa %s2458, 1
    %2460 = vsyncpa [#allocation34], 1
    %s2461 = scalar_lea.sflag [#allocation34], 1
    %2462 = vsyncpa %s2461, 1

</llo_original>
